<compile_context>
chip_gen: v5e
topology: v5e:2x2
jax: 0.10.0
libtpu: 0.0.40
codegen_flags: <defaults>
</compile_context>

<pallas_src>
import math
import numpy as np
import jax
import jax.numpy as jnp
from jax import lax
from jax.experimental import pallas as pl
from jax.experimental.pallas import tpu as pltpu

jax.config.update("jax_default_matmul_precision", "highest")


# ----------------------------- helpers ------------------------------------ #

def _softplus(x):  # matches torch.nn.functional.softplus (threshold=20)
    return jnp.where(x > 20.0, x, jnp.log1p(jnp.exp(jnp.minimum(x, 20.0))))


def _silu(x):
    return x * jax.nn.sigmoid(x)


def _pick_tile(dim, pref, align):
    """Largest tile <= pref that divides `dim` and is a multiple of `align`,
    else the full dim (always a legal block shape)."""
    if dim <= pref:
        return dim
    t = (pref // align) * align
    while t >= align:
        if dim % t == 0:
            return t
        t -= align
    return dim


# --------------------------- Pallas kernels -------------------------------- #

def _linear_bias_kernel(x_ref, w_ref, b_ref, o_ref):
    o_ref[...] = jnp.dot(x_ref[...], w_ref[...],
                         preferred_element_type=jnp.float32) + b_ref[...]


def _rms_inproj_kernel(x_ref, nw_ref, wx_ref, wr_ref, xc_ref, res_ref):
    # RMSNorm(x) followed by the two halves of in_proj (xc / res).
    x = x_ref[...]
    ms = jnp.mean(x * x, axis=-1, keepdims=True)
    xn = x * lax.rsqrt(ms + 1e-5) * nw_ref[...]
    xc_ref[...] = jnp.dot(xn, wx_ref[...], preferred_element_type=jnp.float32)
    res_ref[...] = jnp.dot(xn, wr_ref[...], preferred_element_type=jnp.float32)


def _conv_xdt_kernel(xc_ref, cw_ref, cb_ref, wbc_ref, wdt_ref, dtw_ref,
                     dtb_ref, u_ref, bc_ref, dl_ref):
    # depthwise causal conv1d(k=K) + SiLU, then x_proj (B/C half) and
    # dt_proj + softplus, all fused for one batch element.
    # xc: (1, L, ED); outputs u: (1, L, ED), bc: (1, L, 2N), delta: (1, L, ED)
    K = cw_ref.shape[0]
    L = xc_ref.shape[1]
    ED = xc_ref.shape[2]
    x2 = xc_ref[0]                                          # (L, ED)
    # causal left-pad handled in-kernel (VMEM only, no HBM materialization)
    xpad = jnp.concatenate(
        [jnp.zeros((K - 1, ED), jnp.float32), x2], axis=0)  # (L+K-1, ED)
    acc = jnp.zeros((L, ED), jnp.float32) + cb_ref[...]
    for k in range(K):                                      # K=4, static unroll
        acc = acc + xpad[k:k + L, :] * cw_ref[k:k + 1, :]
    u = acc * jax.nn.sigmoid(acc)                           # SiLU
    u_ref[0] = u
    bc_ref[0] = jnp.dot(u, wbc_ref[...], preferred_element_type=jnp.float32)
    dt_low = jnp.dot(u, wdt_ref[...], preferred_element_type=jnp.float32)
    dt = jnp.dot(dt_low, dtw_ref[...],
                 preferred_element_type=jnp.float32) + dtb_ref[...]
    dl_ref[0] = _softplus(dt)                               # delta pre-softplus'd


def _scan_kernel(u_ref, dl_ref, bc_ref, alog_ref, dsk_ref, y_ref,
                 h_ref, a_ref):
    # Selective SSM scan, lane-dense in d_inner (ED on the lane axis).
    # Blocks: u/delta (Bz, Tc, ED), bc (Bz, Tc, 2N), A_log (N, ED), D (1, ED),
    # output y (Bz, Tc, ED); scratches: h (Bz, N, ED), a (N, ED).
    tc = pl.program_id(0)

    @pl.when(tc == 0)
    def _():
        h_ref[...] = jnp.zeros_like(h_ref)
        a_ref[...] = -jnp.exp(alog_ref[...])      # hoisted: once per sequence

    N = a_ref.shape[0]
    Tc = u_ref.shape[1]
    A = a_ref[...]                                # (N, ED)
    D = dsk_ref[...]                              # (1, ED)
    h = h_ref[...]                                # (Bz, N, ED)
    for i in range(Tc):                           # static unroll over chunk
        u_t = u_ref[:, i, :]                      # (Bz, ED)
        d_t = dl_ref[:, i, :]                     # (Bz, ED), already softplus'd
        b_t = bc_ref[:, i, :N]                    # (Bz, N)
        c_t = bc_ref[:, i, N:]                    # (Bz, N)
        dA = jnp.exp(d_t[:, None, :] * A[None, :, :])       # (Bz, N, ED)
        dBu = (d_t * u_t)[:, None, :] * b_t[:, :, None]     # (Bz, N, ED)
        h = dA * h + dBu
        y = jnp.sum(h * c_t[:, :, None], axis=1)            # (Bz, ED)
        y_ref[:, i, :] = y + u_t * D
    h_ref[...] = h


def _gate_outproj_kernel(y_ref, res_ref, w_ref, hres_ref, o_ref, acc_ref):
    # (y * SiLU(res)) @ W_out + residual, K (=ED) tiled with f32 accumulator.
    k = pl.program_id(2)

    @pl.when(k == 0)
    def _():
        acc_ref[...] = jnp.zeros_like(acc_ref)

    r = res_ref[...]
    g = y_ref[...] * (r * jax.nn.sigmoid(r))
    acc_ref[...] += jnp.dot(g, w_ref[...], preferred_element_type=jnp.float32)

    @pl.when(k == pl.num_programs(2) - 1)
    def _():
        o_ref[...] = acc_ref[...] + hres_ref[...]


def _rms_out_kernel(x_ref, nw_ref, w_ref, b_ref, o_ref):
    # final RMSNorm + output Linear + LeakyReLU(0.01)
    x = x_ref[...]
    ms = jnp.mean(x * x, axis=-1, keepdims=True)
    xn = x * lax.rsqrt(ms + 1e-5) * nw_ref[...]
    y = jnp.dot(xn, w_ref[...], preferred_element_type=jnp.float32) + b_ref[...]
    o_ref[...] = jnp.where(y >= 0, y, 0.01 * y)


# --------------------------- kernel wrappers ------------------------------- #

def _linear_in(x2d, w, b):
    M, K = x2d.shape
    N = w.shape[1]
    tm = _pick_tile(M, 256, 8)
    tn = _pick_tile(N, 512, 128)
    return pl.pallas_call(
        _linear_bias_kernel,
        out_shape=jax.ShapeDtypeStruct((M, N), jnp.float32),
        grid=(M // tm, N // tn),
        in_specs=[pl.BlockSpec((tm, K), lambda i, j: (i, 0)),
                  pl.BlockSpec((K, tn), lambda i, j: (0, j)),
                  pl.BlockSpec((1, tn), lambda i, j: (0, j))],
        out_specs=pl.BlockSpec((tm, tn), lambda i, j: (i, j)),
        compiler_params=pltpu.CompilerParams(
            dimension_semantics=("parallel", "parallel")),
    )(x2d, w, b)


def _rms_inproj(h2d, nw, wx, wr):
    M, H = h2d.shape
    ED = wx.shape[1]
    tm = _pick_tile(M, 256, 8)
    tn = _pick_tile(ED, 512, 128)
    return pl.pallas_call(
        _rms_inproj_kernel,
        out_shape=(jax.ShapeDtypeStruct((M, ED), jnp.float32),
                   jax.ShapeDtypeStruct((M, ED), jnp.float32)),
        grid=(M // tm, ED // tn),
        in_specs=[pl.BlockSpec((tm, H), lambda i, j: (i, 0)),
                  pl.BlockSpec((1, H), lambda i, j: (0, 0)),
                  pl.BlockSpec((H, tn), lambda i, j: (0, j)),
                  pl.BlockSpec((H, tn), lambda i, j: (0, j))],
        out_specs=(pl.BlockSpec((tm, tn), lambda i, j: (i, j)),
                   pl.BlockSpec((tm, tn), lambda i, j: (i, j))),
        compiler_params=pltpu.CompilerParams(
            dimension_semantics=("parallel", "parallel")),
    )(h2d, nw, wx, wr)


def _conv_xdt(xc3, lp):
    # TODO(synk): for very long sequences this should also tile L with a
    # (K-1)-row halo; one batch element per grid step is fine at these sizes.
    Bz, L, ED = xc3.shape
    K = lp["conv_w"].shape[0]
    dt_rank = lp["x_proj_wdt"].shape[1]
    N2 = lp["x_proj_wbc"].shape[1]
    return pl.pallas_call(
        _conv_xdt_kernel,
        out_shape=(jax.ShapeDtypeStruct((Bz, L, ED), jnp.float32),
                   jax.ShapeDtypeStruct((Bz, L, N2), jnp.float32),
                   jax.ShapeDtypeStruct((Bz, L, ED), jnp.float32)),
        grid=(Bz,),
        in_specs=[pl.BlockSpec((1, L, ED), lambda b: (b, 0, 0)),
                  pl.BlockSpec((K, ED), lambda b: (0, 0)),
                  pl.BlockSpec((1, ED), lambda b: (0, 0)),
                  pl.BlockSpec((ED, N2), lambda b: (0, 0)),
                  pl.BlockSpec((ED, dt_rank), lambda b: (0, 0)),
                  pl.BlockSpec((dt_rank, ED), lambda b: (0, 0)),
                  pl.BlockSpec((1, ED), lambda b: (0, 0))],
        out_specs=(pl.BlockSpec((1, L, ED), lambda b: (b, 0, 0)),
                   pl.BlockSpec((1, L, N2), lambda b: (b, 0, 0)),
                   pl.BlockSpec((1, L, ED), lambda b: (b, 0, 0))),
        compiler_params=pltpu.CompilerParams(
            dimension_semantics=("parallel",),
            vmem_limit_bytes=64 * 1024 * 1024),
    )(xc3, lp["conv_w"], lp["conv_b"], lp["x_proj_wbc"], lp["x_proj_wdt"],
      lp["dt_proj_w"], lp["dt_proj_b"])


def _selective_scan(u, dl, bc, a_log, dskip):
    Bz, L, ED = u.shape
    N = a_log.shape[0]
    if L <= 16:
        Tc = L
    else:
        Tc = next(t for t in (16, 8, 4, 2, 1) if L % t == 0)
    return pl.pallas_call(
        _scan_kernel,
        out_shape=jax.ShapeDtypeStruct((Bz, L, ED), jnp.float32),
        grid=(L // Tc,),
        in_specs=[pl.BlockSpec((Bz, Tc, ED), lambda t: (0, t, 0)),
                  pl.BlockSpec((Bz, Tc, ED), lambda t: (0, t, 0)),
                  pl.BlockSpec((Bz, Tc, 2 * N), lambda t: (0, t, 0)),
                  pl.BlockSpec((N, ED), lambda t: (0, 0)),
                  pl.BlockSpec((1, ED), lambda t: (0, 0))],
        out_specs=pl.BlockSpec((Bz, Tc, ED), lambda t: (0, t, 0)),
        scratch_shapes=[pltpu.VMEM((Bz, N, ED), jnp.float32),
                        pltpu.VMEM((N, ED), jnp.float32)],
        compiler_params=pltpu.CompilerParams(
            dimension_semantics=("arbitrary",),
            vmem_limit_bytes=64 * 1024 * 1024),
    )(u, dl, bc, a_log, dskip)


def _gate_outproj(y2d, res2d, w, h2d):
    M, ED = y2d.shape
    H = w.shape[1]
    tm = _pick_tile(M, 256, 8)
    tn = _pick_tile(H, 512, 128)
    tk = _pick_tile(ED, 512, 128)
    return pl.pallas_call(
        _gate_outproj_kernel,
        out_shape=jax.ShapeDtypeStruct((M, H), jnp.float32),
        grid=(M // tm, H // tn, ED // tk),
        in_specs=[pl.BlockSpec((tm, tk), lambda i, j, k: (i, k)),
                  pl.BlockSpec((tm, tk), lambda i, j, k: (i, k)),
                  pl.BlockSpec((tk, tn), lambda i, j, k: (k, j)),
                  pl.BlockSpec((tm, tn), lambda i, j, k: (i, j))],
        out_specs=pl.BlockSpec((tm, tn), lambda i, j, k: (i, j)),
        scratch_shapes=[pltpu.VMEM((tm, tn), jnp.float32)],
        compiler_params=pltpu.CompilerParams(
            dimension_semantics=("parallel", "parallel", "arbitrary")),
    )(y2d, res2d, w, h2d)


def _rms_out(h2d, nw, w, b):
    M, H = h2d.shape
    O = w.shape[1]
    tm = _pick_tile(M, 256, 8)
    return pl.pallas_call(
        _rms_out_kernel,
        out_shape=jax.ShapeDtypeStruct((M, O), jnp.float32),
        grid=(M // tm,),
        in_specs=[pl.BlockSpec((tm, H), lambda i: (i, 0)),
                  pl.BlockSpec((1, H), lambda i: (0, 0)),
                  pl.BlockSpec((H, O), lambda i: (0, 0)),
                  pl.BlockSpec((1, O), lambda i: (0, 0))],
        out_specs=pl.BlockSpec((tm, O), lambda i: (i, 0)),
        compiler_params=pltpu.CompilerParams(
            dimension_semantics=("parallel",)),
    )(h2d, nw, w, b)


# --------------------------- model (Pallas path) --------------------------- #

@jax.jit
def network_forward(params, x):
    Bz, L, _ = x.shape
    M = Bz * L
    h = _linear_in(x.reshape(M, -1), params["lin_in_w"], params["lin_in_b"])
    for lp in params["layers"]:
        ED = lp["D"].shape[1]
        xc, res = _rms_inproj(h, lp["norm_w"], lp["in_proj_wx"],
                              lp["in_proj_wr"])
        # (M, ED) <-> (Bz, L, ED) reshapes are free views (no transposes).
        u, bc, dl = _conv_xdt(xc.reshape(Bz, L, ED), lp)
        y3 = _selective_scan(u, dl, bc, lp["A_log"], lp["D"])
        h = _gate_outproj(y3.reshape(M, ED), res, lp["out_proj_w"], h)
    out = _rms_out(h, params["norm_f_w"], params["lin_out_w"],
                   params["lin_out_b"])
    return out.reshape(-1)                                  # x.flatten()


# --------------------------- pure-JAX reference ---------------------------- #

def network_forward_ref(params, x):
    Bz, L, _ = x.shape
    h = x @ params["lin_in_w"] + params["lin_in_b"]
    for lp in params["layers"]:
        ED = lp["D"].shape[1]
        N = lp["A_log"].shape[0]
        K = lp["conv_w"].shape[0]
        xn = h * lax.rsqrt(jnp.mean(h * h, -1, keepdims=True) + 1e-5) * lp["norm_w"]
        xc = xn @ lp["in_proj_wx"]
        res = xn @ lp["in_proj_wr"]
        xp = jnp.pad(xc, ((0, 0), (K - 1, 0), (0, 0)))
        acc = jnp.zeros((Bz, L, ED), jnp.float32) + lp["conv_b"]
        for k in range(K):
            acc = acc + xp[:, k:k + L, :] * lp["conv_w"][k]
        u = _silu(acc)
        delta = _softplus((u @ lp["x_proj_wdt"]) @ lp["dt_proj_w"]
                          + lp["dt_proj_b"])
        bc = u @ lp["x_proj_wbc"]
        Bm, Cm = bc[..., :N], bc[..., N:]
        A = -jnp.exp(lp["A_log"])                            # (N, ED)
        hs = jnp.zeros((Bz, N, ED), jnp.float32)
        ys = []
        for t in range(L):
            dA = jnp.exp(delta[:, t, None, :] * A[None])
            dBu = (delta[:, t] * u[:, t])[:, None, :] * Bm[:, t, :, None]
            hs = dA * hs + dBu
            ys.append(jnp.sum(hs * Cm[:, t, :, None], axis=1)
                      + u[:, t] * lp["D"])
        y = jnp.stack(ys, axis=1)
        h = (y * _silu(res)) @ lp["out_proj_w"] + h
    h = h * lax.rsqrt(jnp.mean(h * h, -1, keepdims=True) + 1e-5) * params["norm_f_w"]
    out = h @ params["lin_out_w"] + params["lin_out_b"]
    out = jnp.where(out >= 0, out, 0.01 * out)
    return out.reshape(-1)


# --------------------------- parameter init -------------------------------- #

def init_params(key, in_dim, hidden, out_dim, n_layers,
                d_state=16, expand=2, d_conv=4):
    d_inner = expand * hidden
    dt_rank = math.ceil(hidden / 16)

    def nrm(k, shape, scale=0.05):
        return scale * jax.random.normal(k, shape, jnp.float32)

    keys = iter(jax.random.split(key, 8 + 12 * n_layers))
    params = {
        "lin_in_w": nrm(next(keys), (in_dim, hidden)),
        "lin_in_b": nrm(next(keys), (1, hidden)),
        "lin_out_w": nrm(next(keys), (hidden, out_dim)),
        "lin_out_b": nrm(next(keys), (1, out_dim)),
        "norm_f_w": jnp.ones((1, hidden), jnp.float32),
        "layers": [],
    }
    for _ in range(n_layers):
        lp = {
            "norm_w": jnp.ones((1, hidden), jnp.float32),
            # in_proj split into the xc / res halves (2*d_inner total)
            "in_proj_wx": nrm(next(keys), (hidden, d_inner)),
            "in_proj_wr": nrm(next(keys), (hidden, d_inner)),
            "conv_w": nrm(next(keys), (d_conv, d_inner), 0.2),
            "conv_b": nrm(next(keys), (1, d_inner), 0.2),
            # x_proj split into the delta-rank half and the B/C half
            "x_proj_wdt": nrm(next(keys), (d_inner, dt_rank)),
            "x_proj_wbc": nrm(next(keys), (d_inner, 2 * d_state)),
            "dt_proj_w": nrm(next(keys), (dt_rank, d_inner), 0.5),
            "dt_proj_b": nrm(next(keys), (1, d_inner), 0.5),
            # stored (d_state, d_inner) = transpose of the PyTorch layout so
            # the scan is lane-dense in d_inner
            "A_log": jnp.log(jnp.tile(
                jnp.arange(1, d_state + 1, dtype=jnp.float32)[:, None],
                (1, d_inner))),
            "D": jnp.ones((1, d_inner), jnp.float32),
            "out_proj_w": nrm(next(keys), (d_inner, hidden)),
        }
        params["layers"].append(lp)
    return params


# --------------------------------- main ------------------------------------ #

if __name__ == "__main__":
    in_dim, hidden, out_dim, n_layers = 16, 32, 4, 2
    batch, seq = 2, 8

    key = jax.random.PRNGKey(0)
    pkey, xkey = jax.random.split(key)
    params = init_params(pkey, in_dim, hidden, out_dim, n_layers)
    x = jax.random.normal(xkey, (batch, seq, in_dim), jnp.float32)

    out = jax.block_until_ready(network_forward(params, x))
    ref = jax.block_until_ready(network_forward_ref(params, x))

    assert out.shape == (batch * seq * out_dim,)
    assert bool(jnp.all(jnp.isfinite(out)))
    np.testing.assert_allclose(np.asarray(out), np.asarray(ref),
                               rtol=1e-2, atol=1e-4)
    print("KERNEL_OK")
</pallas_src>

<mosaic_0001>
module attributes {stable_mosaic.version = 11 : i64} {
  func.func @_linear_bias_kernel(%arg0: i32, %arg1: i32, %arg2: memref<16x16xf32, #tpu.memory_space<vmem>>, %arg3: memref<16x32xf32, #tpu.memory_space<vmem>>, %arg4: memref<1x32xf32, #tpu.memory_space<vmem>>, %arg5: memref<16x32xf32, #tpu.memory_space<vmem>>) attributes {dimension_semantics = [#tpu.dimension_semantics<parallel>, #tpu.dimension_semantics<parallel>], iteration_bounds = array<i64: 1, 1>, scalar_prefetch = 0 : i64, scratch_operands = 0 : i64, tpu.core_type = #tpu.core_type<tc>, window_params = [{transform_indices = @transform_0, window_bounds = array<i64: 16, 16>}, {transform_indices = @transform_1, window_bounds = array<i64: 16, 32>}, {transform_indices = @transform_2, window_bounds = array<i64: 1, 32>}, {transform_indices = @transform_3, window_bounds = array<i64: 16, 32>}]} {
    %c0 = arith.constant 0 : index
    %c0_0 = arith.constant 0 : index
    %0 = vector.load %arg2[%c0, %c0_0] : memref<16x16xf32, #tpu.memory_space<vmem>>, vector<16x16xf32>
    %c0_1 = arith.constant 0 : index
    %c0_2 = arith.constant 0 : index
    %1 = vector.load %arg3[%c0_1, %c0_2] : memref<16x32xf32, #tpu.memory_space<vmem>>, vector<16x32xf32>
    %cst = arith.constant dense<0.000000e+00> : vector<16x32xf32>
    %2 = tpu.matmul %0, %1, %cst {dimension_numbers = #tpu.dot_dimension_numbers<[1], [0], [0], [1], [0, 0, 1, 1], [], []>, precision = #tpu.contract_precision<fp32>} : vector<16x16xf32>, vector<16x32xf32>, vector<16x32xf32> -> vector<16x32xf32>
    %c0_3 = arith.constant 0 : index
    %c0_4 = arith.constant 0 : index
    %3 = vector.load %arg4[%c0_3, %c0_4] : memref<1x32xf32, #tpu.memory_space<vmem>>, vector<1x32xf32>
    %4 = vector.broadcast %3 : vector<1x32xf32> to vector<16x32xf32>
    %5 = arith.addf %2, %4 : vector<16x32xf32>
    %c0_5 = arith.constant 0 : index
    %c0_6 = arith.constant 0 : index
    %6 = vector.load %arg5[%c0_5, %c0_6] : memref<16x32xf32, #tpu.memory_space<vmem>>, vector<16x32xf32>
    tpu.vector_store %arg5[%c0_5, %c0_6], %5 {strides = array<i32>} : memref<16x32xf32, #tpu.memory_space<vmem>>, vector<16x32xf32>,
    return
  }
  func.func @transform_0(%arg0: i32, %arg1: i32) -> (i32, i32) {
    %c0_i32 = arith.constant 0 : i32
    %c0_i32_0 = arith.constant 0 : i32
    return %arg0, %c0_i32 : i32, i32
  }
  func.func @transform_1(%arg0: i32, %arg1: i32) -> (i32, i32) {
    %c0_i32 = arith.constant 0 : i32
    %c0_i32_0 = arith.constant 0 : i32
    return %c0_i32, %arg1 : i32, i32
  }
  func.func @transform_2(%arg0: i32, %arg1: i32) -> (i32, i32) {
    %c0_i32 = arith.constant 0 : i32
    %c0_i32_0 = arith.constant 0 : i32
    return %c0_i32, %arg1 : i32, i32
  }
  func.func @transform_3(%arg0: i32, %arg1: i32) -> (i32, i32) {
    %c0_i32 = arith.constant 0 : i32
    return %arg0, %arg1 : i32, i32
  }
}

module attributes {stable_mosaic.version = 11 : i64} {
  func.func @_rms_inproj_kernel(%arg0: i32, %arg1: i32, %arg2: memref<16x32xf32, #tpu.memory_space<vmem>>, %arg3: memref<1x32xf32, #tpu.memory_space<vmem>>, %arg4: memref<32x64xf32, #tpu.memory_space<vmem>>, %arg5: memref<32x64xf32, #tpu.memory_space<vmem>>, %arg6: memref<16x64xf32, #tpu.memory_space<vmem>>, %arg7: memref<16x64xf32, #tpu.memory_space<vmem>>) attributes {dimension_semantics = [#tpu.dimension_semantics<parallel>, #tpu.dimension_semantics<parallel>], iteration_bounds = array<i64: 1, 1>, scalar_prefetch = 0 : i64, scratch_operands = 0 : i64, tpu.core_type = #tpu.core_type<tc>, window_params = [{transform_indices = @transform_0, window_bounds = array<i64: 16, 32>}, {pipeline_mode = #tpu.pipeline_mode<synchronous>, transform_indices = @transform_1, window_bounds = array<i64: 1, 32>}, {transform_indices = @transform_2, window_bounds = array<i64: 32, 64>}, {transform_indices = @transform_3, window_bounds = array<i64: 32, 64>}, {transform_indices = @transform_4, window_bounds = array<i64: 16, 64>}, {transform_indices = @transform_5, window_bounds = array<i64: 16, 64>}]} {
    %c0 = arith.constant 0 : index
    %c0_0 = arith.constant 0 : index
    %0 = vector.load %arg2[%c0, %c0_0] : memref<16x32xf32, #tpu.memory_space<vmem>>, vector<16x32xf32>
    %1 = arith.mulf %0, %0 : vector<16x32xf32>
    %cst = arith.constant dense<0.000000e+00> : vector<16xf32>
    %2 = vector.multi_reduction <add>, %1, %cst [1] : vector<16x32xf32> to vector<16xf32>
    %3 = vector.shape_cast %2 : vector<16xf32> to vector<16x1xf32>
    %cst_1 = arith.constant 3.200000e+01 : f32
    %4 = vector.broadcast %cst_1 : f32 to vector<16x1xf32>
    %5 = arith.divf %3, %4 : vector<16x1xf32>
    %cst_2 = arith.constant 9.99999974E-6 : f32
    %6 = vector.broadcast %cst_2 : f32 to vector<16x1xf32>
    %7 = arith.addf %5, %6 : vector<16x1xf32>
    %8 = math.rsqrt %7 : vector<16x1xf32>
    %9 = vector.broadcast %8 : vector<16x1xf32> to vector<16x32xf32>
    %10 = arith.mulf %0, %9 : vector<16x32xf32>
    %c0_3 = arith.constant 0 : index
    %c0_4 = arith.constant 0 : index
    %11 = vector.load %arg3[%c0_3, %c0_4] : memref<1x32xf32, #tpu.memory_space<vmem>>, vector<1x32xf32>
    %12 = vector.broadcast %11 : vector<1x32xf32> to vector<16x32xf32>
    %13 = arith.mulf %10, %12 : vector<16x32xf32>
    %c0_5 = arith.constant 0 : index
    %c0_6 = arith.constant 0 : index
    %14 = vector.load %arg4[%c0_5, %c0_6] : memref<32x64xf32, #tpu.memory_space<vmem>>, vector<32x64xf32>
    %cst_7 = arith.constant dense<0.000000e+00> : vector<16x64xf32>
    %15 = tpu.matmul %13, %14, %cst_7 {dimension_numbers = #tpu.dot_dimension_numbers<[1], [0], [0], [1], [0, 0, 1, 1], [], []>, precision = #tpu.contract_precision<fp32>} : vector<16x32xf32>, vector<32x64xf32>, vector<16x64xf32> -> vector<16x64xf32>
    %c0_8 = arith.constant 0 : index
    %c0_9 = arith.constant 0 : index
    %16 = vector.load %arg6[%c0_8, %c0_9] : memref<16x64xf32, #tpu.memory_space<vmem>>, vector<16x64xf32>
    tpu.vector_store %arg6[%c0_8, %c0_9], %15 {strides = array<i32>} : memref<16x64xf32, #tpu.memory_space<vmem>>, vector<16x64xf32>,
    %c0_10 = arith.constant 0 : index
    %c0_11 = arith.constant 0 : index
    %17 = vector.load %arg5[%c0_10, %c0_11] : memref<32x64xf32, #tpu.memory_space<vmem>>, vector<32x64xf32>
    %cst_12 = arith.constant dense<0.000000e+00> : vector<16x64xf32>
    %18 = tpu.matmul %13, %17, %cst_12 {dimension_numbers = #tpu.dot_dimension_numbers<[1], [0], [0], [1], [0, 0, 1, 1], [], []>, precision = #tpu.contract_precision<fp32>} : vector<16x32xf32>, vector<32x64xf32>, vector<16x64xf32> -> vector<16x64xf32>
    %c0_13 = arith.constant 0 : index
    %c0_14 = arith.constant 0 : index
    %19 = vector.load %arg7[%c0_13, %c0_14] : memref<16x64xf32, #tpu.memory_space<vmem>>, vector<16x64xf32>
    tpu.vector_store %arg7[%c0_13, %c0_14], %18 {strides = array<i32>} : memref<16x64xf32, #tpu.memory_space<vmem>>, vector<16x64xf32>,
    return
  }
  func.func @transform_0(%arg0: i32, %arg1: i32) -> (i32, i32) {
    %c0_i32 = arith.constant 0 : i32
    %c0_i32_0 = arith.constant 0 : i32
    return %arg0, %c0_i32 : i32, i32
  }
  func.func @transform_1(%arg0: i32, %arg1: i32) -> (i32, i32) {
    %c0_i32 = arith.constant 0 : i32
    %c0_i32_0 = arith.constant 0 : i32
    %c0_i32_1 = arith.constant 0 : i32
    return %c0_i32, %c0_i32_0 : i32, i32
  }
  func.func @transform_2(%arg0: i32, %arg1: i32) -> (i32, i32) {
    %c0_i32 = arith.constant 0 : i32
    %c0_i32_0 = arith.constant 0 : i32
    return %c0_i32, %arg1 : i32, i32
  }
  func.func @transform_3(%arg0: i32, %arg1: i32) -> (i32, i32) {
    %c0_i32 = arith.constant 0 : i32
    %c0_i32_0 = arith.constant 0 : i32
    return %c0_i32, %arg1 : i32, i32
  }
  func.func @transform_4(%arg0: i32, %arg1: i32) -> (i32, i32) {
    %c0_i32 = arith.constant 0 : i32
    return %arg0, %arg1 : i32, i32
  }
  func.func @transform_5(%arg0: i32, %arg1: i32) -> (i32, i32) {
    %c0_i32 = arith.constant 0 : i32
    return %arg0, %arg1 : i32, i32
  }
}

module attributes {stable_mosaic.version = 11 : i64} {
  func.func @_conv_xdt_kernel(%arg0: i32, %arg1: memref<1x8x64xf32, #tpu.memory_space<vmem>>, %arg2: memref<4x64xf32, #tpu.memory_space<vmem>>, %arg3: memref<1x64xf32, #tpu.memory_space<vmem>>, %arg4: memref<64x32xf32, #tpu.memory_space<vmem>>, %arg5: memref<64x2xf32, #tpu.memory_space<vmem>>, %arg6: memref<2x64xf32, #tpu.memory_space<vmem>>, %arg7: memref<1x64xf32, #tpu.memory_space<vmem>>, %arg8: memref<1x8x64xf32, #tpu.memory_space<vmem>>, %arg9: memref<1x8x32xf32, #tpu.memory_space<vmem>>, %arg10: memref<1x8x64xf32, #tpu.memory_space<vmem>>) attributes {dimension_semantics = [#tpu.dimension_semantics<parallel>], iteration_bounds = array<i64: 2>, scalar_prefetch = 0 : i64, scratch_operands = 0 : i64, tpu.core_type = #tpu.core_type<tc>, window_params = [{transform_indices = @transform_0, window_bounds = array<i64: 1, 8, 64>}, {pipeline_mode = #tpu.pipeline_mode<synchronous>, transform_indices = @transform_1, window_bounds = array<i64: 4, 64>}, {pipeline_mode = #tpu.pipeline_mode<synchronous>, transform_indices = @transform_2, window_bounds = array<i64: 1, 64>}, {pipeline_mode = #tpu.pipeline_mode<synchronous>, transform_indices = @transform_3, window_bounds = array<i64: 64, 32>}, {pipeline_mode = #tpu.pipeline_mode<synchronous>, transform_indices = @transform_4, window_bounds = array<i64: 64, 2>}, {pipeline_mode = #tpu.pipeline_mode<synchronous>, transform_indices = @transform_5, window_bounds = array<i64: 2, 64>}, {pipeline_mode = #tpu.pipeline_mode<synchronous>, transform_indices = @transform_6, window_bounds = array<i64: 1, 64>}, {transform_indices = @transform_7, window_bounds = array<i64: 1, 8, 64>}, {transform_indices = @transform_8, window_bounds = array<i64: 1, 8, 32>}, {transform_indices = @transform_9, window_bounds = array<i64: 1, 8, 64>}]} {
    %c0 = arith.constant 0 : index
    %c0_0 = arith.constant 0 : index
    %c0_1 = arith.constant 0 : index
    %0 = vector.load %arg1[%c0, %c0_0, %c0_1] : memref<1x8x64xf32, #tpu.memory_space<vmem>>, vector<1x8x64xf32>
    %1 = vector.shape_cast %0 : vector<1x8x64xf32> to vector<8x64xf32>
    %cst = arith.constant 0.000000e+00 : f32
    %2 = vector.broadcast %cst : f32 to vector<3x64xf32>
    %3 = tpu.concatenate %2, %1 in 0 : vector<3x64xf32>, vector<8x64xf32> -> vector<11x64xf32>
    %cst_2 = arith.constant 0.000000e+00 : f32
    %4 = vector.broadcast %cst_2 : f32 to vector<8x64xf32>
    %c0_3 = arith.constant 0 : index
    %c0_4 = arith.constant 0 : index
    %5 = vector.load %arg3[%c0_3, %c0_4] : memref<1x64xf32, #tpu.memory_space<vmem>>, vector<1x64xf32>
    %6 = vector.broadcast %5 : vector<1x64xf32> to vector<8x64xf32>
    %7 = arith.addf %4, %6 : vector<8x64xf32>
    %8 = vector.extract_strided_slice %3 {offsets = [0, 0], sizes = [8, 64], strides = [1, 1]} : vector<11x64xf32> to vector<8x64xf32>
    %c0_5 = arith.constant 0 : index
    %c0_6 = arith.constant 0 : index
    %9 = vector.load %arg2[%c0_5, %c0_6] : memref<4x64xf32, #tpu.memory_space<vmem>>, vector<1x64xf32>
    %10 = vector.broadcast %9 : vector<1x64xf32> to vector<8x64xf32>
    %11 = arith.mulf %8, %10 : vector<8x64xf32>
    %12 = arith.addf %7, %11 : vector<8x64xf32>
    %13 = vector.extract_strided_slice %3 {offsets = [1, 0], sizes = [8, 64], strides = [1, 1]} : vector<11x64xf32> to vector<8x64xf32>
    %c1 = arith.constant 1 : index
    %c0_7 = arith.constant 0 : index
    %14 = vector.load %arg2[%c1, %c0_7] : memref<4x64xf32, #tpu.memory_space<vmem>>, vector<1x64xf32>
    %15 = vector.broadcast %14 : vector<1x64xf32> to vector<8x64xf32>
    %16 = arith.mulf %13, %15 : vector<8x64xf32>
    %17 = arith.addf %12, %16 : vector<8x64xf32>
    %18 = vector.extract_strided_slice %3 {offsets = [2, 0], sizes = [8, 64], strides = [1, 1]} : vector<11x64xf32> to vector<8x64xf32>
    %c2 = arith.constant 2 : index
    %c0_8 = arith.constant 0 : index
    %19 = vector.load %arg2[%c2, %c0_8] : memref<4x64xf32, #tpu.memory_space<vmem>>, vector<1x64xf32>
    %20 = vector.broadcast %19 : vector<1x64xf32> to vector<8x64xf32>
    %21 = arith.mulf %18, %20 : vector<8x64xf32>
    %22 = arith.addf %17, %21 : vector<8x64xf32>
    %23 = vector.extract_strided_slice %3 {offsets = [3, 0], sizes = [8, 64], strides = [1, 1]} : vector<11x64xf32> to vector<8x64xf32>
    %c3 = arith.constant 3 : index
    %c0_9 = arith.constant 0 : index
    %24 = vector.load %arg2[%c3, %c0_9] : memref<4x64xf32, #tpu.memory_space<vmem>>, vector<1x64xf32>
    %25 = vector.broadcast %24 : vector<1x64xf32> to vector<8x64xf32>
    %26 = arith.mulf %23, %25 : vector<8x64xf32>
    %27 = arith.addf %22, %26 : vector<8x64xf32>
    %28 = arith.negf %27 : vector<8x64xf32>
    %29 = math.exp %28 : vector<8x64xf32>
    %cst_10 = arith.constant 1.000000e+00 : f32
    %30 = vector.broadcast %cst_10 : f32 to vector<8x64xf32>
    %31 = arith.addf %30, %29 : vector<8x64xf32>
    %32 = arith.divf %30, %31 : vector<8x64xf32>
    %33 = arith.mulf %27, %32 : vector<8x64xf32>
    %c0_11 = arith.constant 0 : index
    %c0_12 = arith.constant 0 : index
    %c0_13 = arith.constant 0 : index
    %34 = vector.load %arg8[%c0_11, %c0_12, %c0_13] : memref<1x8x64xf32, #tpu.memory_space<vmem>>, vector<1x8x64xf32>
    %35 = vector.shape_cast %34 : vector<1x8x64xf32> to vector<8x64xf32>
    %36 = vector.shape_cast %33 : vector<8x64xf32> to vector<1x8x64xf32>
    tpu.vector_store %arg8[%c0_11, %c0_12, %c0_13], %36 {strides = array<i32>} : memref<1x8x64xf32, #tpu.memory_space<vmem>>, vector<1x8x64xf32>,
    %c0_14 = arith.constant 0 : index
    %c0_15 = arith.constant 0 : index
    %37 = vector.load %arg4[%c0_14, %c0_15] : memref<64x32xf32, #tpu.memory_space<vmem>>, vector<64x32xf32>
    %cst_16 = arith.constant dense<0.000000e+00> : vector<8x32xf32>
    %38 = tpu.matmul %33, %37, %cst_16 {dimension_numbers = #tpu.dot_dimension_numbers<[1], [0], [0], [1], [0, 0, 1, 1], [], []>, precision = #tpu.contract_precision<fp32>} : vector<8x64xf32>, vector<64x32xf32>, vector<8x32xf32> -> vector<8x32xf32>
    %c0_17 = arith.constant 0 : index
    %c0_18 = arith.constant 0 : index
    %c0_19 = arith.constant 0 : index
    %39 = vector.load %arg9[%c0_17, %c0_18, %c0_19] : memref<1x8x32xf32, #tpu.memory_space<vmem>>, vector<1x8x32xf32>
    %40 = vector.shape_cast %39 : vector<1x8x32xf32> to vector<8x32xf32>
    %41 = vector.shape_cast %38 : vector<8x32xf32> to vector<1x8x32xf32>
    tpu.vector_store %arg9[%c0_17, %c0_18, %c0_19], %41 {strides = array<i32>} : memref<1x8x32xf32, #tpu.memory_space<vmem>>, vector<1x8x32xf32>,
    %c0_20 = arith.constant 0 : index
    %c0_21 = arith.constant 0 : index
    %42 = vector.load %arg5[%c0_20, %c0_21] : memref<64x2xf32, #tpu.memory_space<vmem>>, vector<64x2xf32>
    %cst_22 = arith.constant dense<0.000000e+00> : vector<8x2xf32>
    %43 = tpu.matmul %33, %42, %cst_22 {dimension_numbers = #tpu.dot_dimension_numbers<[1], [0], [0], [1], [0, 0, 1, 1], [], []>, precision = #tpu.contract_precision<fp32>} : vector<8x64xf32>, vector<64x2xf32>, vector<8x2xf32> -> vector<8x2xf32>
    %c0_23 = arith.constant 0 : index
    %c0_24 = arith.constant 0 : index
    %44 = vector.load %arg6[%c0_23, %c0_24] : memref<2x64xf32, #tpu.memory_space<vmem>>, vector<2x64xf32>
    %cst_25 = arith.constant dense<0.000000e+00> : vector<8x64xf32>
    %45 = tpu.matmul %43, %44, %cst_25 {dimension_numbers = #tpu.dot_dimension_numbers<[1], [0], [0], [1], [0, 0, 1, 1], [], []>, precision = #tpu.contract_precision<fp32>} : vector<8x2xf32>, vector<2x64xf32>, vector<8x64xf32> -> vector<8x64xf32>
    %c0_26 = arith.constant 0 : index
    %c0_27 = arith.constant 0 : index
    %46 = vector.load %arg7[%c0_26, %c0_27] : memref<1x64xf32, #tpu.memory_space<vmem>>, vector<1x64xf32>
    %47 = vector.broadcast %46 : vector<1x64xf32> to vector<8x64xf32>
    %48 = arith.addf %45, %47 : vector<8x64xf32>
    %cst_28 = arith.constant 2.000000e+01 : f32
    %49 = vector.broadcast %cst_28 : f32 to vector<8x64xf32>
    %50 = arith.cmpf ogt, %48, %49 : vector<8x64xf32>
    %cst_29 = arith.constant 2.000000e+01 : f32
    %51 = vector.broadcast %cst_29 : f32 to vector<8x64xf32>
    %52 = arith.minimumf %48, %51 : vector<8x64xf32>
    %53 = math.exp %52 : vector<8x64xf32>
    %54 = math.log1p %53 : vector<8x64xf32>
    %55 = arith.select %50, %48, %54 : vector<8x64xi1>, vector<8x64xf32>
    %c0_30 = arith.constant 0 : index
    %c0_31 = arith.constant 0 : index
    %c0_32 = arith.constant 0 : index
    %56 = vector.load %arg10[%c0_30, %c0_31, %c0_32] : memref<1x8x64xf32, #tpu.memory_space<vmem>>, vector<1x8x64xf32>
    %57 = vector.shape_cast %56 : vector<1x8x64xf32> to vector<8x64xf32>
    %58 = vector.shape_cast %55 : vector<8x64xf32> to vector<1x8x64xf32>
    tpu.vector_store %arg10[%c0_30, %c0_31, %c0_32], %58 {strides = array<i32>} : memref<1x8x64xf32, #tpu.memory_space<vmem>>, vector<1x8x64xf32>,
    return
  }
  func.func @transform_0(%arg0: i32) -> (i32, i32, i32) {
    %c0_i32 = arith.constant 0 : i32
    %c0_i32_0 = arith.constant 0 : i32
    %c0_i32_1 = arith.constant 0 : i32
    return %arg0, %c0_i32, %c0_i32_0 : i32, i32, i32
  }
  func.func @transform_1(%arg0: i32) -> (i32, i32) {
    %c0_i32 = arith.constant 0 : i32
    %c0_i32_0 = arith.constant 0 : i32
    %c0_i32_1 = arith.constant 0 : i32
    return %c0_i32, %c0_i32_0 : i32, i32
  }
  func.func @transform_2(%arg0: i32) -> (i32, i32) {
    %c0_i32 = arith.constant 0 : i32
    %c0_i32_0 = arith.constant 0 : i32
    %c0_i32_1 = arith.constant 0 : i32
    return %c0_i32, %c0_i32_0 : i32, i32
  }
  func.func @transform_3(%arg0: i32) -> (i32, i32) {
    %c0_i32 = arith.constant 0 : i32
    %c0_i32_0 = arith.constant 0 : i32
    %c0_i32_1 = arith.constant 0 : i32
    return %c0_i32, %c0_i32_0 : i32, i32
  }
  func.func @transform_4(%arg0: i32) -> (i32, i32) {
    %c0_i32 = arith.constant 0 : i32
    %c0_i32_0 = arith.constant 0 : i32
    %c0_i32_1 = arith.constant 0 : i32
    return %c0_i32, %c0_i32_0 : i32, i32
  }
  func.func @transform_5(%arg0: i32) -> (i32, i32) {
    %c0_i32 = arith.constant 0 : i32
    %c0_i32_0 = arith.constant 0 : i32
    %c0_i32_1 = arith.constant 0 : i32
    return %c0_i32, %c0_i32_0 : i32, i32
  }
  func.func @transform_6(%arg0: i32) -> (i32, i32) {
    %c0_i32 = arith.constant 0 : i32
    %c0_i32_0 = arith.constant 0 : i32
    %c0_i32_1 = arith.constant 0 : i32
    return %c0_i32, %c0_i32_0 : i32, i32
  }
  func.func @transform_7(%arg0: i32) -> (i32, i32, i32) {
    %c0_i32 = arith.constant 0 : i32
    %c0_i32_0 = arith.constant 0 : i32
    %c0_i32_1 = arith.constant 0 : i32
    return %arg0, %c0_i32, %c0_i32_0 : i32, i32, i32
  }
  func.func @transform_8(%arg0: i32) -> (i32, i32, i32) {
    %c0_i32 = arith.constant 0 : i32
    %c0_i32_0 = arith.constant 0 : i32
    %c0_i32_1 = arith.constant 0 : i32
    return %arg0, %c0_i32, %c0_i32_0 : i32, i32, i32
  }
  func.func @transform_9(%arg0: i32) -> (i32, i32, i32) {
    %c0_i32 = arith.constant 0 : i32
    %c0_i32_0 = arith.constant 0 : i32
    %c0_i32_1 = arith.constant 0 : i32
    return %arg0, %c0_i32, %c0_i32_0 : i32, i32, i32
  }
}

module attributes {stable_mosaic.version = 11 : i64} {
  func.func @_scan_kernel(%arg0: i32, %arg1: memref<2x8x64xf32, #tpu.memory_space<vmem>>, %arg2: memref<2x8x64xf32, #tpu.memory_space<vmem>>, %arg3: memref<2x8x32xf32, #tpu.memory_space<vmem>>, %arg4: memref<16x64xf32, #tpu.memory_space<vmem>>, %arg5: memref<1x64xf32, #tpu.memory_space<vmem>>, %arg6: memref<2x8x64xf32, #tpu.memory_space<vmem>>, %arg7: memref<2x16x64xf32, #tpu.memory_space<vmem>>, %arg8: memref<16x64xf32, #tpu.memory_space<vmem>>) attributes {dimension_semantics = [#tpu.dimension_semantics<arbitrary>], iteration_bounds = array<i64: 1>, scalar_prefetch = 0 : i64, scratch_operands = 2 : i64, tpu.core_type = #tpu.core_type<tc>, window_params = [{transform_indices = @transform_0, window_bounds = array<i64: 2, 8, 64>}, {transform_indices = @transform_1, window_bounds = array<i64: 2, 8, 64>}, {transform_indices = @transform_2, window_bounds = array<i64: 2, 8, 32>}, {pipeline_mode = #tpu.pipeline_mode<synchronous>, transform_indices = @transform_3, window_bounds = array<i64: 16, 64>}, {pipeline_mode = #tpu.pipeline_mode<synchronous>, transform_indices = @transform_4, window_bounds = array<i64: 1, 64>}, {transform_indices = @transform_5, window_bounds = array<i64: 2, 8, 64>}]} {
    %c0_i32 = arith.constant 0 : i32
    %0 = arith.cmpi eq, %arg0, %c0_i32 : i32
    %1 = arith.extui %0 : i1 to i32
    %c0_i32_0 = arith.constant 0 : i32
    %2 = arith.cmpi ne, %1, %c0_i32_0 : i32
    scf.if %2 {
      %cst_129 = arith.constant 0.000000e+00 : f32
      %263 = vector.broadcast %cst_129 : f32 to vector<2x16x64xf32>
      %c0_130 = arith.constant 0 : index
      %c0_131 = arith.constant 0 : index
      %c0_132 = arith.constant 0 : index
      %264 = vector.load %arg7[%c0_130, %c0_131, %c0_132] : memref<2x16x64xf32, #tpu.memory_space<vmem>>, vector<2x16x64xf32>
      tpu.vector_store %arg7[%c0_130, %c0_131, %c0_132], %263 {strides = array<i32>} : memref<2x16x64xf32, #tpu.memory_space<vmem>>, vector<2x16x64xf32>,
      %c0_133 = arith.constant 0 : index
      %c0_134 = arith.constant 0 : index
      %265 = vector.load %arg4[%c0_133, %c0_134] : memref<16x64xf32, #tpu.memory_space<vmem>>, vector<16x64xf32>
      %266 = math.exp %265 : vector<16x64xf32>
      %cst_135 = arith.constant 0.000000e+00 : f32
      %267 = vector.broadcast %cst_135 : f32 to vector<16x64xf32>
      %268 = arith.subf %267, %266 : vector<16x64xf32>
      %c0_136 = arith.constant 0 : index
      %c0_137 = arith.constant 0 : index
      %269 = vector.load %arg8[%c0_136, %c0_137] : memref<16x64xf32, #tpu.memory_space<vmem>>, vector<16x64xf32>
      tpu.vector_store %arg8[%c0_136, %c0_137], %268 {strides = array<i32>} : memref<16x64xf32, #tpu.memory_space<vmem>>, vector<16x64xf32>,
    } else {
    }
    %c0 = arith.constant 0 : index
    %c0_1 = arith.constant 0 : index
    %3 = vector.load %arg8[%c0, %c0_1] : memref<16x64xf32, #tpu.memory_space<vmem>>, vector<16x64xf32>
    %c0_2 = arith.constant 0 : index
    %c0_3 = arith.constant 0 : index
    %4 = vector.load %arg5[%c0_2, %c0_3] : memref<1x64xf32, #tpu.memory_space<vmem>>, vector<1x64xf32>
    %c0_4 = arith.constant 0 : index
    %c0_5 = arith.constant 0 : index
    %c0_6 = arith.constant 0 : index
    %5 = vector.load %arg7[%c0_4, %c0_5, %c0_6] : memref<2x16x64xf32, #tpu.memory_space<vmem>>, vector<2x16x64xf32>
    %c0_7 = arith.constant 0 : index
    %c0_8 = arith.constant 0 : index
    %c0_9 = arith.constant 0 : index
    %6 = vector.load %arg1[%c0_7, %c0_8, %c0_9] : memref<2x8x64xf32, #tpu.memory_space<vmem>>, vector<2x1x64xf32>
    %7 = vector.shape_cast %6 : vector<2x1x64xf32> to vector<2x64xf32>
    %c0_10 = arith.constant 0 : index
    %c0_11 = arith.constant 0 : index
    %c0_12 = arith.constant 0 : index
    %8 = vector.load %arg2[%c0_10, %c0_11, %c0_12] : memref<2x8x64xf32, #tpu.memory_space<vmem>>, vector<2x1x64xf32>
    %9 = vector.shape_cast %8 : vector<2x1x64xf32> to vector<2x64xf32>
    %c0_13 = arith.constant 0 : index
    %c0_14 = arith.constant 0 : index
    %c0_15 = arith.constant 0 : index
    %10 = vector.load %arg3[%c0_13, %c0_14, %c0_15] : memref<2x8x32xf32, #tpu.memory_space<vmem>>, vector<2x1x16xf32>
    %11 = vector.shape_cast %10 : vector<2x1x16xf32> to vector<2x16xf32>
    %c0_16 = arith.constant 0 : index
    %c0_17 = arith.constant 0 : index
    %c16 = arith.constant 16 : index
    %12 = vector.load %arg3[%c0_16, %c0_17, %c16] : memref<2x8x32xf32, #tpu.memory_space<vmem>>, vector<2x1x16xf32>
    %13 = vector.shape_cast %12 : vector<2x1x16xf32> to vector<2x16xf32>
    %14 = vector.shape_cast %9 : vector<2x64xf32> to vector<2x1x64xf32>
    %15 = vector.shape_cast %3 : vector<16x64xf32> to vector<1x16x64xf32>
    %16 = vector.broadcast %14 : vector<2x1x64xf32> to vector<2x16x64xf32>
    %17 = vector.broadcast %15 : vector<1x16x64xf32> to vector<2x16x64xf32>
    %18 = arith.mulf %16, %17 : vector<2x16x64xf32>
    %19 = math.exp %18 : vector<2x16x64xf32>
    %20 = arith.mulf %9, %7 : vector<2x64xf32>
    %21 = vector.shape_cast %20 : vector<2x64xf32> to vector<2x1x64xf32>
    %22 = vector.shape_cast %11 : vector<2x16xf32> to vector<2x16x1xf32>
    %23 = vector.broadcast %21 : vector<2x1x64xf32> to vector<2x16x64xf32>
    %24 = vector.broadcast %22 : vector<2x16x1xf32> to vector<2x16x64xf32>
    %25 = arith.mulf %23, %24 : vector<2x16x64xf32>
    %26 = arith.mulf %19, %5 : vector<2x16x64xf32>
    %27 = arith.addf %26, %25 : vector<2x16x64xf32>
    %28 = vector.shape_cast %13 : vector<2x16xf32> to vector<2x16x1xf32>
    %29 = vector.broadcast %28 : vector<2x16x1xf32> to vector<2x16x64xf32>
    %30 = arith.mulf %27, %29 : vector<2x16x64xf32>
    %cst = arith.constant dense<0.000000e+00> : vector<2x64xf32>
    %31 = vector.multi_reduction <add>, %30, %cst [1] : vector<2x16x64xf32> to vector<2x64xf32>
    %32 = vector.broadcast %4 : vector<1x64xf32> to vector<2x64xf32>
    %33 = arith.mulf %7, %32 : vector<2x64xf32>
    %34 = arith.addf %31, %33 : vector<2x64xf32>
    %c0_18 = arith.constant 0 : index
    %c0_19 = arith.constant 0 : index
    %c0_20 = arith.constant 0 : index
    %35 = vector.load %arg6[%c0_18, %c0_19, %c0_20] : memref<2x8x64xf32, #tpu.memory_space<vmem>>, vector<2x1x64xf32>
    %36 = vector.shape_cast %35 : vector<2x1x64xf32> to vector<2x64xf32>
    %37 = vector.shape_cast %34 : vector<2x64xf32> to vector<2x1x64xf32>
    tpu.vector_store %arg6[%c0_18, %c0_19, %c0_20], %37 {strides = array<i32>} : memref<2x8x64xf32, #tpu.memory_space<vmem>>, vector<2x1x64xf32>,
    %c0_21 = arith.constant 0 : index
    %c1 = arith.constant 1 : index
    %c0_22 = arith.constant 0 : index
    %38 = vector.load %arg1[%c0_21, %c1, %c0_22] : memref<2x8x64xf32, #tpu.memory_space<vmem>>, vector<2x1x64xf32>
    %39 = vector.shape_cast %38 : vector<2x1x64xf32> to vector<2x64xf32>
    %c0_23 = arith.constant 0 : index
    %c1_24 = arith.constant 1 : index
    %c0_25 = arith.constant 0 : index
    %40 = vector.load %arg2[%c0_23, %c1_24, %c0_25] : memref<2x8x64xf32, #tpu.memory_space<vmem>>, vector<2x1x64xf32>
    %41 = vector.shape_cast %40 : vector<2x1x64xf32> to vector<2x64xf32>
    %c0_26 = arith.constant 0 : index
    %c1_27 = arith.constant 1 : index
    %c0_28 = arith.constant 0 : index
    %42 = vector.load %arg3[%c0_26, %c1_27, %c0_28] : memref<2x8x32xf32, #tpu.memory_space<vmem>>, vector<2x1x16xf32>
    %43 = vector.shape_cast %42 : vector<2x1x16xf32> to vector<2x16xf32>
    %c0_29 = arith.constant 0 : index
    %c1_30 = arith.constant 1 : index
    %c16_31 = arith.constant 16 : index
    %44 = vector.load %arg3[%c0_29, %c1_30, %c16_31] : memref<2x8x32xf32, #tpu.memory_space<vmem>>, vector<2x1x16xf32>
    %45 = vector.shape_cast %44 : vector<2x1x16xf32> to vector<2x16xf32>
    %46 = vector.shape_cast %41 : vector<2x64xf32> to vector<2x1x64xf32>
    %47 = vector.shape_cast %3 : vector<16x64xf32> to vector<1x16x64xf32>
    %48 = vector.broadcast %46 : vector<2x1x64xf32> to vector<2x16x64xf32>
    %49 = vector.broadcast %47 : vector<1x16x64xf32> to vector<2x16x64xf32>
    %50 = arith.mulf %48, %49 : vector<2x16x64xf32>
    %51 = math.exp %50 : vector<2x16x64xf32>
    %52 = arith.mulf %41, %39 : vector<2x64xf32>
    %53 = vector.shape_cast %52 : vector<2x64xf32> to vector<2x1x64xf32>
    %54 = vector.shape_cast %43 : vector<2x16xf32> to vector<2x16x1xf32>
    %55 = vector.broadcast %53 : vector<2x1x64xf32> to vector<2x16x64xf32>
    %56 = vector.broadcast %54 : vector<2x16x1xf32> to vector<2x16x64xf32>
    %57 = arith.mulf %55, %56 : vector<2x16x64xf32>
    %58 = arith.mulf %51, %27 : vector<2x16x64xf32>
    %59 = arith.addf %58, %57 : vector<2x16x64xf32>
    %60 = vector.shape_cast %45 : vector<2x16xf32> to vector<2x16x1xf32>
    %61 = vector.broadcast %60 : vector<2x16x1xf32> to vector<2x16x64xf32>
    %62 = arith.mulf %59, %61 : vector<2x16x64xf32>
    %cst_32 = arith.constant dense<0.000000e+00> : vector<2x64xf32>
    %63 = vector.multi_reduction <add>, %62, %cst_32 [1] : vector<2x16x64xf32> to vector<2x64xf32>
    %64 = vector.broadcast %4 : vector<1x64xf32> to vector<2x64xf32>
    %65 = arith.mulf %39, %64 : vector<2x64xf32>
    %66 = arith.addf %63, %65 : vector<2x64xf32>
    %c0_33 = arith.constant 0 : index
    %c1_34 = arith.constant 1 : index
    %c0_35 = arith.constant 0 : index
    %67 = vector.load %arg6[%c0_33, %c1_34, %c0_35] : memref<2x8x64xf32, #tpu.memory_space<vmem>>, vector<2x1x64xf32>
    %68 = vector.shape_cast %67 : vector<2x1x64xf32> to vector<2x64xf32>
    %69 = vector.shape_cast %66 : vector<2x64xf32> to vector<2x1x64xf32>
    tpu.vector_store %arg6[%c0_33, %c1_34, %c0_35], %69 {strides = array<i32>} : memref<2x8x64xf32, #tpu.memory_space<vmem>>, vector<2x1x64xf32>,
    %c0_36 = arith.constant 0 : index
    %c2 = arith.constant 2 : index
    %c0_37 = arith.constant 0 : index
    %70 = vector.load %arg1[%c0_36, %c2, %c0_37] : memref<2x8x64xf32, #tpu.memory_space<vmem>>, vector<2x1x64xf32>
    %71 = vector.shape_cast %70 : vector<2x1x64xf32> to vector<2x64xf32>
    %c0_38 = arith.constant 0 : index
    %c2_39 = arith.constant 2 : index
    %c0_40 = arith.constant 0 : index
    %72 = vector.load %arg2[%c0_38, %c2_39, %c0_40] : memref<2x8x64xf32, #tpu.memory_space<vmem>>, vector<2x1x64xf32>
    %73 = vector.shape_cast %72 : vector<2x1x64xf32> to vector<2x64xf32>
    %c0_41 = arith.constant 0 : index
    %c2_42 = arith.constant 2 : index
    %c0_43 = arith.constant 0 : index
    %74 = vector.load %arg3[%c0_41, %c2_42, %c0_43] : memref<2x8x32xf32, #tpu.memory_space<vmem>>, vector<2x1x16xf32>
    %75 = vector.shape_cast %74 : vector<2x1x16xf32> to vector<2x16xf32>
    %c0_44 = arith.constant 0 : index
    %c2_45 = arith.constant 2 : index
    %c16_46 = arith.constant 16 : index
    %76 = vector.load %arg3[%c0_44, %c2_45, %c16_46] : memref<2x8x32xf32, #tpu.memory_space<vmem>>, vector<2x1x16xf32>
    %77 = vector.shape_cast %76 : vector<2x1x16xf32> to vector<2x16xf32>
    %78 = vector.shape_cast %73 : vector<2x64xf32> to vector<2x1x64xf32>
    %79 = vector.shape_cast %3 : vector<16x64xf32> to vector<1x16x64xf32>
    %80 = vector.broadcast %78 : vector<2x1x64xf32> to vector<2x16x64xf32>
    %81 = vector.broadcast %79 : vector<1x16x64xf32> to vector<2x16x64xf32>
    %82 = arith.mulf %80, %81 : vector<2x16x64xf32>
    %83 = math.exp %82 : vector<2x16x64xf32>
    %84 = arith.mulf %73, %71 : vector<2x64xf32>
    %85 = vector.shape_cast %84 : vector<2x64xf32> to vector<2x1x64xf32>
    %86 = vector.shape_cast %75 : vector<2x16xf32> to vector<2x16x1xf32>
    %87 = vector.broadcast %85 : vector<2x1x64xf32> to vector<2x16x64xf32>
    %88 = vector.broadcast %86 : vector<2x16x1xf32> to vector<2x16x64xf32>
    %89 = arith.mulf %87, %88 : vector<2x16x64xf32>
    %90 = arith.mulf %83, %59 : vector<2x16x64xf32>
    %91 = arith.addf %90, %89 : vector<2x16x64xf32>
    %92 = vector.shape_cast %77 : vector<2x16xf32> to vector<2x16x1xf32>
    %93 = vector.broadcast %92 : vector<2x16x1xf32> to vector<2x16x64xf32>
    %94 = arith.mulf %91, %93 : vector<2x16x64xf32>
    %cst_47 = arith.constant dense<0.000000e+00> : vector<2x64xf32>
    %95 = vector.multi_reduction <add>, %94, %cst_47 [1] : vector<2x16x64xf32> to vector<2x64xf32>
    %96 = vector.broadcast %4 : vector<1x64xf32> to vector<2x64xf32>
    %97 = arith.mulf %71, %96 : vector<2x64xf32>
    %98 = arith.addf %95, %97 : vector<2x64xf32>
    %c0_48 = arith.constant 0 : index
    %c2_49 = arith.constant 2 : index
    %c0_50 = arith.constant 0 : index
    %99 = vector.load %arg6[%c0_48, %c2_49, %c0_50] : memref<2x8x64xf32, #tpu.memory_space<vmem>>, vector<2x1x64xf32>
    %100 = vector.shape_cast %99 : vector<2x1x64xf32> to vector<2x64xf32>
    %101 = vector.shape_cast %98 : vector<2x64xf32> to vector<2x1x64xf32>
    tpu.vector_store %arg6[%c0_48, %c2_49, %c0_50], %101 {strides = array<i32>} : memref<2x8x64xf32, #tpu.memory_space<vmem>>, vector<2x1x64xf32>,
    %c0_51 = arith.constant 0 : index
    %c3 = arith.constant 3 : index
    %c0_52 = arith.constant 0 : index
    %102 = vector.load %arg1[%c0_51, %c3, %c0_52] : memref<2x8x64xf32, #tpu.memory_space<vmem>>, vector<2x1x64xf32>
    %103 = vector.shape_cast %102 : vector<2x1x64xf32> to vector<2x64xf32>
    %c0_53 = arith.constant 0 : index
    %c3_54 = arith.constant 3 : index
    %c0_55 = arith.constant 0 : index
    %104 = vector.load %arg2[%c0_53, %c3_54, %c0_55] : memref<2x8x64xf32, #tpu.memory_space<vmem>>, vector<2x1x64xf32>
    %105 = vector.shape_cast %104 : vector<2x1x64xf32> to vector<2x64xf32>
    %c0_56 = arith.constant 0 : index
    %c3_57 = arith.constant 3 : index
    %c0_58 = arith.constant 0 : index
    %106 = vector.load %arg3[%c0_56, %c3_57, %c0_58] : memref<2x8x32xf32, #tpu.memory_space<vmem>>, vector<2x1x16xf32>
    %107 = vector.shape_cast %106 : vector<2x1x16xf32> to vector<2x16xf32>
    %c0_59 = arith.constant 0 : index
    %c3_60 = arith.constant 3 : index
    %c16_61 = arith.constant 16 : index
    %108 = vector.load %arg3[%c0_59, %c3_60, %c16_61] : memref<2x8x32xf32, #tpu.memory_space<vmem>>, vector<2x1x16xf32>
    %109 = vector.shape_cast %108 : vector<2x1x16xf32> to vector<2x16xf32>
    %110 = vector.shape_cast %105 : vector<2x64xf32> to vector<2x1x64xf32>
    %111 = vector.shape_cast %3 : vector<16x64xf32> to vector<1x16x64xf32>
    %112 = vector.broadcast %110 : vector<2x1x64xf32> to vector<2x16x64xf32>
    %113 = vector.broadcast %111 : vector<1x16x64xf32> to vector<2x16x64xf32>
    %114 = arith.mulf %112, %113 : vector<2x16x64xf32>
    %115 = math.exp %114 : vector<2x16x64xf32>
    %116 = arith.mulf %105, %103 : vector<2x64xf32>
    %117 = vector.shape_cast %116 : vector<2x64xf32> to vector<2x1x64xf32>
    %118 = vector.shape_cast %107 : vector<2x16xf32> to vector<2x16x1xf32>
    %119 = vector.broadcast %117 : vector<2x1x64xf32> to vector<2x16x64xf32>
    %120 = vector.broadcast %118 : vector<2x16x1xf32> to vector<2x16x64xf32>
    %121 = arith.mulf %119, %120 : vector<2x16x64xf32>
    %122 = arith.mulf %115, %91 : vector<2x16x64xf32>
    %123 = arith.addf %122, %121 : vector<2x16x64xf32>
    %124 = vector.shape_cast %109 : vector<2x16xf32> to vector<2x16x1xf32>
    %125 = vector.broadcast %124 : vector<2x16x1xf32> to vector<2x16x64xf32>
    %126 = arith.mulf %123, %125 : vector<2x16x64xf32>
    %cst_62 = arith.constant dense<0.000000e+00> : vector<2x64xf32>
    %127 = vector.multi_reduction <add>, %126, %cst_62 [1] : vector<2x16x64xf32> to vector<2x64xf32>
    %128 = vector.broadcast %4 : vector<1x64xf32> to vector<2x64xf32>
    %129 = arith.mulf %103, %128 : vector<2x64xf32>
    %130 = arith.addf %127, %129 : vector<2x64xf32>
    %c0_63 = arith.constant 0 : index
    %c3_64 = arith.constant 3 : index
    %c0_65 = arith.constant 0 : index
    %131 = vector.load %arg6[%c0_63, %c3_64, %c0_65] : memref<2x8x64xf32, #tpu.memory_space<vmem>>, vector<2x1x64xf32>
    %132 = vector.shape_cast %131 : vector<2x1x64xf32> to vector<2x64xf32>
    %133 = vector.shape_cast %130 : vector<2x64xf32> to vector<2x1x64xf32>
    tpu.vector_store %arg6[%c0_63, %c3_64, %c0_65], %133 {strides = array<i32>} : memref<2x8x64xf32, #tpu.memory_space<vmem>>, vector<2x1x64xf32>,
    %c0_66 = arith.constant 0 : index
    %c4 = arith.constant 4 : index
    %c0_67 = arith.constant 0 : index
    %134 = vector.load %arg1[%c0_66, %c4, %c0_67] : memref<2x8x64xf32, #tpu.memory_space<vmem>>, vector<2x1x64xf32>
    %135 = vector.shape_cast %134 : vector<2x1x64xf32> to vector<2x64xf32>
    %c0_68 = arith.constant 0 : index
    %c4_69 = arith.constant 4 : index
    %c0_70 = arith.constant 0 : index
    %136 = vector.load %arg2[%c0_68, %c4_69, %c0_70] : memref<2x8x64xf32, #tpu.memory_space<vmem>>, vector<2x1x64xf32>
    %137 = vector.shape_cast %136 : vector<2x1x64xf32> to vector<2x64xf32>
    %c0_71 = arith.constant 0 : index
    %c4_72 = arith.constant 4 : index
    %c0_73 = arith.constant 0 : index
    %138 = vector.load %arg3[%c0_71, %c4_72, %c0_73] : memref<2x8x32xf32, #tpu.memory_space<vmem>>, vector<2x1x16xf32>
    %139 = vector.shape_cast %138 : vector<2x1x16xf32> to vector<2x16xf32>
    %c0_74 = arith.constant 0 : index
    %c4_75 = arith.constant 4 : index
    %c16_76 = arith.constant 16 : index
    %140 = vector.load %arg3[%c0_74, %c4_75, %c16_76] : memref<2x8x32xf32, #tpu.memory_space<vmem>>, vector<2x1x16xf32>
    %141 = vector.shape_cast %140 : vector<2x1x16xf32> to vector<2x16xf32>
    %142 = vector.shape_cast %137 : vector<2x64xf32> to vector<2x1x64xf32>
    %143 = vector.shape_cast %3 : vector<16x64xf32> to vector<1x16x64xf32>
    %144 = vector.broadcast %142 : vector<2x1x64xf32> to vector<2x16x64xf32>
    %145 = vector.broadcast %143 : vector<1x16x64xf32> to vector<2x16x64xf32>
    %146 = arith.mulf %144, %145 : vector<2x16x64xf32>
    %147 = math.exp %146 : vector<2x16x64xf32>
    %148 = arith.mulf %137, %135 : vector<2x64xf32>
    %149 = vector.shape_cast %148 : vector<2x64xf32> to vector<2x1x64xf32>
    %150 = vector.shape_cast %139 : vector<2x16xf32> to vector<2x16x1xf32>
    %151 = vector.broadcast %149 : vector<2x1x64xf32> to vector<2x16x64xf32>
    %152 = vector.broadcast %150 : vector<2x16x1xf32> to vector<2x16x64xf32>
    %153 = arith.mulf %151, %152 : vector<2x16x64xf32>
    %154 = arith.mulf %147, %123 : vector<2x16x64xf32>
    %155 = arith.addf %154, %153 : vector<2x16x64xf32>
    %156 = vector.shape_cast %141 : vector<2x16xf32> to vector<2x16x1xf32>
    %157 = vector.broadcast %156 : vector<2x16x1xf32> to vector<2x16x64xf32>
    %158 = arith.mulf %155, %157 : vector<2x16x64xf32>
    %cst_77 = arith.constant dense<0.000000e+00> : vector<2x64xf32>
    %159 = vector.multi_reduction <add>, %158, %cst_77 [1] : vector<2x16x64xf32> to vector<2x64xf32>
    %160 = vector.broadcast %4 : vector<1x64xf32> to vector<2x64xf32>
    %161 = arith.mulf %135, %160 : vector<2x64xf32>
    %162 = arith.addf %159, %161 : vector<2x64xf32>
    %c0_78 = arith.constant 0 : index
    %c4_79 = arith.constant 4 : index
    %c0_80 = arith.constant 0 : index
    %163 = vector.load %arg6[%c0_78, %c4_79, %c0_80] : memref<2x8x64xf32, #tpu.memory_space<vmem>>, vector<2x1x64xf32>
    %164 = vector.shape_cast %163 : vector<2x1x64xf32> to vector<2x64xf32>
    %165 = vector.shape_cast %162 : vector<2x64xf32> to vector<2x1x64xf32>
    tpu.vector_store %arg6[%c0_78, %c4_79, %c0_80], %165 {strides = array<i32>} : memref<2x8x64xf32, #tpu.memory_space<vmem>>, vector<2x1x64xf32>,
    %c0_81 = arith.constant 0 : index
    %c5 = arith.constant 5 : index
    %c0_82 = arith.constant 0 : index
    %166 = vector.load %arg1[%c0_81, %c5, %c0_82] : memref<2x8x64xf32, #tpu.memory_space<vmem>>, vector<2x1x64xf32>
    %167 = vector.shape_cast %166 : vector<2x1x64xf32> to vector<2x64xf32>
    %c0_83 = arith.constant 0 : index
    %c5_84 = arith.constant 5 : index
    %c0_85 = arith.constant 0 : index
    %168 = vector.load %arg2[%c0_83, %c5_84, %c0_85] : memref<2x8x64xf32, #tpu.memory_space<vmem>>, vector<2x1x64xf32>
    %169 = vector.shape_cast %168 : vector<2x1x64xf32> to vector<2x64xf32>
    %c0_86 = arith.constant 0 : index
    %c5_87 = arith.constant 5 : index
    %c0_88 = arith.constant 0 : index
    %170 = vector.load %arg3[%c0_86, %c5_87, %c0_88] : memref<2x8x32xf32, #tpu.memory_space<vmem>>, vector<2x1x16xf32>
    %171 = vector.shape_cast %170 : vector<2x1x16xf32> to vector<2x16xf32>
    %c0_89 = arith.constant 0 : index
    %c5_90 = arith.constant 5 : index
    %c16_91 = arith.constant 16 : index
    %172 = vector.load %arg3[%c0_89, %c5_90, %c16_91] : memref<2x8x32xf32, #tpu.memory_space<vmem>>, vector<2x1x16xf32>
    %173 = vector.shape_cast %172 : vector<2x1x16xf32> to vector<2x16xf32>
    %174 = vector.shape_cast %169 : vector<2x64xf32> to vector<2x1x64xf32>
    %175 = vector.shape_cast %3 : vector<16x64xf32> to vector<1x16x64xf32>
    %176 = vector.broadcast %174 : vector<2x1x64xf32> to vector<2x16x64xf32>
    %177 = vector.broadcast %175 : vector<1x16x64xf32> to vector<2x16x64xf32>
    %178 = arith.mulf %176, %177 : vector<2x16x64xf32>
    %179 = math.exp %178 : vector<2x16x64xf32>
    %180 = arith.mulf %169, %167 : vector<2x64xf32>
    %181 = vector.shape_cast %180 : vector<2x64xf32> to vector<2x1x64xf32>
    %182 = vector.shape_cast %171 : vector<2x16xf32> to vector<2x16x1xf32>
    %183 = vector.broadcast %181 : vector<2x1x64xf32> to vector<2x16x64xf32>
    %184 = vector.broadcast %182 : vector<2x16x1xf32> to vector<2x16x64xf32>
    %185 = arith.mulf %183, %184 : vector<2x16x64xf32>
    %186 = arith.mulf %179, %155 : vector<2x16x64xf32>
    %187 = arith.addf %186, %185 : vector<2x16x64xf32>
    %188 = vector.shape_cast %173 : vector<2x16xf32> to vector<2x16x1xf32>
    %189 = vector.broadcast %188 : vector<2x16x1xf32> to vector<2x16x64xf32>
    %190 = arith.mulf %187, %189 : vector<2x16x64xf32>
    %cst_92 = arith.constant dense<0.000000e+00> : vector<2x64xf32>
    %191 = vector.multi_reduction <add>, %190, %cst_92 [1] : vector<2x16x64xf32> to vector<2x64xf32>
    %192 = vector.broadcast %4 : vector<1x64xf32> to vector<2x64xf32>
    %193 = arith.mulf %167, %192 : vector<2x64xf32>
    %194 = arith.addf %191, %193 : vector<2x64xf32>
    %c0_93 = arith.constant 0 : index
    %c5_94 = arith.constant 5 : index
    %c0_95 = arith.constant 0 : index
    %195 = vector.load %arg6[%c0_93, %c5_94, %c0_95] : memref<2x8x64xf32, #tpu.memory_space<vmem>>, vector<2x1x64xf32>
    %196 = vector.shape_cast %195 : vector<2x1x64xf32> to vector<2x64xf32>
    %197 = vector.shape_cast %194 : vector<2x64xf32> to vector<2x1x64xf32>
    tpu.vector_store %arg6[%c0_93, %c5_94, %c0_95], %197 {strides = array<i32>} : memref<2x8x64xf32, #tpu.memory_space<vmem>>, vector<2x1x64xf32>,
    %c0_96 = arith.constant 0 : index
    %c6 = arith.constant 6 : index
    %c0_97 = arith.constant 0 : index
    %198 = vector.load %arg1[%c0_96, %c6, %c0_97] : memref<2x8x64xf32, #tpu.memory_space<vmem>>, vector<2x1x64xf32>
    %199 = vector.shape_cast %198 : vector<2x1x64xf32> to vector<2x64xf32>
    %c0_98 = arith.constant 0 : index
    %c6_99 = arith.constant 6 : index
    %c0_100 = arith.constant 0 : index
    %200 = vector.load %arg2[%c0_98, %c6_99, %c0_100] : memref<2x8x64xf32, #tpu.memory_space<vmem>>, vector<2x1x64xf32>
    %201 = vector.shape_cast %200 : vector<2x1x64xf32> to vector<2x64xf32>
    %c0_101 = arith.constant 0 : index
    %c6_102 = arith.constant 6 : index
    %c0_103 = arith.constant 0 : index
    %202 = vector.load %arg3[%c0_101, %c6_102, %c0_103] : memref<2x8x32xf32, #tpu.memory_space<vmem>>, vector<2x1x16xf32>
    %203 = vector.shape_cast %202 : vector<2x1x16xf32> to vector<2x16xf32>
    %c0_104 = arith.constant 0 : index
    %c6_105 = arith.constant 6 : index
    %c16_106 = arith.constant 16 : index
    %204 = vector.load %arg3[%c0_104, %c6_105, %c16_106] : memref<2x8x32xf32, #tpu.memory_space<vmem>>, vector<2x1x16xf32>
    %205 = vector.shape_cast %204 : vector<2x1x16xf32> to vector<2x16xf32>
    %206 = vector.shape_cast %201 : vector<2x64xf32> to vector<2x1x64xf32>
    %207 = vector.shape_cast %3 : vector<16x64xf32> to vector<1x16x64xf32>
    %208 = vector.broadcast %206 : vector<2x1x64xf32> to vector<2x16x64xf32>
    %209 = vector.broadcast %207 : vector<1x16x64xf32> to vector<2x16x64xf32>
    %210 = arith.mulf %208, %209 : vector<2x16x64xf32>
    %211 = math.exp %210 : vector<2x16x64xf32>
    %212 = arith.mulf %201, %199 : vector<2x64xf32>
    %213 = vector.shape_cast %212 : vector<2x64xf32> to vector<2x1x64xf32>
    %214 = vector.shape_cast %203 : vector<2x16xf32> to vector<2x16x1xf32>
    %215 = vector.broadcast %213 : vector<2x1x64xf32> to vector<2x16x64xf32>
    %216 = vector.broadcast %214 : vector<2x16x1xf32> to vector<2x16x64xf32>
    %217 = arith.mulf %215, %216 : vector<2x16x64xf32>
    %218 = arith.mulf %211, %187 : vector<2x16x64xf32>
    %219 = arith.addf %218, %217 : vector<2x16x64xf32>
    %220 = vector.shape_cast %205 : vector<2x16xf32> to vector<2x16x1xf32>
    %221 = vector.broadcast %220 : vector<2x16x1xf32> to vector<2x16x64xf32>
    %222 = arith.mulf %219, %221 : vector<2x16x64xf32>
    %cst_107 = arith.constant dense<0.000000e+00> : vector<2x64xf32>
    %223 = vector.multi_reduction <add>, %222, %cst_107 [1] : vector<2x16x64xf32> to vector<2x64xf32>
    %224 = vector.broadcast %4 : vector<1x64xf32> to vector<2x64xf32>
    %225 = arith.mulf %199, %224 : vector<2x64xf32>
    %226 = arith.addf %223, %225 : vector<2x64xf32>
    %c0_108 = arith.constant 0 : index
    %c6_109 = arith.constant 6 : index
    %c0_110 = arith.constant 0 : index
    %227 = vector.load %arg6[%c0_108, %c6_109, %c0_110] : memref<2x8x64xf32, #tpu.memory_space<vmem>>, vector<2x1x64xf32>
    %228 = vector.shape_cast %227 : vector<2x1x64xf32> to vector<2x64xf32>
    %229 = vector.shape_cast %226 : vector<2x64xf32> to vector<2x1x64xf32>
    tpu.vector_store %arg6[%c0_108, %c6_109, %c0_110], %229 {strides = array<i32>} : memref<2x8x64xf32, #tpu.memory_space<vmem>>, vector<2x1x64xf32>,
    %c0_111 = arith.constant 0 : index
    %c7 = arith.constant 7 : index
    %c0_112 = arith.constant 0 : index
    %230 = vector.load %arg1[%c0_111, %c7, %c0_112] : memref<2x8x64xf32, #tpu.memory_space<vmem>>, vector<2x1x64xf32>
    %231 = vector.shape_cast %230 : vector<2x1x64xf32> to vector<2x64xf32>
    %c0_113 = arith.constant 0 : index
    %c7_114 = arith.constant 7 : index
    %c0_115 = arith.constant 0 : index
    %232 = vector.load %arg2[%c0_113, %c7_114, %c0_115] : memref<2x8x64xf32, #tpu.memory_space<vmem>>, vector<2x1x64xf32>
    %233 = vector.shape_cast %232 : vector<2x1x64xf32> to vector<2x64xf32>
    %c0_116 = arith.constant 0 : index
    %c7_117 = arith.constant 7 : index
    %c0_118 = arith.constant 0 : index
    %234 = vector.load %arg3[%c0_116, %c7_117, %c0_118] : memref<2x8x32xf32, #tpu.memory_space<vmem>>, vector<2x1x16xf32>
    %235 = vector.shape_cast %234 : vector<2x1x16xf32> to vector<2x16xf32>
    %c0_119 = arith.constant 0 : index
    %c7_120 = arith.constant 7 : index
    %c16_121 = arith.constant 16 : index
    %236 = vector.load %arg3[%c0_119, %c7_120, %c16_121] : memref<2x8x32xf32, #tpu.memory_space<vmem>>, vector<2x1x16xf32>
    %237 = vector.shape_cast %236 : vector<2x1x16xf32> to vector<2x16xf32>
    %238 = vector.shape_cast %233 : vector<2x64xf32> to vector<2x1x64xf32>
    %239 = vector.shape_cast %3 : vector<16x64xf32> to vector<1x16x64xf32>
    %240 = vector.broadcast %238 : vector<2x1x64xf32> to vector<2x16x64xf32>
    %241 = vector.broadcast %239 : vector<1x16x64xf32> to vector<2x16x64xf32>
    %242 = arith.mulf %240, %241 : vector<2x16x64xf32>
    %243 = math.exp %242 : vector<2x16x64xf32>
    %244 = arith.mulf %233, %231 : vector<2x64xf32>
    %245 = vector.shape_cast %244 : vector<2x64xf32> to vector<2x1x64xf32>
    %246 = vector.shape_cast %235 : vector<2x16xf32> to vector<2x16x1xf32>
    %247 = vector.broadcast %245 : vector<2x1x64xf32> to vector<2x16x64xf32>
    %248 = vector.broadcast %246 : vector<2x16x1xf32> to vector<2x16x64xf32>
    %249 = arith.mulf %247, %248 : vector<2x16x64xf32>
    %250 = arith.mulf %243, %219 : vector<2x16x64xf32>
    %251 = arith.addf %250, %249 : vector<2x16x64xf32>
    %252 = vector.shape_cast %237 : vector<2x16xf32> to vector<2x16x1xf32>
    %253 = vector.broadcast %252 : vector<2x16x1xf32> to vector<2x16x64xf32>
    %254 = arith.mulf %251, %253 : vector<2x16x64xf32>
    %cst_122 = arith.constant dense<0.000000e+00> : vector<2x64xf32>
    %255 = vector.multi_reduction <add>, %254, %cst_122 [1] : vector<2x16x64xf32> to vector<2x64xf32>
    %256 = vector.broadcast %4 : vector<1x64xf32> to vector<2x64xf32>
    %257 = arith.mulf %231, %256 : vector<2x64xf32>
    %258 = arith.addf %255, %257 : vector<2x64xf32>
    %c0_123 = arith.constant 0 : index
    %c7_124 = arith.constant 7 : index
    %c0_125 = arith.constant 0 : index
    %259 = vector.load %arg6[%c0_123, %c7_124, %c0_125] : memref<2x8x64xf32, #tpu.memory_space<vmem>>, vector<2x1x64xf32>
    %260 = vector.shape_cast %259 : vector<2x1x64xf32> to vector<2x64xf32>
    %261 = vector.shape_cast %258 : vector<2x64xf32> to vector<2x1x64xf32>
    tpu.vector_store %arg6[%c0_123, %c7_124, %c0_125], %261 {strides = array<i32>} : memref<2x8x64xf32, #tpu.memory_space<vmem>>, vector<2x1x64xf32>,
    %c0_126 = arith.constant 0 : index
    %c0_127 = arith.constant 0 : index
    %c0_128 = arith.constant 0 : index
    %262 = vector.load %arg7[%c0_126, %c0_127, %c0_128] : memref<2x16x64xf32, #tpu.memory_space<vmem>>, vector<2x16x64xf32>
    tpu.vector_store %arg7[%c0_126, %c0_127, %c0_128], %251 {strides = array<i32>} : memref<2x16x64xf32, #tpu.memory_space<vmem>>, vector<2x16x64xf32>,
    return
  }
  func.func @transform_0(%arg0: i32) -> (i32, i32, i32) {
    %c0_i32 = arith.constant 0 : i32
    %c0_i32_0 = arith.constant 0 : i32
    %c0_i32_1 = arith.constant 0 : i32
    return %c0_i32, %arg0, %c0_i32_0 : i32, i32, i32
  }
  func.func @transform_1(%arg0: i32) -> (i32, i32, i32) {
    %c0_i32 = arith.constant 0 : i32
    %c0_i32_0 = arith.constant 0 : i32
    %c0_i32_1 = arith.constant 0 : i32
    return %c0_i32, %arg0, %c0_i32_0 : i32, i32, i32
  }
  func.func @transform_2(%arg0: i32) -> (i32, i32, i32) {
    %c0_i32 = arith.constant 0 : i32
    %c0_i32_0 = arith.constant 0 : i32
    %c0_i32_1 = arith.constant 0 : i32
    return %c0_i32, %arg0, %c0_i32_0 : i32, i32, i32
  }
  func.func @transform_3(%arg0: i32) -> (i32, i32) {
    %c0_i32 = arith.constant 0 : i32
    %c0_i32_0 = arith.constant 0 : i32
    %c0_i32_1 = arith.constant 0 : i32
    return %c0_i32, %c0_i32_0 : i32, i32
  }
  func.func @transform_4(%arg0: i32) -> (i32, i32) {
    %c0_i32 = arith.constant 0 : i32
    %c0_i32_0 = arith.constant 0 : i32
    %c0_i32_1 = arith.constant 0 : i32
    return %c0_i32, %c0_i32_0 : i32, i32
  }
  func.func @transform_5(%arg0: i32) -> (i32, i32, i32) {
    %c0_i32 = arith.constant 0 : i32
    %c0_i32_0 = arith.constant 0 : i32
    %c0_i32_1 = arith.constant 0 : i32
    return %c0_i32, %arg0, %c0_i32_0 : i32, i32, i32
  }
}

module attributes {stable_mosaic.version = 11 : i64} {
  func.func @_rms_inproj_kernel(%arg0: i32, %arg1: i32, %arg2: memref<16x32xf32, #tpu.memory_space<vmem>>, %arg3: memref<1x32xf32, #tpu.memory_space<vmem>>, %arg4: memref<32x64xf32, #tpu.memory_space<vmem>>, %arg5: memref<32x64xf32, #tpu.memory_space<vmem>>, %arg6: memref<16x64xf32, #tpu.memory_space<vmem>>, %arg7: memref<16x64xf32, #tpu.memory_space<vmem>>) attributes {dimension_semantics = [#tpu.dimension_semantics<parallel>, #tpu.dimension_semantics<parallel>], iteration_bounds = array<i64: 1, 1>, scalar_prefetch = 0 : i64, scratch_operands = 0 : i64, tpu.core_type = #tpu.core_type<tc>, window_params = [{transform_indices = @transform_0, window_bounds = array<i64: 16, 32>}, {pipeline_mode = #tpu.pipeline_mode<synchronous>, transform_indices = @transform_1, window_bounds = array<i64: 1, 32>}, {transform_indices = @transform_2, window_bounds = array<i64: 32, 64>}, {transform_indices = @transform_3, window_bounds = array<i64: 32, 64>}, {transform_indices = @transform_4, window_bounds = array<i64: 16, 64>}, {transform_indices = @transform_5, window_bounds = array<i64: 16, 64>}]} {
    %c0 = arith.constant 0 : index
    %c0_0 = arith.constant 0 : index
    %0 = vector.load %arg2[%c0, %c0_0] : memref<16x32xf32, #tpu.memory_space<vmem>>, vector<16x32xf32>
    %1 = arith.mulf %0, %0 : vector<16x32xf32>
    %cst = arith.constant dense<0.000000e+00> : vector<16xf32>
    %2 = vector.multi_reduction <add>, %1, %cst [1] : vector<16x32xf32> to vector<16xf32>
    %3 = vector.shape_cast %2 : vector<16xf32> to vector<16x1xf32>
    %cst_1 = arith.constant 3.200000e+01 : f32
    %4 = vector.broadcast %cst_1 : f32 to vector<16x1xf32>
    %5 = arith.divf %3, %4 : vector<16x1xf32>
    %cst_2 = arith.constant 9.99999974E-6 : f32
    %6 = vector.broadcast %cst_2 : f32 to vector<16x1xf32>
    %7 = arith.addf %5, %6 : vector<16x1xf32>
    %8 = math.rsqrt %7 : vector<16x1xf32>
    %9 = vector.broadcast %8 : vector<16x1xf32> to vector<16x32xf32>
    %10 = arith.mulf %0, %9 : vector<16x32xf32>
    %c0_3 = arith.constant 0 : index
    %c0_4 = arith.constant 0 : index
    %11 = vector.load %arg3[%c0_3, %c0_4] : memref<1x32xf32, #tpu.memory_space<vmem>>, vector<1x32xf32>
    %12 = vector.broadcast %11 : vector<1x32xf32> to vector<16x32xf32>
    %13 = arith.mulf %10, %12 : vector<16x32xf32>
    %c0_5 = arith.constant 0 : index
    %c0_6 = arith.constant 0 : index
    %14 = vector.load %arg4[%c0_5, %c0_6] : memref<32x64xf32, #tpu.memory_space<vmem>>, vector<32x64xf32>
    %cst_7 = arith.constant dense<0.000000e+00> : vector<16x64xf32>
    %15 = tpu.matmul %13, %14, %cst_7 {dimension_numbers = #tpu.dot_dimension_numbers<[1], [0], [0], [1], [0, 0, 1, 1], [], []>, precision = #tpu.contract_precision<fp32>} : vector<16x32xf32>, vector<32x64xf32>, vector<16x64xf32> -> vector<16x64xf32>
    %c0_8 = arith.constant 0 : index
    %c0_9 = arith.constant 0 : index
    %16 = vector.load %arg6[%c0_8, %c0_9] : memref<16x64xf32, #tpu.memory_space<vmem>>, vector<16x64xf32>
    tpu.vector_store %arg6[%c0_8, %c0_9], %15 {strides = array<i32>} : memref<16x64xf32, #tpu.memory_space<vmem>>, vector<16x64xf32>,
    %c0_10 = arith.constant 0 : index
    %c0_11 = arith.constant 0 : index
    %17 = vector.load %arg5[%c0_10, %c0_11] : memref<32x64xf32, #tpu.memory_space<vmem>>, vector<32x64xf32>
    %cst_12 = arith.constant dense<0.000000e+00> : vector<16x64xf32>
    %18 = tpu.matmul %13, %17, %cst_12 {dimension_numbers = #tpu.dot_dimension_numbers<[1], [0], [0], [1], [0, 0, 1, 1], [], []>, precision = #tpu.contract_precision<fp32>} : vector<16x32xf32>, vector<32x64xf32>, vector<16x64xf32> -> vector<16x64xf32>
    %c0_13 = arith.constant 0 : index
    %c0_14 = arith.constant 0 : index
    %19 = vector.load %arg7[%c0_13, %c0_14] : memref<16x64xf32, #tpu.memory_space<vmem>>, vector<16x64xf32>
    tpu.vector_store %arg7[%c0_13, %c0_14], %18 {strides = array<i32>} : memref<16x64xf32, #tpu.memory_space<vmem>>, vector<16x64xf32>,
    return
  }
  func.func @transform_0(%arg0: i32, %arg1: i32) -> (i32, i32) {
    %c0_i32 = arith.constant 0 : i32
    %c0_i32_0 = arith.constant 0 : i32
    return %arg0, %c0_i32 : i32, i32
  }
  func.func @transform_1(%arg0: i32, %arg1: i32) -> (i32, i32) {
    %c0_i32 = arith.constant 0 : i32
    %c0_i32_0 = arith.constant 0 : i32
    %c0_i32_1 = arith.constant 0 : i32
    return %c0_i32, %c0_i32_0 : i32, i32
  }
  func.func @transform_2(%arg0: i32, %arg1: i32) -> (i32, i32) {
    %c0_i32 = arith.constant 0 : i32
    %c0_i32_0 = arith.constant 0 : i32
    return %c0_i32, %arg1 : i32, i32
  }
  func.func @transform_3(%arg0: i32, %arg1: i32) -> (i32, i32) {
    %c0_i32 = arith.constant 0 : i32
    %c0_i32_0 = arith.constant 0 : i32
    return %c0_i32, %arg1 : i32, i32
  }
  func.func @transform_4(%arg0: i32, %arg1: i32) -> (i32, i32) {
    %c0_i32 = arith.constant 0 : i32
    return %arg0, %arg1 : i32, i32
  }
  func.func @transform_5(%arg0: i32, %arg1: i32) -> (i32, i32) {
    %c0_i32 = arith.constant 0 : i32
    return %arg0, %arg1 : i32, i32
  }
}

module attributes {stable_mosaic.version = 11 : i64} {
  func.func @_gate_outproj_kernel(%arg0: i32, %arg1: i32, %arg2: i32, %arg3: memref<16x64xf32, #tpu.memory_space<vmem>>, %arg4: memref<16x64xf32, #tpu.memory_space<vmem>>, %arg5: memref<64x32xf32, #tpu.memory_space<vmem>>, %arg6: memref<16x32xf32, #tpu.memory_space<vmem>>, %arg7: memref<16x32xf32, #tpu.memory_space<vmem>>, %arg8: memref<16x32xf32, #tpu.memory_space<vmem>>) attributes {dimension_semantics = [#tpu.dimension_semantics<parallel>, #tpu.dimension_semantics<parallel>, #tpu.dimension_semantics<arbitrary>], iteration_bounds = array<i64: 1, 1, 1>, scalar_prefetch = 0 : i64, scratch_operands = 1 : i64, tpu.core_type = #tpu.core_type<tc>, window_params = [{transform_indices = @transform_0, window_bounds = array<i64: 16, 64>}, {transform_indices = @transform_1, window_bounds = array<i64: 16, 64>}, {transform_indices = @transform_2, window_bounds = array<i64: 64, 32>}, {transform_indices = @transform_3, window_bounds = array<i64: 16, 32>}, {transform_indices = @transform_4, window_bounds = array<i64: 16, 32>}]} {
    %c0_i32 = arith.constant 0 : i32
    %0 = arith.cmpi eq, %arg2, %c0_i32 : i32
    %1 = arith.extui %0 : i1 to i32
    %c0_i32_0 = arith.constant 0 : i32
    %2 = arith.cmpi ne, %1, %c0_i32_0 : i32
    scf.if %2 {
      %cst_13 = arith.constant 0.000000e+00 : f32
      %20 = vector.broadcast %cst_13 : f32 to vector<16x32xf32>
      %c0_14 = arith.constant 0 : index
      %c0_15 = arith.constant 0 : index
      %21 = vector.load %arg8[%c0_14, %c0_15] : memref<16x32xf32, #tpu.memory_space<vmem>>, vector<16x32xf32>
      tpu.vector_store %arg8[%c0_14, %c0_15], %20 {strides = array<i32>} : memref<16x32xf32, #tpu.memory_space<vmem>>, vector<16x32xf32>,
    } else {
    }
    %c0 = arith.constant 0 : index
    %c0_1 = arith.constant 0 : index
    %3 = vector.load %arg4[%c0, %c0_1] : memref<16x64xf32, #tpu.memory_space<vmem>>, vector<16x64xf32>
    %c0_2 = arith.constant 0 : index
    %c0_3 = arith.constant 0 : index
    %4 = vector.load %arg3[%c0_2, %c0_3] : memref<16x64xf32, #tpu.memory_space<vmem>>, vector<16x64xf32>
    %5 = arith.negf %3 : vector<16x64xf32>
    %6 = math.exp %5 : vector<16x64xf32>
    %cst = arith.constant 1.000000e+00 : f32
    %7 = vector.broadcast %cst : f32 to vector<16x64xf32>
    %8 = arith.addf %7, %6 : vector<16x64xf32>
    %9 = arith.divf %7, %8 : vector<16x64xf32>
    %10 = arith.mulf %3, %9 : vector<16x64xf32>
    %11 = arith.mulf %4, %10 : vector<16x64xf32>
    %c0_4 = arith.constant 0 : index
    %c0_5 = arith.constant 0 : index
    %12 = vector.load %arg8[%c0_4, %c0_5] : memref<16x32xf32, #tpu.memory_space<vmem>>, vector<16x32xf32>
    %c0_6 = arith.constant 0 : index
    %c0_7 = arith.constant 0 : index
    %13 = vector.load %arg5[%c0_6, %c0_7] : memref<64x32xf32, #tpu.memory_space<vmem>>, vector<64x32xf32>
    %cst_8 = arith.constant dense<0.000000e+00> : vector<16x32xf32>
    %14 = tpu.matmul %11, %13, %cst_8 {dimension_numbers = #tpu.dot_dimension_numbers<[1], [0], [0], [1], [0, 0, 1, 1], [], []>, precision = #tpu.contract_precision<fp32>} : vector<16x64xf32>, vector<64x32xf32>, vector<16x32xf32> -> vector<16x32xf32>
    %15 = arith.addf %12, %14 : vector<16x32xf32>
    %c0_9 = arith.constant 0 : index
    %c0_10 = arith.constant 0 : index
    %16 = vector.load %arg8[%c0_9, %c0_10] : memref<16x32xf32, #tpu.memory_space<vmem>>, vector<16x32xf32>
    tpu.vector_store %arg8[%c0_9, %c0_10], %15 {strides = array<i32>} : memref<16x32xf32, #tpu.memory_space<vmem>>, vector<16x32xf32>,
    %c0_i32_11 = arith.constant 0 : i32
    %17 = arith.cmpi eq, %arg2, %c0_i32_11 : i32
    %18 = arith.extui %17 : i1 to i32
    %c0_i32_12 = arith.constant 0 : i32
    %19 = arith.cmpi ne, %18, %c0_i32_12 : i32
    scf.if %19 {
      %c0_13 = arith.constant 0 : index
      %c0_14 = arith.constant 0 : index
      %20 = vector.load %arg8[%c0_13, %c0_14] : memref<16x32xf32, #tpu.memory_space<vmem>>, vector<16x32xf32>
      %c0_15 = arith.constant 0 : index
      %c0_16 = arith.constant 0 : index
      %21 = vector.load %arg6[%c0_15, %c0_16] : memref<16x32xf32, #tpu.memory_space<vmem>>, vector<16x32xf32>
      %22 = arith.addf %20, %21 : vector<16x32xf32>
      %c0_17 = arith.constant 0 : index
      %c0_18 = arith.constant 0 : index
      %23 = vector.load %arg7[%c0_17, %c0_18] : memref<16x32xf32, #tpu.memory_space<vmem>>, vector<16x32xf32>
      tpu.vector_store %arg7[%c0_17, %c0_18], %22 {strides = array<i32>} : memref<16x32xf32, #tpu.memory_space<vmem>>, vector<16x32xf32>,
    } else {
    }
    return
  }
  func.func @transform_0(%arg0: i32, %arg1: i32, %arg2: i32) -> (i32, i32) {
    %c0_i32 = arith.constant 0 : i32
    return %arg0, %arg2 : i32, i32
  }
  func.func @transform_1(%arg0: i32, %arg1: i32, %arg2: i32) -> (i32, i32) {
    %c0_i32 = arith.constant 0 : i32
    return %arg0, %arg2 : i32, i32
  }
  func.func @transform_2(%arg0: i32, %arg1: i32, %arg2: i32) -> (i32, i32) {
    %c0_i32 = arith.constant 0 : i32
    return %arg2, %arg1 : i32, i32
  }
  func.func @transform_3(%arg0: i32, %arg1: i32, %arg2: i32) -> (i32, i32) {
    %c0_i32 = arith.constant 0 : i32
    return %arg0, %arg1 : i32, i32
  }
  func.func @transform_4(%arg0: i32, %arg1: i32, %arg2: i32) -> (i32, i32) {
    %c0_i32 = arith.constant 0 : i32
    return %arg0, %arg1 : i32, i32
  }
}

module attributes {stable_mosaic.version = 11 : i64} {
  func.func @_rms_out_kernel(%arg0: i32, %arg1: memref<16x32xf32, #tpu.memory_space<vmem>>, %arg2: memref<1x32xf32, #tpu.memory_space<vmem>>, %arg3: memref<32x4xf32, #tpu.memory_space<vmem>>, %arg4: memref<1x4xf32, #tpu.memory_space<vmem>>, %arg5: memref<16x4xf32, #tpu.memory_space<vmem>>) attributes {dimension_semantics = [#tpu.dimension_semantics<parallel>], iteration_bounds = array<i64: 1>, scalar_prefetch = 0 : i64, scratch_operands = 0 : i64, tpu.core_type = #tpu.core_type<tc>, window_params = [{transform_indices = @transform_0, window_bounds = array<i64: 16, 32>}, {pipeline_mode = #tpu.pipeline_mode<synchronous>, transform_indices = @transform_1, window_bounds = array<i64: 1, 32>}, {pipeline_mode = #tpu.pipeline_mode<synchronous>, transform_indices = @transform_2, window_bounds = array<i64: 32, 4>}, {pipeline_mode = #tpu.pipeline_mode<synchronous>, transform_indices = @transform_3, window_bounds = array<i64: 1, 4>}, {transform_indices = @transform_4, window_bounds = array<i64: 16, 4>}]} {
    %c0 = arith.constant 0 : index
    %c0_0 = arith.constant 0 : index
    %0 = vector.load %arg1[%c0, %c0_0] : memref<16x32xf32, #tpu.memory_space<vmem>>, vector<16x32xf32>
    %1 = arith.mulf %0, %0 : vector<16x32xf32>
    %cst = arith.constant dense<0.000000e+00> : vector<16xf32>
    %2 = vector.multi_reduction <add>, %1, %cst [1] : vector<16x32xf32> to vector<16xf32>
    %3 = vector.shape_cast %2 : vector<16xf32> to vector<16x1xf32>
    %cst_1 = arith.constant 3.200000e+01 : f32
    %4 = vector.broadcast %cst_1 : f32 to vector<16x1xf32>
    %5 = arith.divf %3, %4 : vector<16x1xf32>
    %cst_2 = arith.constant 9.99999974E-6 : f32
    %6 = vector.broadcast %cst_2 : f32 to vector<16x1xf32>
    %7 = arith.addf %5, %6 : vector<16x1xf32>
    %8 = math.rsqrt %7 : vector<16x1xf32>
    %9 = vector.broadcast %8 : vector<16x1xf32> to vector<16x32xf32>
    %10 = arith.mulf %0, %9 : vector<16x32xf32>
    %c0_3 = arith.constant 0 : index
    %c0_4 = arith.constant 0 : index
    %11 = vector.load %arg2[%c0_3, %c0_4] : memref<1x32xf32, #tpu.memory_space<vmem>>, vector<1x32xf32>
    %12 = vector.broadcast %11 : vector<1x32xf32> to vector<16x32xf32>
    %13 = arith.mulf %10, %12 : vector<16x32xf32>
    %c0_5 = arith.constant 0 : index
    %c0_6 = arith.constant 0 : index
    %14 = vector.load %arg3[%c0_5, %c0_6] : memref<32x4xf32, #tpu.memory_space<vmem>>, vector<32x4xf32>
    %cst_7 = arith.constant dense<0.000000e+00> : vector<16x4xf32>
    %15 = tpu.matmul %13, %14, %cst_7 {dimension_numbers = #tpu.dot_dimension_numbers<[1], [0], [0], [1], [0, 0, 1, 1], [], []>, precision = #tpu.contract_precision<fp32>} : vector<16x32xf32>, vector<32x4xf32>, vector<16x4xf32> -> vector<16x4xf32>
    %c0_8 = arith.constant 0 : index
    %c0_9 = arith.constant 0 : index
    %16 = vector.load %arg4[%c0_8, %c0_9] : memref<1x4xf32, #tpu.memory_space<vmem>>, vector<1x4xf32>
    %17 = vector.broadcast %16 : vector<1x4xf32> to vector<16x4xf32>
    %18 = arith.addf %15, %17 : vector<16x4xf32>
    %cst_10 = arith.constant 0.000000e+00 : f32
    %19 = vector.broadcast %cst_10 : f32 to vector<16x4xf32>
    %20 = arith.cmpf oge, %18, %19 : vector<16x4xf32>
    %cst_11 = arith.constant 0.00999999977 : f32
    %21 = vector.broadcast %cst_11 : f32 to vector<16x4xf32>
    %22 = arith.mulf %21, %18 : vector<16x4xf32>
    %23 = arith.select %20, %18, %22 : vector<16x4xi1>, vector<16x4xf32>
    %c0_12 = arith.constant 0 : index
    %c0_13 = arith.constant 0 : index
    %24 = vector.load %arg5[%c0_12, %c0_13] : memref<16x4xf32, #tpu.memory_space<vmem>>, vector<16x4xf32>
    tpu.vector_store %arg5[%c0_12, %c0_13], %23 {strides = array<i32>} : memref<16x4xf32, #tpu.memory_space<vmem>>, vector<16x4xf32>,
    return
  }
  func.func @transform_0(%arg0: i32) -> (i32, i32) {
    %c0_i32 = arith.constant 0 : i32
    %c0_i32_0 = arith.constant 0 : i32
    return %arg0, %c0_i32 : i32, i32
  }
  func.func @transform_1(%arg0: i32) -> (i32, i32) {
    %c0_i32 = arith.constant 0 : i32
    %c0_i32_0 = arith.constant 0 : i32
    %c0_i32_1 = arith.constant 0 : i32
    return %c0_i32, %c0_i32_0 : i32, i32
  }
  func.func @transform_2(%arg0: i32) -> (i32, i32) {
    %c0_i32 = arith.constant 0 : i32
    %c0_i32_0 = arith.constant 0 : i32
    %c0_i32_1 = arith.constant 0 : i32
    return %c0_i32, %c0_i32_0 : i32, i32
  }
  func.func @transform_3(%arg0: i32) -> (i32, i32) {
    %c0_i32 = arith.constant 0 : i32
    %c0_i32_0 = arith.constant 0 : i32
    %c0_i32_1 = arith.constant 0 : i32
    return %c0_i32, %c0_i32_0 : i32, i32
  }
  func.func @transform_4(%arg0: i32) -> (i32, i32) {
    %c0_i32 = arith.constant 0 : i32
    %c0_i32_0 = arith.constant 0 : i32
    return %arg0, %c0_i32 : i32, i32
  }
}

</mosaic_0001>

<llo_original>
// kernel: network_forward.10
$region0: #{network_forward.10}
  #allocation0 [shape = 'u32[]', space=smem, size = 0x4, offset = 0x4, fixed_abs, tag = 'smem constant byte address 0x4 - core index']
  #allocation1 [shape = 'u32[72,128]{1,0:T(1,128)}', space=vmem, size = 0x9000, scoped, tag = 'internal scratch']
  %s0 = inlined_call_operand.vmem [shape: f32[16,16], index: 0, kind: input, shape index: {}]
  %s1 = inlined_call_operand.hbm [shape: f32[16,32], index: 1, kind: input, shape index: {}]
  %s2 = inlined_call_operand.vmem [shape: f32[1,32], index: 2, kind: input, shape index: {}]
  %s3 = inlined_call_operand.vmem [shape: f32[16,32], index: 3, kind: output, shape index: {}]
  %s4 = sld [smem:[#allocation0]]
  $region26: #{network_forward.10} parent=0
    _
  %s6 = ssub.s32 1, %s4
  %s7 = scalar_select 0, %s6, %s4
  $region1: #{network_forward.10} parent=0
    #allocation2 [shape = 'u8[8192]{0}', space=vmem, size = 0x2000, scoped, tag = 'input window, operand 1, single buffered']
    #allocation3 [shape = 's32[1]{0}', space=sflag, size = 0x4, scoped, tag = 'scoped memory for network_forward.10']
    %8 = vsyncpa [#allocation3], 0
    // Predicated region
    $region2: #{network_forward.10} parent=1 // pred_check
      _
    $region3: #{network_forward.10} parent=1 // pred_check_branch
      %10 = sbr.rel (0) target = $region5
    $region4: #{network_forward.10} parent=1 // pred_region
      _
    $region5: #{network_forward.10} parent=1 // pred_fallthru
      _
    // Predicated region
    $region6: #{network_forward.10} parent=1 // pred_check
      _
    $region7: #{network_forward.10} parent=1 // pred_check_branch
      %12 = sbr.rel (0) target = $region9
    $region8: #{network_forward.10} parent=1 // pred_region
      %14 = vsyncadd [#allocation3], 0
      %s15 = sshll.u32 %s1, 4
      %s16 = int_to_ptr.hbm [resolvable:$true] %s15
      %s17 = sshll.u32 [#allocation2], 4
      %s18 = int_to_ptr.vmem [resolvable:$true] %s17
      %23 = dma.hbm_to_vmem [thread:$0]  %s16, 256, %s18, [#allocation3], 128, 128, 8
    $region9: #{network_forward.10} parent=1 // pred_fallthru
      _
    // Predicated region
    $region10: #{network_forward.10} parent=1 // pred_check
      _
    $region11: #{network_forward.10} parent=1 // pred_check_branch
      %25 = sbr.rel (0) target = $region13
    $region12: #{network_forward.10} parent=1 // pred_region
      _
    $region13: #{network_forward.10} parent=1 // pred_fallthru
      _
    // Predicated region
    $region14: #{network_forward.10} parent=1 // pred_check
      _
    $region15: #{network_forward.10} parent=1 // pred_check_branch
      %27 = sbr.rel (0) target = $region17
    $region16: #{network_forward.10} parent=1 // pred_region
      %29 = dma.done [#allocation3], 256
    $region17: #{network_forward.10} parent=1 // pred_fallthru
      _
    %v30 = vld [vmem:[%s0] sm:$0xff]
    %v31 = vld [vmem:[%s0 + $0x8] sm:$0xff]
    %v32 = vld [vmem:[#allocation2] sm:$0xff]
    %v33 = vld [vmem:[#allocation2 + $0x8] sm:$0xff]
    %v34 = vld [vmem:[%s2] sm:$0x1]
    %v36 = vperm.slane %v34, 0
    %vm38 = vcmask 130048
    %v40 = vsel %vm38, %v30, 0
    %v43 = vsel %vm38, %v31, 0
    %45 = vmatpush.msra.mxu0 0.0
    %46 = vmatpush.msra.mxu0 0.0
    %47 = vmatpush.msra.mxu0 0.0
    %48 = vmatpush.msra.mxu0 0.0
    %49 = vmatpush.msra.mxu0 0.0
    %50 = vmatpush.msra.mxu0 0.0
    %51 = vmatpush.msra.mxu0 0.0
    %52 = vmatpush.msra.mxu0 0.0
    %53 = vmatpush.msra.mxu0 0.0
    %54 = vmatpush.msra.mxu0 0.0
    %55 = vmatpush.msra.mxu0 0.0
    %56 = vmatpush.msra.mxu0 0.0
    %57 = vmatpush.msra.mxu0 0.0
    %58 = vmatpush.msra.mxu0 0.0
    %v59 = vand.u32 %v33, 4294901760
    %60 = vmatpush.msra.mxu0 %v59
    %v61 = vand.u32 %v32, 4294901760
    %62 = vmatpush.msra.mxu0 %v61
    %v63 = vand.u32 %v40, 4294901760
    %v64 = vsub.f32 %v40, %v63
    %v65 = vand.u32 %v64, 4294901760
    %v66 = vsub.f32 %v64, %v65
    %v67 = vand.u32 %v66, 4294901760
    %68 = vmatmul.f32.gmra.mxu0 %v67
    %v69 = vpop.f32.mrf.mxu0
    %v70 = vadd.f32 %v36, %v69
    %v71 = vand.u32 %v43, 4294901760
    %v72 = vsub.f32 %v43, %v71
    %v73 = vand.u32 %v72, 4294901760
    %v74 = vsub.f32 %v72, %v73
    %v75 = vand.u32 %v74, 4294901760
    %76 = vmatmul.f32.gmra.mxu0 %v75
    %v77 = vpop.f32.mrf.mxu0
    %v78 = vadd.f32 %v36, %v77
    %79 = vdwg.mxu0
    %80 = vmatpush.msra.mxu0 0.0
    %81 = vmatpush.msra.mxu0 0.0
    %82 = vmatpush.msra.mxu0 0.0
    %83 = vmatpush.msra.mxu0 0.0
    %84 = vmatpush.msra.mxu0 0.0
    %85 = vmatpush.msra.mxu0 0.0
    %86 = vmatpush.msra.mxu0 0.0
    %87 = vmatpush.msra.mxu0 0.0
    %88 = vmatpush.msra.mxu0 0.0
    %89 = vmatpush.msra.mxu0 0.0
    %90 = vmatpush.msra.mxu0 0.0
    %91 = vmatpush.msra.mxu0 0.0
    %92 = vmatpush.msra.mxu0 0.0
    %93 = vmatpush.msra.mxu0 0.0
    %v94 = vand.u32 %v33, 4294901760
    %v95 = vsub.f32 %v33, %v94
    %v96 = vand.u32 %v95, 4294901760
    %v97 = vsub.f32 %v95, %v96
    %v98 = vand.u32 %v97, 4294901760
    %99 = vmatpush.msra.mxu0 %v98
    %v100 = vand.u32 %v32, 4294901760
    %v101 = vsub.f32 %v32, %v100
    %v102 = vand.u32 %v101, 4294901760
    %v103 = vsub.f32 %v101, %v102
    %v104 = vand.u32 %v103, 4294901760
    %105 = vmatpush.msra.mxu0 %v104
    %v106 = vand.u32 %v40, 4294901760
    %107 = vmatmul.f32.gmra.mxu0 %v106
    %v108 = vpop.f32.mrf.mxu0
    %v109 = vadd.f32 %v70, %v108
    %v110 = vand.u32 %v43, 4294901760
    %111 = vmatmul.f32.gmra.mxu0 %v110
    %v112 = vpop.f32.mrf.mxu0
    %v113 = vadd.f32 %v78, %v112
    %114 = vdwg.mxu0
    %115 = vmatpush.msra.mxu0 0.0
    %116 = vmatpush.msra.mxu0 0.0
    %117 = vmatpush.msra.mxu0 0.0
    %118 = vmatpush.msra.mxu0 0.0
    %119 = vmatpush.msra.mxu0 0.0
    %120 = vmatpush.msra.mxu0 0.0
    %121 = vmatpush.msra.mxu0 0.0
    %122 = vmatpush.msra.mxu0 0.0
    %123 = vmatpush.msra.mxu0 0.0
    %124 = vmatpush.msra.mxu0 0.0
    %125 = vmatpush.msra.mxu0 0.0
    %126 = vmatpush.msra.mxu0 0.0
    %127 = vmatpush.msra.mxu0 0.0
    %128 = vmatpush.msra.mxu0 0.0
    %v129 = vand.u32 %v33, 4294901760
    %v130 = vsub.f32 %v33, %v129
    %131 = vmatpush.msra.mxu0 %v130
    %v132 = vand.u32 %v32, 4294901760
    %v133 = vsub.f32 %v32, %v132
    %134 = vmatpush.msra.mxu0 %v133
    %v135 = vand.u32 %v40, 4294901760
    %v136 = vsub.f32 %v40, %v135
    %137 = vmatmul.f32.gmra.mxu0 %v136
    %v138 = vpop.f32.mrf.mxu0
    %v139 = vadd.f32 %v109, %v138
    %v140 = vand.u32 %v43, 4294901760
    %v141 = vsub.f32 %v43, %v140
    %142 = vmatmul.f32.gmra.mxu0 %v141
    %v143 = vpop.f32.mrf.mxu0
    %v144 = vadd.f32 %v113, %v143
    %145 = vdwg.mxu0
    %146 = vmatpush.msra.mxu0 0.0
    %147 = vmatpush.msra.mxu0 0.0
    %148 = vmatpush.msra.mxu0 0.0
    %149 = vmatpush.msra.mxu0 0.0
    %150 = vmatpush.msra.mxu0 0.0
    %151 = vmatpush.msra.mxu0 0.0
    %152 = vmatpush.msra.mxu0 0.0
    %153 = vmatpush.msra.mxu0 0.0
    %154 = vmatpush.msra.mxu0 0.0
    %155 = vmatpush.msra.mxu0 0.0
    %156 = vmatpush.msra.mxu0 0.0
    %157 = vmatpush.msra.mxu0 0.0
    %158 = vmatpush.msra.mxu0 0.0
    %159 = vmatpush.msra.mxu0 0.0
    %v160 = vand.u32 %v33, 4294901760
    %161 = vmatpush.msra.mxu0 %v160
    %v162 = vand.u32 %v32, 4294901760
    %163 = vmatpush.msra.mxu0 %v162
    %v164 = vand.u32 %v40, 4294901760
    %v165 = vsub.f32 %v40, %v164
    %v166 = vand.u32 %v165, 4294901760
    %167 = vmatmul.f32.gmra.mxu0 %v166
    %v168 = vpop.f32.mrf.mxu0
    %v169 = vadd.f32 %v139, %v168
    %v170 = vand.u32 %v43, 4294901760
    %v171 = vsub.f32 %v43, %v170
    %v172 = vand.u32 %v171, 4294901760
    %173 = vmatmul.f32.gmra.mxu0 %v172
    %v174 = vpop.f32.mrf.mxu0
    %v175 = vadd.f32 %v144, %v174
    %176 = vdwg.mxu0
    %177 = vmatpush.msra.mxu0 0.0
    %178 = vmatpush.msra.mxu0 0.0
    %179 = vmatpush.msra.mxu0 0.0
    %180 = vmatpush.msra.mxu0 0.0
    %181 = vmatpush.msra.mxu0 0.0
    %182 = vmatpush.msra.mxu0 0.0
    %183 = vmatpush.msra.mxu0 0.0
    %184 = vmatpush.msra.mxu0 0.0
    %185 = vmatpush.msra.mxu0 0.0
    %186 = vmatpush.msra.mxu0 0.0
    %187 = vmatpush.msra.mxu0 0.0
    %188 = vmatpush.msra.mxu0 0.0
    %189 = vmatpush.msra.mxu0 0.0
    %190 = vmatpush.msra.mxu0 0.0
    %v191 = vand.u32 %v33, 4294901760
    %v192 = vsub.f32 %v33, %v191
    %v193 = vand.u32 %v192, 4294901760
    %194 = vmatpush.msra.mxu0 %v193
    %v195 = vand.u32 %v32, 4294901760
    %v196 = vsub.f32 %v32, %v195
    %v197 = vand.u32 %v196, 4294901760
    %198 = vmatpush.msra.mxu0 %v197
    %v199 = vand.u32 %v40, 4294901760
    %200 = vmatmul.f32.gmra.mxu0 %v199
    %v201 = vpop.f32.mrf.mxu0
    %v202 = vadd.f32 %v169, %v201
    %v203 = vand.u32 %v43, 4294901760
    %204 = vmatmul.f32.gmra.mxu0 %v203
    %v205 = vpop.f32.mrf.mxu0
    %v206 = vadd.f32 %v175, %v205
    %207 = vdwg.mxu0
    %208 = vmatpush.msra.mxu0 0.0
    %209 = vmatpush.msra.mxu0 0.0
    %210 = vmatpush.msra.mxu0 0.0
    %211 = vmatpush.msra.mxu0 0.0
    %212 = vmatpush.msra.mxu0 0.0
    %213 = vmatpush.msra.mxu0 0.0
    %214 = vmatpush.msra.mxu0 0.0
    %215 = vmatpush.msra.mxu0 0.0
    %216 = vmatpush.msra.mxu0 0.0
    %217 = vmatpush.msra.mxu0 0.0
    %218 = vmatpush.msra.mxu0 0.0
    %219 = vmatpush.msra.mxu0 0.0
    %220 = vmatpush.msra.mxu0 0.0
    %221 = vmatpush.msra.mxu0 0.0
    %v222 = vand.u32 %v33, 4294901760
    %223 = vmatpush.msra.mxu0 %v222
    %v224 = vand.u32 %v32, 4294901760
    %225 = vmatpush.msra.mxu0 %v224
    %v226 = vand.u32 %v40, 4294901760
    %227 = vmatmul.f32.gmra.mxu0 %v226
    %v228 = vpop.f32.mrf.mxu0
    %v229 = vadd.f32 %v202, %v228
    %v230 = vand.u32 %v43, 4294901760
    %231 = vmatmul.f32.gmra.mxu0 %v230
    %v232 = vpop.f32.mrf.mxu0
    %v233 = vadd.f32 %v206, %v232
    %234 = vdwg.mxu0
    %vm235 = vcmask 261120
    %236 = vst.msk [vmem:[%s3] sm:$0xff] %vm235, %v229
    %237 = vst.msk [vmem:[%s3 + $0x8] sm:$0xff] %vm235, %v233
    // Predicated region
    $region18: #{network_forward.10} parent=1 // pred_check
      _
    $region19: #{network_forward.10} parent=1 // pred_check_branch
      %239 = sbr.rel (0) target = $region21
    $region20: #{network_forward.10} parent=1 // pred_region
      _
    $region21: #{network_forward.10} parent=1 // pred_fallthru
      _
    // Predicated region
    $region22: #{network_forward.10} parent=1 // pred_check
      _
    $region23: #{network_forward.10} parent=1 // pred_check_branch
      %241 = sbr.rel (0) target = $region25
    $region24: #{network_forward.10} parent=1 // pred_region
      _
    $region25: #{network_forward.10} parent=1 // pred_fallthru
      _
    %242 = vsyncpa [#allocation3], 1

// kernel: network_forward.11
$region0: #{network_forward.11}
  #allocation0 [shape = 'u32[]', space=smem, size = 0x4, offset = 0x4, fixed_abs, tag = 'smem constant byte address 0x4 - core index']
  #allocation1 [shape = 'u32[72,128]{1,0:T(1,128)}', space=vmem, size = 0x9000, scoped, tag = 'internal scratch']
  %s0 = inlined_call_operand.vmem [shape: f32[16,32], index: 0, kind: input, shape index: {}]
  %s1 = inlined_call_operand.vmem [shape: f32[1,32], index: 1, kind: input, shape index: {}]
  %s2 = inlined_call_operand.hbm [shape: f32[32,64], index: 2, kind: input, shape index: {}]
  %s3 = inlined_call_operand.hbm [shape: f32[32,64], index: 3, kind: input, shape index: {}]
  %s4 = inlined_call_operand.vmem [shape: f32[16,64], index: 4, kind: output, shape index: {0}]
  %s5 = inlined_call_operand.vmem [shape: f32[16,64], index: 5, kind: output, shape index: {1}]
  %6 = xla_tuple %s4, %s5
  %s7 = sld [smem:[#allocation0]]
  $region42: #{network_forward.11} parent=0
    _
  %s9 = ssub.s32 1, %s7
  %s10 = scalar_select 0, %s9, %s7
  $region1: #{network_forward.11} parent=0
    #allocation2 [shape = 'u8[16384]{0}', space=vmem, size = 0x4000, scoped, tag = 'input window, operand 2, single buffered']
    #allocation3 [shape = 's32[1]{0}', space=sflag, size = 0x4, scoped, tag = 'scoped memory for network_forward.11']
    #allocation4 [shape = 'u8[16384]{0}', space=vmem, size = 0x4000, scoped, tag = 'input window, operand 3, single buffered']
    #allocation5 [shape = 's32[1]{0}', space=sflag, size = 0x4, scoped, tag = 'scoped memory for network_forward.11']
    %11 = vsyncpa [#allocation3], 0
    %12 = vsyncpa [#allocation5], 0
    // Predicated region
    $region2: #{network_forward.11} parent=1 // pred_check
      _
    $region3: #{network_forward.11} parent=1 // pred_check_branch
      %14 = sbr.rel (0) target = $region5
    $region4: #{network_forward.11} parent=1 // pred_region
      _
    $region5: #{network_forward.11} parent=1 // pred_fallthru
      _
    // Predicated region
    $region6: #{network_forward.11} parent=1 // pred_check
      _
    $region7: #{network_forward.11} parent=1 // pred_check_branch
      %16 = sbr.rel (0) target = $region9
    $region8: #{network_forward.11} parent=1 // pred_region
      _
    $region9: #{network_forward.11} parent=1 // pred_fallthru
      _
    // Predicated region
    $region10: #{network_forward.11} parent=1 // pred_check
      _
    $region11: #{network_forward.11} parent=1 // pred_check_branch
      %18 = sbr.rel (0) target = $region13
    $region12: #{network_forward.11} parent=1 // pred_region
      %20 = vsyncadd [#allocation3], 0
      %s21 = sshll.u32 %s2, 4
      %s22 = int_to_ptr.hbm [resolvable:$true] %s21
      %s23 = sshll.u32 [#allocation2], 4
      %s24 = int_to_ptr.vmem [resolvable:$true] %s23
      %29 = dma.hbm_to_vmem [thread:$0]  %s22, 512, %s24, [#allocation3], 128, 128, 8
    $region13: #{network_forward.11} parent=1 // pred_fallthru
      _
    // Predicated region
    $region14: #{network_forward.11} parent=1 // pred_check
      _
    $region15: #{network_forward.11} parent=1 // pred_check_branch
      %31 = sbr.rel (0) target = $region17
    $region16: #{network_forward.11} parent=1 // pred_region
      %33 = vsyncadd [#allocation5], 0
      %s34 = sshll.u32 %s3, 4
      %s35 = int_to_ptr.hbm [resolvable:$true] %s34
      %s36 = sshll.u32 [#allocation4], 4
      %s37 = int_to_ptr.vmem [resolvable:$true] %s36
      %42 = dma.hbm_to_vmem [thread:$0]  %s35, 512, %s37, [#allocation5], 128, 128, 8
    $region17: #{network_forward.11} parent=1 // pred_fallthru
      _
    // Predicated region
    $region18: #{network_forward.11} parent=1 // pred_check
      _
    $region19: #{network_forward.11} parent=1 // pred_check_branch
      %44 = sbr.rel (0) target = $region21
    $region20: #{network_forward.11} parent=1 // pred_region
      %46 = dma.done [#allocation3], 512
    $region21: #{network_forward.11} parent=1 // pred_fallthru
      _
    // Predicated region
    $region22: #{network_forward.11} parent=1 // pred_check
      _
    $region23: #{network_forward.11} parent=1 // pred_check_branch
      %48 = sbr.rel (0) target = $region25
    $region24: #{network_forward.11} parent=1 // pred_region
      %50 = dma.done [#allocation5], 512
    $region25: #{network_forward.11} parent=1 // pred_fallthru
      _
    %v51 = vld [vmem:[%s0] sm:$0xff]
    %v52 = vld [vmem:[%s0 + $0x8] sm:$0xff]
    %v53 = vmul.f32 %v51, %v51
    %v54 = vmul.f32 %v52, %v52
    %vm55 = vcmask 261120
    %v56 = vsel %vm55, %v53, 0.0
    %57 = vadd.xlane.f32.xlu0 %v56
    %v58 = vpop.xlane.xlu0 %57
    %v59 = vsel %vm55, %v54, 0.0
    %60 = vadd.xlane.f32.xlu0 %v59
    %v61 = vpop.xlane.xlu0 %60
    %v62 = vrcp.pop 32.0
    %v63 = vmul.f32 32.0, %v62
    %v64 = vsub.f32 1.0, %v63
    %v65 = vmul.f32 %v62, %v64
    %v66 = vadd.f32 %v62, %v65
    %vm67 = vweird.f32 %v62
    %v68 = vsel %vm67, %v62, %v66
    %v69 = vmul.f32 %v58, %v68
    %v70 = vmul.f32 %v61, %v68
    %v71 = vadd.f32 %v69, 1e-05
    %v72 = vadd.f32 %v70, 1e-05
    %v73 = vrsqrt.pop %v71
    %v74 = vmul.f32 %v73, %v71
    %v75 = vmul.f32 %v74, %v73
    %v76 = vmul.f32 0.5, %v75
    %v77 = vsub.f32 1.5, %v76
    %v78 = vmul.f32 %v73, %v77
    %vm79 = vweird.f32 %v71
    %vm80 = vweird.f32 %v73
    %vm81 = vmor %vm79, %vm80
    %v82 = vsel %vm81, %v73, %v78
    %v83 = vrsqrt.pop %v72
    %v84 = vmul.f32 %v83, %v72
    %v85 = vmul.f32 %v84, %v83
    %v86 = vmul.f32 0.5, %v85
    %v87 = vsub.f32 1.5, %v86
    %v88 = vmul.f32 %v83, %v87
    %vm89 = vweird.f32 %v72
    %vm90 = vweird.f32 %v83
    %vm91 = vmor %vm89, %vm90
    %v92 = vsel %vm91, %v83, %v88
    %v93 = vmul.f32 %v51, %v82
    %v94 = vmul.f32 %v52, %v92
    %v95 = vld [vmem:[%s1] sm:$0x1]
    %v97 = vperm.slane %v95, 0
    %v99 = vmul.f32 %v93, %v97
    %v100 = vmul.f32 %v94, %v97
    %v101 = vld [vmem:[#allocation2] sm:$0xff]
    %v102 = vld [vmem:[#allocation2 + $0x8] sm:$0xff]
    %v103 = vld [vmem:[#allocation2 + $0x10] sm:$0xff]
    %v104 = vld [vmem:[#allocation2 + $0x18] sm:$0xff]
    %v106 = vsel %vm55, %v99, 0
    %v109 = vsel %vm55, %v100, 0
    %111 = vmatpush.msra.mxu0 0.0
    %112 = vmatpush.msra.mxu0 0.0
    %113 = vmatpush.msra.mxu0 0.0
    %114 = vmatpush.msra.mxu0 0.0
    %115 = vmatpush.msra.mxu0 0.0
    %116 = vmatpush.msra.mxu0 0.0
    %117 = vmatpush.msra.mxu0 0.0
    %118 = vmatpush.msra.mxu0 0.0
    %119 = vmatpush.msra.mxu0 0.0
    %120 = vmatpush.msra.mxu0 0.0
    %121 = vmatpush.msra.mxu0 0.0
    %122 = vmatpush.msra.mxu0 0.0
    %v123 = vand.u32 %v104, 4294901760
    %124 = vmatpush.msra.mxu0 %v123
    %v125 = vand.u32 %v103, 4294901760
    %126 = vmatpush.msra.mxu0 %v125
    %v127 = vand.u32 %v102, 4294901760
    %128 = vmatpush.msra.mxu0 %v127
    %v129 = vand.u32 %v101, 4294901760
    %130 = vmatpush.msra.mxu0 %v129
    %v131 = vand.u32 %v106, 4294901760
    %v132 = vsub.f32 %v106, %v131
    %v133 = vand.u32 %v132, 4294901760
    %v134 = vsub.f32 %v132, %v133
    %v135 = vand.u32 %v134, 4294901760
    %136 = vmatmul.f32.gmra.mxu0 %v135
    %v137 = vpop.f32.mrf.mxu0
    %v138 = vadd.f32 0.0, %v137
    %v139 = vand.u32 %v109, 4294901760
    %v140 = vsub.f32 %v109, %v139
    %v141 = vand.u32 %v140, 4294901760
    %v142 = vsub.f32 %v140, %v141
    %v143 = vand.u32 %v142, 4294901760
    %144 = vmatmul.f32.gmra.mxu0 %v143
    %v145 = vpop.f32.mrf.mxu0
    %v146 = vadd.f32 0.0, %v145
    %147 = vdwg.mxu0
    %148 = vmatpush.msra.mxu0 0.0
    %149 = vmatpush.msra.mxu0 0.0
    %150 = vmatpush.msra.mxu0 0.0
    %151 = vmatpush.msra.mxu0 0.0
    %152 = vmatpush.msra.mxu0 0.0
    %153 = vmatpush.msra.mxu0 0.0
    %154 = vmatpush.msra.mxu0 0.0
    %155 = vmatpush.msra.mxu0 0.0
    %156 = vmatpush.msra.mxu0 0.0
    %157 = vmatpush.msra.mxu0 0.0
    %158 = vmatpush.msra.mxu0 0.0
    %159 = vmatpush.msra.mxu0 0.0
    %v160 = vand.u32 %v104, 4294901760
    %v161 = vsub.f32 %v104, %v160
    %v162 = vand.u32 %v161, 4294901760
    %v163 = vsub.f32 %v161, %v162
    %v164 = vand.u32 %v163, 4294901760
    %165 = vmatpush.msra.mxu0 %v164
    %v166 = vand.u32 %v103, 4294901760
    %v167 = vsub.f32 %v103, %v166
    %v168 = vand.u32 %v167, 4294901760
    %v169 = vsub.f32 %v167, %v168
    %v170 = vand.u32 %v169, 4294901760
    %171 = vmatpush.msra.mxu0 %v170
    %v172 = vand.u32 %v102, 4294901760
    %v173 = vsub.f32 %v102, %v172
    %v174 = vand.u32 %v173, 4294901760
    %v175 = vsub.f32 %v173, %v174
    %v176 = vand.u32 %v175, 4294901760
    %177 = vmatpush.msra.mxu0 %v176
    %v178 = vand.u32 %v101, 4294901760
    %v179 = vsub.f32 %v101, %v178
    %v180 = vand.u32 %v179, 4294901760
    %v181 = vsub.f32 %v179, %v180
    %v182 = vand.u32 %v181, 4294901760
    %183 = vmatpush.msra.mxu0 %v182
    %v184 = vand.u32 %v106, 4294901760
    %185 = vmatmul.f32.gmra.mxu0 %v184
    %v186 = vpop.f32.mrf.mxu0
    %v187 = vadd.f32 %v138, %v186
    %v188 = vand.u32 %v109, 4294901760
    %189 = vmatmul.f32.gmra.mxu0 %v188
    %v190 = vpop.f32.mrf.mxu0
    %v191 = vadd.f32 %v146, %v190
    %192 = vdwg.mxu0
    %193 = vmatpush.msra.mxu0 0.0
    %194 = vmatpush.msra.mxu0 0.0
    %195 = vmatpush.msra.mxu0 0.0
    %196 = vmatpush.msra.mxu0 0.0
    %197 = vmatpush.msra.mxu0 0.0
    %198 = vmatpush.msra.mxu0 0.0
    %199 = vmatpush.msra.mxu0 0.0
    %200 = vmatpush.msra.mxu0 0.0
    %201 = vmatpush.msra.mxu0 0.0
    %202 = vmatpush.msra.mxu0 0.0
    %203 = vmatpush.msra.mxu0 0.0
    %204 = vmatpush.msra.mxu0 0.0
    %v205 = vand.u32 %v104, 4294901760
    %v206 = vsub.f32 %v104, %v205
    %207 = vmatpush.msra.mxu0 %v206
    %v208 = vand.u32 %v103, 4294901760
    %v209 = vsub.f32 %v103, %v208
    %210 = vmatpush.msra.mxu0 %v209
    %v211 = vand.u32 %v102, 4294901760
    %v212 = vsub.f32 %v102, %v211
    %213 = vmatpush.msra.mxu0 %v212
    %v214 = vand.u32 %v101, 4294901760
    %v215 = vsub.f32 %v101, %v214
    %216 = vmatpush.msra.mxu0 %v215
    %v217 = vand.u32 %v106, 4294901760
    %v218 = vsub.f32 %v106, %v217
    %219 = vmatmul.f32.gmra.mxu0 %v218
    %v220 = vpop.f32.mrf.mxu0
    %v221 = vadd.f32 %v187, %v220
    %v222 = vand.u32 %v109, 4294901760
    %v223 = vsub.f32 %v109, %v222
    %224 = vmatmul.f32.gmra.mxu0 %v223
    %v225 = vpop.f32.mrf.mxu0
    %v226 = vadd.f32 %v191, %v225
    %227 = vdwg.mxu0
    %228 = vmatpush.msra.mxu0 0.0
    %229 = vmatpush.msra.mxu0 0.0
    %230 = vmatpush.msra.mxu0 0.0
    %231 = vmatpush.msra.mxu0 0.0
    %232 = vmatpush.msra.mxu0 0.0
    %233 = vmatpush.msra.mxu0 0.0
    %234 = vmatpush.msra.mxu0 0.0
    %235 = vmatpush.msra.mxu0 0.0
    %236 = vmatpush.msra.mxu0 0.0
    %237 = vmatpush.msra.mxu0 0.0
    %238 = vmatpush.msra.mxu0 0.0
    %239 = vmatpush.msra.mxu0 0.0
    %v240 = vand.u32 %v104, 4294901760
    %241 = vmatpush.msra.mxu0 %v240
    %v242 = vand.u32 %v103, 4294901760
    %243 = vmatpush.msra.mxu0 %v242
    %v244 = vand.u32 %v102, 4294901760
    %245 = vmatpush.msra.mxu0 %v244
    %v246 = vand.u32 %v101, 4294901760
    %247 = vmatpush.msra.mxu0 %v246
    %v248 = vand.u32 %v106, 4294901760
    %v249 = vsub.f32 %v106, %v248
    %v250 = vand.u32 %v249, 4294901760
    %251 = vmatmul.f32.gmra.mxu0 %v250
    %v252 = vpop.f32.mrf.mxu0
    %v253 = vadd.f32 %v221, %v252
    %v254 = vand.u32 %v109, 4294901760
    %v255 = vsub.f32 %v109, %v254
    %v256 = vand.u32 %v255, 4294901760
    %257 = vmatmul.f32.gmra.mxu0 %v256
    %v258 = vpop.f32.mrf.mxu0
    %v259 = vadd.f32 %v226, %v258
    %260 = vdwg.mxu0
    %261 = vmatpush.msra.mxu0 0.0
    %262 = vmatpush.msra.mxu0 0.0
    %263 = vmatpush.msra.mxu0 0.0
    %264 = vmatpush.msra.mxu0 0.0
    %265 = vmatpush.msra.mxu0 0.0
    %266 = vmatpush.msra.mxu0 0.0
    %267 = vmatpush.msra.mxu0 0.0
    %268 = vmatpush.msra.mxu0 0.0
    %269 = vmatpush.msra.mxu0 0.0
    %270 = vmatpush.msra.mxu0 0.0
    %271 = vmatpush.msra.mxu0 0.0
    %272 = vmatpush.msra.mxu0 0.0
    %v273 = vand.u32 %v104, 4294901760
    %v274 = vsub.f32 %v104, %v273
    %v275 = vand.u32 %v274, 4294901760
    %276 = vmatpush.msra.mxu0 %v275
    %v277 = vand.u32 %v103, 4294901760
    %v278 = vsub.f32 %v103, %v277
    %v279 = vand.u32 %v278, 4294901760
    %280 = vmatpush.msra.mxu0 %v279
    %v281 = vand.u32 %v102, 4294901760
    %v282 = vsub.f32 %v102, %v281
    %v283 = vand.u32 %v282, 4294901760
    %284 = vmatpush.msra.mxu0 %v283
    %v285 = vand.u32 %v101, 4294901760
    %v286 = vsub.f32 %v101, %v285
    %v287 = vand.u32 %v286, 4294901760
    %288 = vmatpush.msra.mxu0 %v287
    %v289 = vand.u32 %v106, 4294901760
    %290 = vmatmul.f32.gmra.mxu0 %v289
    %v291 = vpop.f32.mrf.mxu0
    %v292 = vadd.f32 %v253, %v291
    %v293 = vand.u32 %v109, 4294901760
    %294 = vmatmul.f32.gmra.mxu0 %v293
    %v295 = vpop.f32.mrf.mxu0
    %v296 = vadd.f32 %v259, %v295
    %297 = vdwg.mxu0
    %298 = vmatpush.msra.mxu0 0.0
    %299 = vmatpush.msra.mxu0 0.0
    %300 = vmatpush.msra.mxu0 0.0
    %301 = vmatpush.msra.mxu0 0.0
    %302 = vmatpush.msra.mxu0 0.0
    %303 = vmatpush.msra.mxu0 0.0
    %304 = vmatpush.msra.mxu0 0.0
    %305 = vmatpush.msra.mxu0 0.0
    %306 = vmatpush.msra.mxu0 0.0
    %307 = vmatpush.msra.mxu0 0.0
    %308 = vmatpush.msra.mxu0 0.0
    %309 = vmatpush.msra.mxu0 0.0
    %v310 = vand.u32 %v104, 4294901760
    %311 = vmatpush.msra.mxu0 %v310
    %v312 = vand.u32 %v103, 4294901760
    %313 = vmatpush.msra.mxu0 %v312
    %v314 = vand.u32 %v102, 4294901760
    %315 = vmatpush.msra.mxu0 %v314
    %v316 = vand.u32 %v101, 4294901760
    %317 = vmatpush.msra.mxu0 %v316
    %v318 = vand.u32 %v106, 4294901760
    %319 = vmatmul.f32.gmra.mxu0 %v318
    %v320 = vpop.f32.mrf.mxu0
    %v321 = vadd.f32 %v292, %v320
    %v322 = vand.u32 %v109, 4294901760
    %323 = vmatmul.f32.gmra.mxu0 %v322
    %v324 = vpop.f32.mrf.mxu0
    %v325 = vadd.f32 %v296, %v324
    %326 = vdwg.mxu0
    %vm327 = vcmask 523264
    %328 = vst.msk [vmem:[%s4] sm:$0xff] %vm327, %v321
    %329 = vst.msk [vmem:[%s4 + $0x8] sm:$0xff] %vm327, %v325
    %v330 = vld [vmem:[#allocation4] sm:$0xff]
    %v331 = vld [vmem:[#allocation4 + $0x8] sm:$0xff]
    %v332 = vld [vmem:[#allocation4 + $0x10] sm:$0xff]
    %v333 = vld [vmem:[#allocation4 + $0x18] sm:$0xff]
    %334 = vmatpush.msra.mxu0 0.0
    %335 = vmatpush.msra.mxu0 0.0
    %336 = vmatpush.msra.mxu0 0.0
    %337 = vmatpush.msra.mxu0 0.0
    %338 = vmatpush.msra.mxu0 0.0
    %339 = vmatpush.msra.mxu0 0.0
    %340 = vmatpush.msra.mxu0 0.0
    %341 = vmatpush.msra.mxu0 0.0
    %342 = vmatpush.msra.mxu0 0.0
    %343 = vmatpush.msra.mxu0 0.0
    %344 = vmatpush.msra.mxu0 0.0
    %345 = vmatpush.msra.mxu0 0.0
    %v346 = vand.u32 %v333, 4294901760
    %347 = vmatpush.msra.mxu0 %v346
    %v348 = vand.u32 %v332, 4294901760
    %349 = vmatpush.msra.mxu0 %v348
    %v350 = vand.u32 %v331, 4294901760
    %351 = vmatpush.msra.mxu0 %v350
    %v352 = vand.u32 %v330, 4294901760
    %353 = vmatpush.msra.mxu0 %v352
    %v354 = vand.u32 %v106, 4294901760
    %v355 = vsub.f32 %v106, %v354
    %v356 = vand.u32 %v355, 4294901760
    %v357 = vsub.f32 %v355, %v356
    %v358 = vand.u32 %v357, 4294901760
    %359 = vmatmul.f32.gmra.mxu0 %v358
    %v360 = vpop.f32.mrf.mxu0
    %v361 = vadd.f32 0.0, %v360
    %v362 = vand.u32 %v109, 4294901760
    %v363 = vsub.f32 %v109, %v362
    %v364 = vand.u32 %v363, 4294901760
    %v365 = vsub.f32 %v363, %v364
    %v366 = vand.u32 %v365, 4294901760
    %367 = vmatmul.f32.gmra.mxu0 %v366
    %v368 = vpop.f32.mrf.mxu0
    %v369 = vadd.f32 0.0, %v368
    %370 = vdwg.mxu0
    %371 = vmatpush.msra.mxu0 0.0
    %372 = vmatpush.msra.mxu0 0.0
    %373 = vmatpush.msra.mxu0 0.0
    %374 = vmatpush.msra.mxu0 0.0
    %375 = vmatpush.msra.mxu0 0.0
    %376 = vmatpush.msra.mxu0 0.0
    %377 = vmatpush.msra.mxu0 0.0
    %378 = vmatpush.msra.mxu0 0.0
    %379 = vmatpush.msra.mxu0 0.0
    %380 = vmatpush.msra.mxu0 0.0
    %381 = vmatpush.msra.mxu0 0.0
    %382 = vmatpush.msra.mxu0 0.0
    %v383 = vand.u32 %v333, 4294901760
    %v384 = vsub.f32 %v333, %v383
    %v385 = vand.u32 %v384, 4294901760
    %v386 = vsub.f32 %v384, %v385
    %v387 = vand.u32 %v386, 4294901760
    %388 = vmatpush.msra.mxu0 %v387
    %v389 = vand.u32 %v332, 4294901760
    %v390 = vsub.f32 %v332, %v389
    %v391 = vand.u32 %v390, 4294901760
    %v392 = vsub.f32 %v390, %v391
    %v393 = vand.u32 %v392, 4294901760
    %394 = vmatpush.msra.mxu0 %v393
    %v395 = vand.u32 %v331, 4294901760
    %v396 = vsub.f32 %v331, %v395
    %v397 = vand.u32 %v396, 4294901760
    %v398 = vsub.f32 %v396, %v397
    %v399 = vand.u32 %v398, 4294901760
    %400 = vmatpush.msra.mxu0 %v399
    %v401 = vand.u32 %v330, 4294901760
    %v402 = vsub.f32 %v330, %v401
    %v403 = vand.u32 %v402, 4294901760
    %v404 = vsub.f32 %v402, %v403
    %v405 = vand.u32 %v404, 4294901760
    %406 = vmatpush.msra.mxu0 %v405
    %v407 = vand.u32 %v106, 4294901760
    %408 = vmatmul.f32.gmra.mxu0 %v407
    %v409 = vpop.f32.mrf.mxu0
    %v410 = vadd.f32 %v361, %v409
    %v411 = vand.u32 %v109, 4294901760
    %412 = vmatmul.f32.gmra.mxu0 %v411
    %v413 = vpop.f32.mrf.mxu0
    %v414 = vadd.f32 %v369, %v413
    %415 = vdwg.mxu0
    %416 = vmatpush.msra.mxu0 0.0
    %417 = vmatpush.msra.mxu0 0.0
    %418 = vmatpush.msra.mxu0 0.0
    %419 = vmatpush.msra.mxu0 0.0
    %420 = vmatpush.msra.mxu0 0.0
    %421 = vmatpush.msra.mxu0 0.0
    %422 = vmatpush.msra.mxu0 0.0
    %423 = vmatpush.msra.mxu0 0.0
    %424 = vmatpush.msra.mxu0 0.0
    %425 = vmatpush.msra.mxu0 0.0
    %426 = vmatpush.msra.mxu0 0.0
    %427 = vmatpush.msra.mxu0 0.0
    %v428 = vand.u32 %v333, 4294901760
    %v429 = vsub.f32 %v333, %v428
    %430 = vmatpush.msra.mxu0 %v429
    %v431 = vand.u32 %v332, 4294901760
    %v432 = vsub.f32 %v332, %v431
    %433 = vmatpush.msra.mxu0 %v432
    %v434 = vand.u32 %v331, 4294901760
    %v435 = vsub.f32 %v331, %v434
    %436 = vmatpush.msra.mxu0 %v435
    %v437 = vand.u32 %v330, 4294901760
    %v438 = vsub.f32 %v330, %v437
    %439 = vmatpush.msra.mxu0 %v438
    %v440 = vand.u32 %v106, 4294901760
    %v441 = vsub.f32 %v106, %v440
    %442 = vmatmul.f32.gmra.mxu0 %v441
    %v443 = vpop.f32.mrf.mxu0
    %v444 = vadd.f32 %v410, %v443
    %v445 = vand.u32 %v109, 4294901760
    %v446 = vsub.f32 %v109, %v445
    %447 = vmatmul.f32.gmra.mxu0 %v446
    %v448 = vpop.f32.mrf.mxu0
    %v449 = vadd.f32 %v414, %v448
    %450 = vdwg.mxu0
    %451 = vmatpush.msra.mxu0 0.0
    %452 = vmatpush.msra.mxu0 0.0
    %453 = vmatpush.msra.mxu0 0.0
    %454 = vmatpush.msra.mxu0 0.0
    %455 = vmatpush.msra.mxu0 0.0
    %456 = vmatpush.msra.mxu0 0.0
    %457 = vmatpush.msra.mxu0 0.0
    %458 = vmatpush.msra.mxu0 0.0
    %459 = vmatpush.msra.mxu0 0.0
    %460 = vmatpush.msra.mxu0 0.0
    %461 = vmatpush.msra.mxu0 0.0
    %462 = vmatpush.msra.mxu0 0.0
    %v463 = vand.u32 %v333, 4294901760
    %464 = vmatpush.msra.mxu0 %v463
    %v465 = vand.u32 %v332, 4294901760
    %466 = vmatpush.msra.mxu0 %v465
    %v467 = vand.u32 %v331, 4294901760
    %468 = vmatpush.msra.mxu0 %v467
    %v469 = vand.u32 %v330, 4294901760
    %470 = vmatpush.msra.mxu0 %v469
    %v471 = vand.u32 %v106, 4294901760
    %v472 = vsub.f32 %v106, %v471
    %v473 = vand.u32 %v472, 4294901760
    %474 = vmatmul.f32.gmra.mxu0 %v473
    %v475 = vpop.f32.mrf.mxu0
    %v476 = vadd.f32 %v444, %v475
    %v477 = vand.u32 %v109, 4294901760
    %v478 = vsub.f32 %v109, %v477
    %v479 = vand.u32 %v478, 4294901760
    %480 = vmatmul.f32.gmra.mxu0 %v479
    %v481 = vpop.f32.mrf.mxu0
    %v482 = vadd.f32 %v449, %v481
    %483 = vdwg.mxu0
    %484 = vmatpush.msra.mxu0 0.0
    %485 = vmatpush.msra.mxu0 0.0
    %486 = vmatpush.msra.mxu0 0.0
    %487 = vmatpush.msra.mxu0 0.0
    %488 = vmatpush.msra.mxu0 0.0
    %489 = vmatpush.msra.mxu0 0.0
    %490 = vmatpush.msra.mxu0 0.0
    %491 = vmatpush.msra.mxu0 0.0
    %492 = vmatpush.msra.mxu0 0.0
    %493 = vmatpush.msra.mxu0 0.0
    %494 = vmatpush.msra.mxu0 0.0
    %495 = vmatpush.msra.mxu0 0.0
    %v496 = vand.u32 %v333, 4294901760
    %v497 = vsub.f32 %v333, %v496
    %v498 = vand.u32 %v497, 4294901760
    %499 = vmatpush.msra.mxu0 %v498
    %v500 = vand.u32 %v332, 4294901760
    %v501 = vsub.f32 %v332, %v500
    %v502 = vand.u32 %v501, 4294901760
    %503 = vmatpush.msra.mxu0 %v502
    %v504 = vand.u32 %v331, 4294901760
    %v505 = vsub.f32 %v331, %v504
    %v506 = vand.u32 %v505, 4294901760
    %507 = vmatpush.msra.mxu0 %v506
    %v508 = vand.u32 %v330, 4294901760
    %v509 = vsub.f32 %v330, %v508
    %v510 = vand.u32 %v509, 4294901760
    %511 = vmatpush.msra.mxu0 %v510
    %v512 = vand.u32 %v106, 4294901760
    %513 = vmatmul.f32.gmra.mxu0 %v512
    %v514 = vpop.f32.mrf.mxu0
    %v515 = vadd.f32 %v476, %v514
    %v516 = vand.u32 %v109, 4294901760
    %517 = vmatmul.f32.gmra.mxu0 %v516
    %v518 = vpop.f32.mrf.mxu0
    %v519 = vadd.f32 %v482, %v518
    %520 = vdwg.mxu0
    %521 = vmatpush.msra.mxu0 0.0
    %522 = vmatpush.msra.mxu0 0.0
    %523 = vmatpush.msra.mxu0 0.0
    %524 = vmatpush.msra.mxu0 0.0
    %525 = vmatpush.msra.mxu0 0.0
    %526 = vmatpush.msra.mxu0 0.0
    %527 = vmatpush.msra.mxu0 0.0
    %528 = vmatpush.msra.mxu0 0.0
    %529 = vmatpush.msra.mxu0 0.0
    %530 = vmatpush.msra.mxu0 0.0
    %531 = vmatpush.msra.mxu0 0.0
    %532 = vmatpush.msra.mxu0 0.0
    %v533 = vand.u32 %v333, 4294901760
    %534 = vmatpush.msra.mxu0 %v533
    %v535 = vand.u32 %v332, 4294901760
    %536 = vmatpush.msra.mxu0 %v535
    %v537 = vand.u32 %v331, 4294901760
    %538 = vmatpush.msra.mxu0 %v537
    %v539 = vand.u32 %v330, 4294901760
    %540 = vmatpush.msra.mxu0 %v539
    %v541 = vand.u32 %v106, 4294901760
    %542 = vmatmul.f32.gmra.mxu0 %v541
    %v543 = vpop.f32.mrf.mxu0
    %v544 = vadd.f32 %v515, %v543
    %v545 = vand.u32 %v109, 4294901760
    %546 = vmatmul.f32.gmra.mxu0 %v545
    %v547 = vpop.f32.mrf.mxu0
    %v548 = vadd.f32 %v519, %v547
    %549 = vdwg.mxu0
    %550 = vst.msk [vmem:[%s5] sm:$0xff] %vm327, %v544
    %551 = vst.msk [vmem:[%s5 + $0x8] sm:$0xff] %vm327, %v548
    // Predicated region
    $region26: #{network_forward.11} parent=1 // pred_check
      _
    $region27: #{network_forward.11} parent=1 // pred_check_branch
      %553 = sbr.rel (0) target = $region29
    $region28: #{network_forward.11} parent=1 // pred_region
      _
    $region29: #{network_forward.11} parent=1 // pred_fallthru
      _
    // Predicated region
    $region30: #{network_forward.11} parent=1 // pred_check
      _
    $region31: #{network_forward.11} parent=1 // pred_check_branch
      %555 = sbr.rel (0) target = $region33
    $region32: #{network_forward.11} parent=1 // pred_region
      _
    $region33: #{network_forward.11} parent=1 // pred_fallthru
      _
    // Predicated region
    $region34: #{network_forward.11} parent=1 // pred_check
      _
    $region35: #{network_forward.11} parent=1 // pred_check_branch
      %557 = sbr.rel (0) target = $region37
    $region36: #{network_forward.11} parent=1 // pred_region
      _
    $region37: #{network_forward.11} parent=1 // pred_fallthru
      _
    // Predicated region
    $region38: #{network_forward.11} parent=1 // pred_check
      _
    $region39: #{network_forward.11} parent=1 // pred_check_branch
      %559 = sbr.rel (0) target = $region41
    $region40: #{network_forward.11} parent=1 // pred_region
      _
    $region41: #{network_forward.11} parent=1 // pred_fallthru
      _
    %560 = vsyncpa [#allocation3], 1
    %561 = vsyncpa [#allocation5], 1

// kernel: network_forward.12
$region0: #{network_forward.12}
  #allocation0 [shape = 'u32[]', space=smem, size = 0x4, offset = 0x4, fixed_abs, tag = 'smem constant byte address 0x4 - core index']
  #allocation1 [shape = 'u32[72,128]{1,0:T(1,128)}', space=vmem, size = 0x9000, scoped, tag = 'internal scratch']
  %s0 = inlined_call_operand.vmem [shape: f32[2,8,64], index: 0, kind: input, shape index: {}]
  %s1 = inlined_call_operand.vmem [shape: f32[4,64], index: 1, kind: input, shape index: {}]
  %s2 = inlined_call_operand.vmem [shape: f32[1,64], index: 2, kind: input, shape index: {}]
  %s3 = inlined_call_operand.vmem [shape: f32[64,32], index: 3, kind: input, shape index: {}]
  %s4 = inlined_call_operand.vmem [shape: f32[64,2], index: 4, kind: input, shape index: {}]
  %s5 = inlined_call_operand.vmem [shape: f32[2,64], index: 5, kind: input, shape index: {}]
  %s6 = inlined_call_operand.vmem [shape: f32[1,64], index: 6, kind: input, shape index: {}]
  %s7 = inlined_call_operand.vmem [shape: f32[2,8,64], index: 7, kind: output, shape index: {0}]
  %s8 = inlined_call_operand.vmem [shape: f32[2,8,32], index: 8, kind: output, shape index: {1}]
  %s9 = inlined_call_operand.vmem [shape: f32[2,8,64], index: 9, kind: output, shape index: {2}]
  %10 = xla_tuple %s7, %s8, %s9
  %s11 = sld [smem:[#allocation0]]
  $region77: #{network_forward.12} parent=0
    _
  %s13 = ssub.s32 1, %s11
  %s14 = scalar_select 0, %s13, %s11
  loop: start=0, step=1, limit=4
  $region2: #{network_forward.12} parent=0 // loop_pre_header
    _
  $region3: #{network_forward.12} parent=0 // loop_header
    %s16 = sphi 0, %s20
    %p17 = scmp.ge.s32.totalorder %s16, 4
    %s26 = sphi 0, %s28
    %s29 = sphi 0, %s26
    %s30 = sphi 0, %s29
    %s46 = sphi 0, %s30
    %s50 = sphi 0, %s50
    %s52 = sphi 0, %s50
    %s53 = sphi 0, %s52
    %s67 = sphi 0, %s53
    %s71 = sphi 0, %s71
    %s73 = sphi 0, %s71
    %s74 = sphi 0, %s73
    %s88 = sphi 0, %s74
    %s92 = sphi 0, %s92
    %s94 = sphi 0, %s92
    %s95 = sphi 0, %s94
    %s109 = sphi 0, %s95
    %s113 = sphi 0, %s113
    %s115 = sphi 0, %s113
    %s116 = sphi 0, %s115
    %s130 = sphi 0, %s116
    %s134 = sphi 0, %s134
    %s136 = sphi 0, %s134
    %s137 = sphi 0, %s136
    %s151 = sphi 0, %s137
    %s155 = sphi 0, %s155
    %s157 = sphi 0, %s155
    %s158 = sphi 0, %s157
    %s172 = sphi 0, %s158
    %s178 = sphi 0, %s180
    %s181 = sphi 0, %s178
    %s182 = sphi 0, %s181
    %s198 = sphi 0, %s182
    %s204 = sphi 0, %s206
    %s207 = sphi 0, %s204
    %s208 = sphi 0, %s207
    %s224 = sphi 0, %s208
    %s230 = sphi 0, %s232
    %s233 = sphi 0, %s230
    %s234 = sphi 0, %s233
    %s250 = sphi 0, %s234
  $region4: #{network_forward.12} parent=0 // loop_header_branch
    %19 = sbr.rel (%p17) target = $region8
  $region5: #{network_forward.12} parent=0 // loop_body
    %s21 = ssub.s32 %s16, 1
    %s22 = ssub.s32 %s16, 2
    %s23 = sadd.s32 %s16, 1
    %s24 = ssub.s32 %s16, %s23
    %p25 = scmp.eq.s32.totalorder %s24, 0
    %s27 = sadd.s32 %s26, 1
    %s28 = scalar_select %p25, %s26, %s27
    %p31 = pneg %p25
    %p32 = scmp.eq.s32.totalorder %s16, 1
    %p33 = por %p31, %p32
    %p34 = scmp.ne.s32.totalorder %s26, %s29
    %p35 = scmp.eq.s32.totalorder %s16, 0
    %p36 = por %p34, %p35
    %p37 = scmp.ne.s32.totalorder %s26, %s29
    %p38 = scmp.eq.s32.totalorder %s21, 1
    %p39 = por %p37, %p38
    %p40 = scmp.ne.s32.totalorder %s29, %s30
    %p41 = scmp.eq.s32.totalorder %s21, 0
    %p42 = por %p40, %p41
    %p43 = scmp.ne.s32.totalorder %s29, %s30
    %p44 = scmp.eq.s32.totalorder %s22, 1
    %p45 = por %p43, %p44
    %p47 = scmp.ne.s32.totalorder %s30, %s46
    %p48 = scmp.eq.s32.totalorder %s22, 0
    %p49 = por %p47, %p48
    %s51 = sadd.s32 %s50, 1
    %p54 = scmp.eq.s32.totalorder %s16, 1
    %p55 = scmp.ne.s32.totalorder %s50, %s52
    %p56 = scmp.eq.s32.totalorder %s16, 0
    %p57 = por %p55, %p56
    %p58 = scmp.ne.s32.totalorder %s50, %s52
    %p59 = scmp.eq.s32.totalorder %s21, 1
    %p60 = por %p58, %p59
    %p61 = scmp.ne.s32.totalorder %s52, %s53
    %p62 = scmp.eq.s32.totalorder %s21, 0
    %p63 = por %p61, %p62
    %p64 = scmp.ne.s32.totalorder %s52, %s53
    %p65 = scmp.eq.s32.totalorder %s22, 1
    %p66 = por %p64, %p65
    %p68 = scmp.ne.s32.totalorder %s53, %s67
    %p69 = scmp.eq.s32.totalorder %s22, 0
    %p70 = por %p68, %p69
    %s72 = sadd.s32 %s71, 1
    %p75 = scmp.eq.s32.totalorder %s16, 1
    %p76 = scmp.ne.s32.totalorder %s71, %s73
    %p77 = scmp.eq.s32.totalorder %s16, 0
    %p78 = por %p76, %p77
    %p79 = scmp.ne.s32.totalorder %s71, %s73
    %p80 = scmp.eq.s32.totalorder %s21, 1
    %p81 = por %p79, %p80
    %p82 = scmp.ne.s32.totalorder %s73, %s74
    %p83 = scmp.eq.s32.totalorder %s21, 0
    %p84 = por %p82, %p83
    %p85 = scmp.ne.s32.totalorder %s73, %s74
    %p86 = scmp.eq.s32.totalorder %s22, 1
    %p87 = por %p85, %p86
    %p89 = scmp.ne.s32.totalorder %s74, %s88
    %p90 = scmp.eq.s32.totalorder %s22, 0
    %p91 = por %p89, %p90
    %s93 = sadd.s32 %s92, 1
    %p96 = scmp.eq.s32.totalorder %s16, 1
    %p97 = scmp.ne.s32.totalorder %s92, %s94
    %p98 = scmp.eq.s32.totalorder %s16, 0
    %p99 = por %p97, %p98
    %p100 = scmp.ne.s32.totalorder %s92, %s94
    %p101 = scmp.eq.s32.totalorder %s21, 1
    %p102 = por %p100, %p101
    %p103 = scmp.ne.s32.totalorder %s94, %s95
    %p104 = scmp.eq.s32.totalorder %s21, 0
    %p105 = por %p103, %p104
    %p106 = scmp.ne.s32.totalorder %s94, %s95
    %p107 = scmp.eq.s32.totalorder %s22, 1
    %p108 = por %p106, %p107
    %p110 = scmp.ne.s32.totalorder %s95, %s109
    %p111 = scmp.eq.s32.totalorder %s22, 0
    %p112 = por %p110, %p111
    %s114 = sadd.s32 %s113, 1
    %p117 = scmp.eq.s32.totalorder %s16, 1
    %p118 = scmp.ne.s32.totalorder %s113, %s115
    %p119 = scmp.eq.s32.totalorder %s16, 0
    %p120 = por %p118, %p119
    %p121 = scmp.ne.s32.totalorder %s113, %s115
    %p122 = scmp.eq.s32.totalorder %s21, 1
    %p123 = por %p121, %p122
    %p124 = scmp.ne.s32.totalorder %s115, %s116
    %p125 = scmp.eq.s32.totalorder %s21, 0
    %p126 = por %p124, %p125
    %p127 = scmp.ne.s32.totalorder %s115, %s116
    %p128 = scmp.eq.s32.totalorder %s22, 1
    %p129 = por %p127, %p128
    %p131 = scmp.ne.s32.totalorder %s116, %s130
    %p132 = scmp.eq.s32.totalorder %s22, 0
    %p133 = por %p131, %p132
    %s135 = sadd.s32 %s134, 1
    %p138 = scmp.eq.s32.totalorder %s16, 1
    %p139 = scmp.ne.s32.totalorder %s134, %s136
    %p140 = scmp.eq.s32.totalorder %s16, 0
    %p141 = por %p139, %p140
    %p142 = scmp.ne.s32.totalorder %s134, %s136
    %p143 = scmp.eq.s32.totalorder %s21, 1
    %p144 = por %p142, %p143
    %p145 = scmp.ne.s32.totalorder %s136, %s137
    %p146 = scmp.eq.s32.totalorder %s21, 0
    %p147 = por %p145, %p146
    %p148 = scmp.ne.s32.totalorder %s136, %s137
    %p149 = scmp.eq.s32.totalorder %s22, 1
    %p150 = por %p148, %p149
    %p152 = scmp.ne.s32.totalorder %s137, %s151
    %p153 = scmp.eq.s32.totalorder %s22, 0
    %p154 = por %p152, %p153
    %s156 = sadd.s32 %s155, 1
    %p159 = scmp.eq.s32.totalorder %s16, 1
    %p160 = scmp.ne.s32.totalorder %s155, %s157
    %p161 = scmp.eq.s32.totalorder %s16, 0
    %p162 = por %p160, %p161
    %p163 = scmp.ne.s32.totalorder %s155, %s157
    %p164 = scmp.eq.s32.totalorder %s21, 1
    %p165 = por %p163, %p164
    %p166 = scmp.ne.s32.totalorder %s157, %s158
    %p167 = scmp.eq.s32.totalorder %s21, 0
    %p168 = por %p166, %p167
    %p169 = scmp.ne.s32.totalorder %s157, %s158
    %p170 = scmp.eq.s32.totalorder %s22, 1
    %p171 = por %p169, %p170
    %p173 = scmp.ne.s32.totalorder %s158, %s172
    %p174 = scmp.eq.s32.totalorder %s22, 0
    %p175 = por %p173, %p174
    %s176 = ssub.s32 %s16, %s23
    %p177 = scmp.eq.s32.totalorder %s176, 0
    %s179 = sadd.s32 %s178, 1
    %s180 = scalar_select %p177, %s178, %s179
    %p183 = pneg %p177
    %p184 = scmp.eq.s32.totalorder %s16, 1
    %p185 = por %p183, %p184
    %p186 = scmp.ne.s32.totalorder %s178, %s181
    %p187 = scmp.eq.s32.totalorder %s16, 0
    %p188 = por %p186, %p187
    %p189 = scmp.ne.s32.totalorder %s178, %s181
    %p190 = scmp.eq.s32.totalorder %s21, 1
    %p191 = por %p189, %p190
    %p192 = scmp.ne.s32.totalorder %s181, %s182
    %p193 = scmp.eq.s32.totalorder %s21, 0
    %p194 = por %p192, %p193
    %p195 = scmp.ne.s32.totalorder %s181, %s182
    %p196 = scmp.eq.s32.totalorder %s22, 1
    %p197 = por %p195, %p196
    %p199 = scmp.ne.s32.totalorder %s182, %s198
    %p200 = scmp.eq.s32.totalorder %s22, 0
    %p201 = por %p199, %p200
    %s202 = ssub.s32 %s16, %s23
    %p203 = scmp.eq.s32.totalorder %s202, 0
    %s205 = sadd.s32 %s204, 1
    %s206 = scalar_select %p203, %s204, %s205
    %p209 = pneg %p203
    %p210 = scmp.eq.s32.totalorder %s16, 1
    %p211 = por %p209, %p210
    %p212 = scmp.ne.s32.totalorder %s204, %s207
    %p213 = scmp.eq.s32.totalorder %s16, 0
    %p214 = por %p212, %p213
    %p215 = scmp.ne.s32.totalorder %s204, %s207
    %p216 = scmp.eq.s32.totalorder %s21, 1
    %p217 = por %p215, %p216
    %p218 = scmp.ne.s32.totalorder %s207, %s208
    %p219 = scmp.eq.s32.totalorder %s21, 0
    %p220 = por %p218, %p219
    %p221 = scmp.ne.s32.totalorder %s207, %s208
    %p222 = scmp.eq.s32.totalorder %s22, 1
    %p223 = por %p221, %p222
    %p225 = scmp.ne.s32.totalorder %s208, %s224
    %p226 = scmp.eq.s32.totalorder %s22, 0
    %p227 = por %p225, %p226
    %s228 = ssub.s32 %s16, %s23
    %p229 = scmp.eq.s32.totalorder %s228, 0
    %s231 = sadd.s32 %s230, 1
    %s232 = scalar_select %p229, %s230, %s231
    %p235 = pneg %p229
    %p236 = scmp.eq.s32.totalorder %s16, 1
    %p237 = por %p235, %p236
    %p238 = scmp.ne.s32.totalorder %s230, %s233
    %p239 = scmp.eq.s32.totalorder %s16, 0
    %p240 = por %p238, %p239
    %p241 = scmp.ne.s32.totalorder %s230, %s233
    %p242 = scmp.eq.s32.totalorder %s21, 1
    %p243 = por %p241, %p242
    %p244 = scmp.ne.s32.totalorder %s233, %s234
    %p245 = scmp.eq.s32.totalorder %s21, 0
    %p246 = por %p244, %p245
    %p247 = scmp.ne.s32.totalorder %s233, %s234
    %p248 = scmp.eq.s32.totalorder %s22, 1
    %p249 = por %p247, %p248
    %p251 = scmp.ne.s32.totalorder %s234, %s250
    %p252 = scmp.eq.s32.totalorder %s22, 0
    %p253 = por %p251, %p252
    %p254 = scmp.le.s32.totalorder 1, %s16
    %p255 = scmp.lt.s32.totalorder %s16, 3
    %p256 = pnand %p254, %p255
    %p257 = pneg %p256
    // Predicated region
    $region9: #{network_forward.12} parent=5 // pred_check
      _
    $region10: #{network_forward.12} parent=5 // pred_check_branch
      %259 = sbr.rel (%p256) target = $region12
    $region11: #{network_forward.12} parent=5 // pred_region
      %s260 = ssub.s32 %s16, 1
      // Predicated region
      $region13: #{network_forward.12} parent=11 // pred_check
        %p261 = pneg %p63
      $region14: #{network_forward.12} parent=11 // pred_check_branch
        %263 = sbr.rel (%p261) target = $region16
      $region15: #{network_forward.12} parent=11 // pred_region
        _
      $region16: #{network_forward.12} parent=11 // pred_fallthru
        _
      // Predicated region
      $region17: #{network_forward.12} parent=11 // pred_check
        %p264 = pneg %p84
      $region18: #{network_forward.12} parent=11 // pred_check_branch
        %266 = sbr.rel (%p264) target = $region20
      $region19: #{network_forward.12} parent=11 // pred_region
        _
      $region20: #{network_forward.12} parent=11 // pred_fallthru
        _
      // Predicated region
      $region21: #{network_forward.12} parent=11 // pred_check
        %p267 = pneg %p105
      $region22: #{network_forward.12} parent=11 // pred_check_branch
        %269 = sbr.rel (%p267) target = $region24
      $region23: #{network_forward.12} parent=11 // pred_region
        _
      $region24: #{network_forward.12} parent=11 // pred_fallthru
        _
      // Predicated region
      $region25: #{network_forward.12} parent=11 // pred_check
        %p270 = pneg %p126
      $region26: #{network_forward.12} parent=11 // pred_check_branch
        %272 = sbr.rel (%p270) target = $region28
      $region27: #{network_forward.12} parent=11 // pred_region
        _
      $region28: #{network_forward.12} parent=11 // pred_fallthru
        _
      // Predicated region
      $region29: #{network_forward.12} parent=11 // pred_check
        %p273 = pneg %p147
      $region30: #{network_forward.12} parent=11 // pred_check_branch
        %275 = sbr.rel (%p273) target = $region32
      $region31: #{network_forward.12} parent=11 // pred_region
        _
      $region32: #{network_forward.12} parent=11 // pred_fallthru
        _
      // Predicated region
      $region33: #{network_forward.12} parent=11 // pred_check
        %p276 = pneg %p168
      $region34: #{network_forward.12} parent=11 // pred_check_branch
        %278 = sbr.rel (%p276) target = $region36
      $region35: #{network_forward.12} parent=11 // pred_region
        _
      $region36: #{network_forward.12} parent=11 // pred_fallthru
        _
    $region12: #{network_forward.12} parent=5 // pred_fallthru
      _
    %p279 = scmp.lt.s32.totalorder %s16, 2
    // Predicated region
    $region37: #{network_forward.12} parent=5 // pred_check
      %p280 = pneg %p279
    $region38: #{network_forward.12} parent=5 // pred_check_branch
      %282 = sbr.rel (%p280) target = $region40
    $region39: #{network_forward.12} parent=5 // pred_region
      // Predicated region
      $region41: #{network_forward.12} parent=39 // pred_check
        %p283 = pneg %p36
      $region42: #{network_forward.12} parent=39 // pred_check_branch
        %285 = sbr.rel (%p283) target = $region44
      $region43: #{network_forward.12} parent=39 // pred_region
        %p286 = scmp.lt.s32.totalorder %s16, 1
        %s287 = scalar_select %p286, %s16, 1
        %s288 = smul.addr %s287, 8
        %s289 = scalar_lea.vmem %s0, %s288
      $region44: #{network_forward.12} parent=39 // pred_fallthru
        _
    $region40: #{network_forward.12} parent=5 // pred_fallthru
      _
    %p290 = scmp.le.s32.totalorder 1, %s16
    %p291 = scmp.lt.s32.totalorder %s16, 3
    %p292 = pnand %p290, %p291
    %p293 = pneg %p292
    // Predicated region
    $region45: #{network_forward.12} parent=5 // pred_check
      _
    $region46: #{network_forward.12} parent=5 // pred_check_branch
      %295 = sbr.rel (%p292) target = $region48
    $region47: #{network_forward.12} parent=5 // pred_region
      %s296 = ssub.s32 %s16, 1
      %p297 = scmp.lt.s32.totalorder %s21, 1
      %s298 = scalar_select %p297, %s21, 1
      %s299 = smul.addr %s298, 8
      %s300 = scalar_lea.vmem %s0, %s299
      %p301 = pneg %p42
      %p302 = pneg %p39
      %p303 = pneg %p63
      %p304 = pneg %p60
      %p305 = pneg %p84
      %p306 = pneg %p81
      %p307 = pneg %p105
      %p308 = pneg %p102
      %p309 = pneg %p126
      %p310 = pneg %p123
      %p311 = pneg %p147
      %p312 = pneg %p144
      %p313 = pneg %p168
      %p314 = pneg %p165
      %p315 = pneg %p194
      %p316 = pneg %p191
      %p317 = scmp.lt.s32.totalorder %s21, 1
      %s318 = scalar_select %p317, %s21, 1
      %s319 = smul.addr %s318, 8
      %s320 = scalar_lea.vmem %s7, %s319
      %p321 = pneg %p220
      %p322 = pneg %p217
      %p323 = scmp.lt.s32.totalorder %s21, 1
      %s324 = scalar_select %p323, %s21, 1
      %s325 = smul.addr %s324, 8
      %s326 = scalar_lea.vmem %s8, %s325
      %p327 = pneg %p246
      %p328 = pneg %p243
      %p329 = scmp.lt.s32.totalorder %s21, 1
      %s330 = scalar_select %p329, %s21, 1
      %s331 = smul.addr %s330, 8
      %s332 = scalar_lea.vmem %s9, %s331
      %p333 = scmp.lt.s32.totalorder %s21, 1
      %s334 = scalar_select %p333, %s21, 1
      %s335 = smul.addr %s334, 8
      %s336 = scalar_lea.vmem %s0, %s335
      %p337 = scmp.lt.s32.totalorder %s21, 1
      %s338 = scalar_select %p337, %s21, 1
      %s339 = smul.addr %s338, 8
      %s340 = scalar_lea.vmem %s7, %s339
      %p341 = scmp.lt.s32.totalorder %s21, 1
      %s342 = scalar_select %p341, %s21, 1
      %s343 = smul.addr %s342, 8
      %s344 = scalar_lea.vmem %s8, %s343
      %p345 = scmp.lt.s32.totalorder %s21, 1
      %s346 = scalar_select %p345, %s21, 1
      %s347 = smul.addr %s346, 8
      %s348 = scalar_lea.vmem %s9, %s347
      %v349 = vld [vmem:[%s336] sm:$0xff]
      %v351 = vrot.slane %v349, 5
      %vm353 = vcmask 1042432
      %v354 = vsel %vm353, 0.0, %v351
      %v355 = vld [vmem:[%s2] sm:$0x1]
      %v357 = vperm.slane %v355, 0
      %v359 = vadd.f32 %v357, 0.0
      %v360 = vld [vmem:[%s1] sm:$0x1]
      %v361 = vperm.slane %v360, 0
      %v362 = vmul.f32 %v354, %v361
      %v363 = vadd.f32 %v359, %v362
      %v364 = vld [vmem:[%s1 + $0x1] sm:$0x1]
      %v365 = vperm.slane %v364, 0
      %v366 = vmul.f32 %v354, %v365
      %v367 = vmul.f32 %v351, %v365
      %vm370 = vcmask 1046528
      %v371 = vrot.slane %v366, 1
      %v372 = vrot.slane %v367, 1
      %v373 = vsel %vm370, %v371, %v372
      %v375 = vadd.f32 %v363, %v373
      %v376 = vld [vmem:[%s1 + $0x2] sm:$0x1]
      %v377 = vperm.slane %v376, 0
      %v378 = vmul.f32 %v354, %v377
      %v379 = vmul.f32 %v351, %v377
      %vm382 = vcmask 1045504
      %v383 = vrot.slane %v378, 2
      %v384 = vrot.slane %v379, 2
      %v385 = vsel %vm382, %v383, %v384
      %v387 = vadd.f32 %v375, %v385
      %v388 = vld [vmem:[%s1 + $0x3] sm:$0x1]
      %v389 = vperm.slane %v388, 0
      %v390 = vmul.f32 %v354, %v389
      %v391 = vmul.f32 %v351, %v389
      %vm394 = vcmask 1044480
      %v395 = vrot.slane %v390, 3
      %v396 = vrot.slane %v391, 3
      %v397 = vsel %vm394, %v395, %v396
      %v399 = vadd.f32 %v387, %v397
      %v400 = vxor.u32 %v399, 2147483648
      %v401 = vmul.f32 %v400, 1.442695
      %v402 = vpow.pop %v401
      %v403 = vadd.f32 %v402, 1.0
      %v404 = vrcp.pop %v403
      %v405 = vmul.f32 %v403, %v404
      %v406 = vsub.f32 1.0, %v405
      %v407 = vmul.f32 %v404, %v406
      %v408 = vadd.f32 %v404, %v407
      %vm409 = vweird.f32 %v403
      %vm410 = vweird.f32 %v404
      %vm411 = vmor %vm409, %vm410
      %v412 = vsel %vm411, %v404, %v408
      %v413 = vand.u32 2147483647, %v403
      %vm414 = vcmp.eq.f32.partialorder %v413, 8.507059e+37
      %v415 = vand.u32 %v403, 2147483648
      %v416 = vor.u32 1.1754944e-38, %v415
      %v417 = vsel %vm414, %v416, %v412
      %v418 = vmul.f32 1.0, %v417
      %v419 = vmul.f32 %v399, %v418
      %vm420 = vcmask 523264
      %421 = vst.msk [vmem:[%s340] sm:$0xff] %vm420, %v419
      %v422 = vld [vmem:[%s3] sm:$0xff]
      %v423 = vld [vmem:[%s3 + $0x8] sm:$0xff]
      %v424 = vld [vmem:[%s3 + $0x10] sm:$0xff]
      %v425 = vld [vmem:[%s3 + $0x18] sm:$0xff]
      %v426 = vld [vmem:[%s3 + $0x20] sm:$0xff]
      %v427 = vld [vmem:[%s3 + $0x28] sm:$0xff]
      %v428 = vld [vmem:[%s3 + $0x30] sm:$0xff]
      %v429 = vld [vmem:[%s3 + $0x38] sm:$0xff]
      %v431 = vsel %vm420, %v419, 0
      %433 = vmatpush.msra.mxu0 0.0
      %434 = vmatpush.msra.mxu0 0.0
      %435 = vmatpush.msra.mxu0 0.0
      %436 = vmatpush.msra.mxu0 0.0
      %437 = vmatpush.msra.mxu0 0.0
      %438 = vmatpush.msra.mxu0 0.0
      %439 = vmatpush.msra.mxu0 0.0
      %440 = vmatpush.msra.mxu0 0.0
      %v441 = vand.u32 %v429, 4294901760
      %442 = vmatpush.msra.mxu0 %v441
      %v443 = vand.u32 %v428, 4294901760
      %444 = vmatpush.msra.mxu0 %v443
      %v445 = vand.u32 %v427, 4294901760
      %446 = vmatpush.msra.mxu0 %v445
      %v447 = vand.u32 %v426, 4294901760
      %448 = vmatpush.msra.mxu0 %v447
      %v449 = vand.u32 %v425, 4294901760
      %450 = vmatpush.msra.mxu0 %v449
      %v451 = vand.u32 %v424, 4294901760
      %452 = vmatpush.msra.mxu0 %v451
      %v453 = vand.u32 %v423, 4294901760
      %454 = vmatpush.msra.mxu0 %v453
      %v455 = vand.u32 %v422, 4294901760
      %456 = vmatpush.msra.mxu0 %v455
      %v457 = vand.u32 %v431, 4294901760
      %v458 = vsub.f32 %v431, %v457
      %v459 = vand.u32 %v458, 4294901760
      %v460 = vsub.f32 %v458, %v459
      %v461 = vand.u32 %v460, 4294901760
      %462 = vmatmul.f32.gmra.mxu0 %v461
      %v463 = vpop.f32.mrf.mxu0
      %v464 = vadd.f32 0.0, %v463
      %465 = vdwg.mxu0
      %466 = vmatpush.msra.mxu0 0.0
      %467 = vmatpush.msra.mxu0 0.0
      %468 = vmatpush.msra.mxu0 0.0
      %469 = vmatpush.msra.mxu0 0.0
      %470 = vmatpush.msra.mxu0 0.0
      %471 = vmatpush.msra.mxu0 0.0
      %472 = vmatpush.msra.mxu0 0.0
      %473 = vmatpush.msra.mxu0 0.0
      %v474 = vand.u32 %v429, 4294901760
      %v475 = vsub.f32 %v429, %v474
      %v476 = vand.u32 %v475, 4294901760
      %v477 = vsub.f32 %v475, %v476
      %v478 = vand.u32 %v477, 4294901760
      %479 = vmatpush.msra.mxu0 %v478
      %v480 = vand.u32 %v428, 4294901760
      %v481 = vsub.f32 %v428, %v480
      %v482 = vand.u32 %v481, 4294901760
      %v483 = vsub.f32 %v481, %v482
      %v484 = vand.u32 %v483, 4294901760
      %485 = vmatpush.msra.mxu0 %v484
      %v486 = vand.u32 %v427, 4294901760
      %v487 = vsub.f32 %v427, %v486
      %v488 = vand.u32 %v487, 4294901760
      %v489 = vsub.f32 %v487, %v488
      %v490 = vand.u32 %v489, 4294901760
      %491 = vmatpush.msra.mxu0 %v490
      %v492 = vand.u32 %v426, 4294901760
      %v493 = vsub.f32 %v426, %v492
      %v494 = vand.u32 %v493, 4294901760
      %v495 = vsub.f32 %v493, %v494
      %v496 = vand.u32 %v495, 4294901760
      %497 = vmatpush.msra.mxu0 %v496
      %v498 = vand.u32 %v425, 4294901760
      %v499 = vsub.f32 %v425, %v498
      %v500 = vand.u32 %v499, 4294901760
      %v501 = vsub.f32 %v499, %v500
      %v502 = vand.u32 %v501, 4294901760
      %503 = vmatpush.msra.mxu0 %v502
      %v504 = vand.u32 %v424, 4294901760
      %v505 = vsub.f32 %v424, %v504
      %v506 = vand.u32 %v505, 4294901760
      %v507 = vsub.f32 %v505, %v506
      %v508 = vand.u32 %v507, 4294901760
      %509 = vmatpush.msra.mxu0 %v508
      %v510 = vand.u32 %v423, 4294901760
      %v511 = vsub.f32 %v423, %v510
      %v512 = vand.u32 %v511, 4294901760
      %v513 = vsub.f32 %v511, %v512
      %v514 = vand.u32 %v513, 4294901760
      %515 = vmatpush.msra.mxu0 %v514
      %v516 = vand.u32 %v422, 4294901760
      %v517 = vsub.f32 %v422, %v516
      %v518 = vand.u32 %v517, 4294901760
      %v519 = vsub.f32 %v517, %v518
      %v520 = vand.u32 %v519, 4294901760
      %521 = vmatpush.msra.mxu0 %v520
      %v522 = vand.u32 %v431, 4294901760
      %523 = vmatmul.f32.gmra.mxu0 %v522
      %v524 = vpop.f32.mrf.mxu0
      %v525 = vadd.f32 %v464, %v524
      %526 = vdwg.mxu0
      %527 = vmatpush.msra.mxu0 0.0
      %528 = vmatpush.msra.mxu0 0.0
      %529 = vmatpush.msra.mxu0 0.0
      %530 = vmatpush.msra.mxu0 0.0
      %531 = vmatpush.msra.mxu0 0.0
      %532 = vmatpush.msra.mxu0 0.0
      %533 = vmatpush.msra.mxu0 0.0
      %534 = vmatpush.msra.mxu0 0.0
      %v535 = vand.u32 %v429, 4294901760
      %v536 = vsub.f32 %v429, %v535
      %537 = vmatpush.msra.mxu0 %v536
      %v538 = vand.u32 %v428, 4294901760
      %v539 = vsub.f32 %v428, %v538
      %540 = vmatpush.msra.mxu0 %v539
      %v541 = vand.u32 %v427, 4294901760
      %v542 = vsub.f32 %v427, %v541
      %543 = vmatpush.msra.mxu0 %v542
      %v544 = vand.u32 %v426, 4294901760
      %v545 = vsub.f32 %v426, %v544
      %546 = vmatpush.msra.mxu0 %v545
      %v547 = vand.u32 %v425, 4294901760
      %v548 = vsub.f32 %v425, %v547
      %549 = vmatpush.msra.mxu0 %v548
      %v550 = vand.u32 %v424, 4294901760
      %v551 = vsub.f32 %v424, %v550
      %552 = vmatpush.msra.mxu0 %v551
      %v553 = vand.u32 %v423, 4294901760
      %v554 = vsub.f32 %v423, %v553
      %555 = vmatpush.msra.mxu0 %v554
      %v556 = vand.u32 %v422, 4294901760
      %v557 = vsub.f32 %v422, %v556
      %558 = vmatpush.msra.mxu0 %v557
      %v559 = vand.u32 %v431, 4294901760
      %v560 = vsub.f32 %v431, %v559
      %561 = vmatmul.f32.gmra.mxu0 %v560
      %v562 = vpop.f32.mrf.mxu0
      %v563 = vadd.f32 %v525, %v562
      %564 = vdwg.mxu0
      %565 = vmatpush.msra.mxu0 0.0
      %566 = vmatpush.msra.mxu0 0.0
      %567 = vmatpush.msra.mxu0 0.0
      %568 = vmatpush.msra.mxu0 0.0
      %569 = vmatpush.msra.mxu0 0.0
      %570 = vmatpush.msra.mxu0 0.0
      %571 = vmatpush.msra.mxu0 0.0
      %572 = vmatpush.msra.mxu0 0.0
      %v573 = vand.u32 %v429, 4294901760
      %574 = vmatpush.msra.mxu0 %v573
      %v575 = vand.u32 %v428, 4294901760
      %576 = vmatpush.msra.mxu0 %v575
      %v577 = vand.u32 %v427, 4294901760
      %578 = vmatpush.msra.mxu0 %v577
      %v579 = vand.u32 %v426, 4294901760
      %580 = vmatpush.msra.mxu0 %v579
      %v581 = vand.u32 %v425, 4294901760
      %582 = vmatpush.msra.mxu0 %v581
      %v583 = vand.u32 %v424, 4294901760
      %584 = vmatpush.msra.mxu0 %v583
      %v585 = vand.u32 %v423, 4294901760
      %586 = vmatpush.msra.mxu0 %v585
      %v587 = vand.u32 %v422, 4294901760
      %588 = vmatpush.msra.mxu0 %v587
      %v589 = vand.u32 %v431, 4294901760
      %v590 = vsub.f32 %v431, %v589
      %v591 = vand.u32 %v590, 4294901760
      %592 = vmatmul.f32.gmra.mxu0 %v591
      %v593 = vpop.f32.mrf.mxu0
      %v594 = vadd.f32 %v563, %v593
      %595 = vdwg.mxu0
      %596 = vmatpush.msra.mxu0 0.0
      %597 = vmatpush.msra.mxu0 0.0
      %598 = vmatpush.msra.mxu0 0.0
      %599 = vmatpush.msra.mxu0 0.0
      %600 = vmatpush.msra.mxu0 0.0
      %601 = vmatpush.msra.mxu0 0.0
      %602 = vmatpush.msra.mxu0 0.0
      %603 = vmatpush.msra.mxu0 0.0
      %v604 = vand.u32 %v429, 4294901760
      %v605 = vsub.f32 %v429, %v604
      %v606 = vand.u32 %v605, 4294901760
      %607 = vmatpush.msra.mxu0 %v606
      %v608 = vand.u32 %v428, 4294901760
      %v609 = vsub.f32 %v428, %v608
      %v610 = vand.u32 %v609, 4294901760
      %611 = vmatpush.msra.mxu0 %v610
      %v612 = vand.u32 %v427, 4294901760
      %v613 = vsub.f32 %v427, %v612
      %v614 = vand.u32 %v613, 4294901760
      %615 = vmatpush.msra.mxu0 %v614
      %v616 = vand.u32 %v426, 4294901760
      %v617 = vsub.f32 %v426, %v616
      %v618 = vand.u32 %v617, 4294901760
      %619 = vmatpush.msra.mxu0 %v618
      %v620 = vand.u32 %v425, 4294901760
      %v621 = vsub.f32 %v425, %v620
      %v622 = vand.u32 %v621, 4294901760
      %623 = vmatpush.msra.mxu0 %v622
      %v624 = vand.u32 %v424, 4294901760
      %v625 = vsub.f32 %v424, %v624
      %v626 = vand.u32 %v625, 4294901760
      %627 = vmatpush.msra.mxu0 %v626
      %v628 = vand.u32 %v423, 4294901760
      %v629 = vsub.f32 %v423, %v628
      %v630 = vand.u32 %v629, 4294901760
      %631 = vmatpush.msra.mxu0 %v630
      %v632 = vand.u32 %v422, 4294901760
      %v633 = vsub.f32 %v422, %v632
      %v634 = vand.u32 %v633, 4294901760
      %635 = vmatpush.msra.mxu0 %v634
      %v636 = vand.u32 %v431, 4294901760
      %637 = vmatmul.f32.gmra.mxu0 %v636
      %v638 = vpop.f32.mrf.mxu0
      %v639 = vadd.f32 %v594, %v638
      %640 = vdwg.mxu0
      %641 = vmatpush.msra.mxu0 0.0
      %642 = vmatpush.msra.mxu0 0.0
      %643 = vmatpush.msra.mxu0 0.0
      %644 = vmatpush.msra.mxu0 0.0
      %645 = vmatpush.msra.mxu0 0.0
      %646 = vmatpush.msra.mxu0 0.0
      %647 = vmatpush.msra.mxu0 0.0
      %648 = vmatpush.msra.mxu0 0.0
      %v649 = vand.u32 %v429, 4294901760
      %650 = vmatpush.msra.mxu0 %v649
      %v651 = vand.u32 %v428, 4294901760
      %652 = vmatpush.msra.mxu0 %v651
      %v653 = vand.u32 %v427, 4294901760
      %654 = vmatpush.msra.mxu0 %v653
      %v655 = vand.u32 %v426, 4294901760
      %656 = vmatpush.msra.mxu0 %v655
      %v657 = vand.u32 %v425, 4294901760
      %658 = vmatpush.msra.mxu0 %v657
      %v659 = vand.u32 %v424, 4294901760
      %660 = vmatpush.msra.mxu0 %v659
      %v661 = vand.u32 %v423, 4294901760
      %662 = vmatpush.msra.mxu0 %v661
      %v663 = vand.u32 %v422, 4294901760
      %664 = vmatpush.msra.mxu0 %v663
      %v665 = vand.u32 %v431, 4294901760
      %666 = vmatmul.f32.gmra.mxu0 %v665
      %v667 = vpop.f32.mrf.mxu0
      %v668 = vadd.f32 %v639, %v667
      %669 = vdwg.mxu0
      %vm670 = vcmask 261120
      %671 = vst.msk [vmem:[%s344] sm:$0xff] %vm670, %v668
      %v672 = vld [vmem:[%s4] sm:$0xff]
      %v673 = vld [vmem:[%s4 + $0x8] sm:$0xff]
      %v674 = vld [vmem:[%s4 + $0x10] sm:$0xff]
      %v675 = vld [vmem:[%s4 + $0x18] sm:$0xff]
      %v676 = vld [vmem:[%s4 + $0x20] sm:$0xff]
      %v677 = vld [vmem:[%s4 + $0x28] sm:$0xff]
      %v678 = vld [vmem:[%s4 + $0x30] sm:$0xff]
      %v679 = vld [vmem:[%s4 + $0x38] sm:$0xff]
      %680 = vmatpush.msra.mxu0 0.0
      %681 = vmatpush.msra.mxu0 0.0
      %682 = vmatpush.msra.mxu0 0.0
      %683 = vmatpush.msra.mxu0 0.0
      %684 = vmatpush.msra.mxu0 0.0
      %685 = vmatpush.msra.mxu0 0.0
      %686 = vmatpush.msra.mxu0 0.0
      %687 = vmatpush.msra.mxu0 0.0
      %v688 = vand.u32 %v679, 4294901760
      %689 = vmatpush.msra.mxu0 %v688
      %v690 = vand.u32 %v678, 4294901760
      %691 = vmatpush.msra.mxu0 %v690
      %v692 = vand.u32 %v677, 4294901760
      %693 = vmatpush.msra.mxu0 %v692
      %v694 = vand.u32 %v676, 4294901760
      %695 = vmatpush.msra.mxu0 %v694
      %v696 = vand.u32 %v675, 4294901760
      %697 = vmatpush.msra.mxu0 %v696
      %v698 = vand.u32 %v674, 4294901760
      %699 = vmatpush.msra.mxu0 %v698
      %v700 = vand.u32 %v673, 4294901760
      %701 = vmatpush.msra.mxu0 %v700
      %v702 = vand.u32 %v672, 4294901760
      %703 = vmatpush.msra.mxu0 %v702
      %v704 = vand.u32 %v431, 4294901760
      %v705 = vsub.f32 %v431, %v704
      %v706 = vand.u32 %v705, 4294901760
      %v707 = vsub.f32 %v705, %v706
      %v708 = vand.u32 %v707, 4294901760
      %709 = vmatmul.f32.gmra.mxu0 %v708
      %v710 = vpop.f32.mrf.mxu0
      %v711 = vadd.f32 0.0, %v710
      %712 = vdwg.mxu0
      %713 = vmatpush.msra.mxu0 0.0
      %714 = vmatpush.msra.mxu0 0.0
      %715 = vmatpush.msra.mxu0 0.0
      %716 = vmatpush.msra.mxu0 0.0
      %717 = vmatpush.msra.mxu0 0.0
      %718 = vmatpush.msra.mxu0 0.0
      %719 = vmatpush.msra.mxu0 0.0
      %720 = vmatpush.msra.mxu0 0.0
      %v721 = vand.u32 %v679, 4294901760
      %v722 = vsub.f32 %v679, %v721
      %v723 = vand.u32 %v722, 4294901760
      %v724 = vsub.f32 %v722, %v723
      %v725 = vand.u32 %v724, 4294901760
      %726 = vmatpush.msra.mxu0 %v725
      %v727 = vand.u32 %v678, 4294901760
      %v728 = vsub.f32 %v678, %v727
      %v729 = vand.u32 %v728, 4294901760
      %v730 = vsub.f32 %v728, %v729
      %v731 = vand.u32 %v730, 4294901760
      %732 = vmatpush.msra.mxu0 %v731
      %v733 = vand.u32 %v677, 4294901760
      %v734 = vsub.f32 %v677, %v733
      %v735 = vand.u32 %v734, 4294901760
      %v736 = vsub.f32 %v734, %v735
      %v737 = vand.u32 %v736, 4294901760
      %738 = vmatpush.msra.mxu0 %v737
      %v739 = vand.u32 %v676, 4294901760
      %v740 = vsub.f32 %v676, %v739
      %v741 = vand.u32 %v740, 4294901760
      %v742 = vsub.f32 %v740, %v741
      %v743 = vand.u32 %v742, 4294901760
      %744 = vmatpush.msra.mxu0 %v743
      %v745 = vand.u32 %v675, 4294901760
      %v746 = vsub.f32 %v675, %v745
      %v747 = vand.u32 %v746, 4294901760
      %v748 = vsub.f32 %v746, %v747
      %v749 = vand.u32 %v748, 4294901760
      %750 = vmatpush.msra.mxu0 %v749
      %v751 = vand.u32 %v674, 4294901760
      %v752 = vsub.f32 %v674, %v751
      %v753 = vand.u32 %v752, 4294901760
      %v754 = vsub.f32 %v752, %v753
      %v755 = vand.u32 %v754, 4294901760
      %756 = vmatpush.msra.mxu0 %v755
      %v757 = vand.u32 %v673, 4294901760
      %v758 = vsub.f32 %v673, %v757
      %v759 = vand.u32 %v758, 4294901760
      %v760 = vsub.f32 %v758, %v759
      %v761 = vand.u32 %v760, 4294901760
      %762 = vmatpush.msra.mxu0 %v761
      %v763 = vand.u32 %v672, 4294901760
      %v764 = vsub.f32 %v672, %v763
      %v765 = vand.u32 %v764, 4294901760
      %v766 = vsub.f32 %v764, %v765
      %v767 = vand.u32 %v766, 4294901760
      %768 = vmatpush.msra.mxu0 %v767
      %v769 = vand.u32 %v431, 4294901760
      %770 = vmatmul.f32.gmra.mxu0 %v769
      %v771 = vpop.f32.mrf.mxu0
      %v772 = vadd.f32 %v711, %v771
      %773 = vdwg.mxu0
      %774 = vmatpush.msra.mxu0 0.0
      %775 = vmatpush.msra.mxu0 0.0
      %776 = vmatpush.msra.mxu0 0.0
      %777 = vmatpush.msra.mxu0 0.0
      %778 = vmatpush.msra.mxu0 0.0
      %779 = vmatpush.msra.mxu0 0.0
      %780 = vmatpush.msra.mxu0 0.0
      %781 = vmatpush.msra.mxu0 0.0
      %v782 = vand.u32 %v679, 4294901760
      %v783 = vsub.f32 %v679, %v782
      %784 = vmatpush.msra.mxu0 %v783
      %v785 = vand.u32 %v678, 4294901760
      %v786 = vsub.f32 %v678, %v785
      %787 = vmatpush.msra.mxu0 %v786
      %v788 = vand.u32 %v677, 4294901760
      %v789 = vsub.f32 %v677, %v788
      %790 = vmatpush.msra.mxu0 %v789
      %v791 = vand.u32 %v676, 4294901760
      %v792 = vsub.f32 %v676, %v791
      %793 = vmatpush.msra.mxu0 %v792
      %v794 = vand.u32 %v675, 4294901760
      %v795 = vsub.f32 %v675, %v794
      %796 = vmatpush.msra.mxu0 %v795
      %v797 = vand.u32 %v674, 4294901760
      %v798 = vsub.f32 %v674, %v797
      %799 = vmatpush.msra.mxu0 %v798
      %v800 = vand.u32 %v673, 4294901760
      %v801 = vsub.f32 %v673, %v800
      %802 = vmatpush.msra.mxu0 %v801
      %v803 = vand.u32 %v672, 4294901760
      %v804 = vsub.f32 %v672, %v803
      %805 = vmatpush.msra.mxu0 %v804
      %v806 = vand.u32 %v431, 4294901760
      %v807 = vsub.f32 %v431, %v806
      %808 = vmatmul.f32.gmra.mxu0 %v807
      %v809 = vpop.f32.mrf.mxu0
      %v810 = vadd.f32 %v772, %v809
      %811 = vdwg.mxu0
      %812 = vmatpush.msra.mxu0 0.0
      %813 = vmatpush.msra.mxu0 0.0
      %814 = vmatpush.msra.mxu0 0.0
      %815 = vmatpush.msra.mxu0 0.0
      %816 = vmatpush.msra.mxu0 0.0
      %817 = vmatpush.msra.mxu0 0.0
      %818 = vmatpush.msra.mxu0 0.0
      %819 = vmatpush.msra.mxu0 0.0
      %v820 = vand.u32 %v679, 4294901760
      %821 = vmatpush.msra.mxu0 %v820
      %v822 = vand.u32 %v678, 4294901760
      %823 = vmatpush.msra.mxu0 %v822
      %v824 = vand.u32 %v677, 4294901760
      %825 = vmatpush.msra.mxu0 %v824
      %v826 = vand.u32 %v676, 4294901760
      %827 = vmatpush.msra.mxu0 %v826
      %v828 = vand.u32 %v675, 4294901760
      %829 = vmatpush.msra.mxu0 %v828
      %v830 = vand.u32 %v674, 4294901760
      %831 = vmatpush.msra.mxu0 %v830
      %v832 = vand.u32 %v673, 4294901760
      %833 = vmatpush.msra.mxu0 %v832
      %v834 = vand.u32 %v672, 4294901760
      %835 = vmatpush.msra.mxu0 %v834
      %v836 = vand.u32 %v431, 4294901760
      %v837 = vsub.f32 %v431, %v836
      %v838 = vand.u32 %v837, 4294901760
      %839 = vmatmul.f32.gmra.mxu0 %v838
      %v840 = vpop.f32.mrf.mxu0
      %v841 = vadd.f32 %v810, %v840
      %842 = vdwg.mxu0
      %843 = vmatpush.msra.mxu0 0.0
      %844 = vmatpush.msra.mxu0 0.0
      %845 = vmatpush.msra.mxu0 0.0
      %846 = vmatpush.msra.mxu0 0.0
      %847 = vmatpush.msra.mxu0 0.0
      %848 = vmatpush.msra.mxu0 0.0
      %849 = vmatpush.msra.mxu0 0.0
      %850 = vmatpush.msra.mxu0 0.0
      %v851 = vand.u32 %v679, 4294901760
      %v852 = vsub.f32 %v679, %v851
      %v853 = vand.u32 %v852, 4294901760
      %854 = vmatpush.msra.mxu0 %v853
      %v855 = vand.u32 %v678, 4294901760
      %v856 = vsub.f32 %v678, %v855
      %v857 = vand.u32 %v856, 4294901760
      %858 = vmatpush.msra.mxu0 %v857
      %v859 = vand.u32 %v677, 4294901760
      %v860 = vsub.f32 %v677, %v859
      %v861 = vand.u32 %v860, 4294901760
      %862 = vmatpush.msra.mxu0 %v861
      %v863 = vand.u32 %v676, 4294901760
      %v864 = vsub.f32 %v676, %v863
      %v865 = vand.u32 %v864, 4294901760
      %866 = vmatpush.msra.mxu0 %v865
      %v867 = vand.u32 %v675, 4294901760
      %v868 = vsub.f32 %v675, %v867
      %v869 = vand.u32 %v868, 4294901760
      %870 = vmatpush.msra.mxu0 %v869
      %v871 = vand.u32 %v674, 4294901760
      %v872 = vsub.f32 %v674, %v871
      %v873 = vand.u32 %v872, 4294901760
      %874 = vmatpush.msra.mxu0 %v873
      %v875 = vand.u32 %v673, 4294901760
      %v876 = vsub.f32 %v673, %v875
      %v877 = vand.u32 %v876, 4294901760
      %878 = vmatpush.msra.mxu0 %v877
      %v879 = vand.u32 %v672, 4294901760
      %v880 = vsub.f32 %v672, %v879
      %v881 = vand.u32 %v880, 4294901760
      %882 = vmatpush.msra.mxu0 %v881
      %v883 = vand.u32 %v431, 4294901760
      %884 = vmatmul.f32.gmra.mxu0 %v883
      %v885 = vpop.f32.mrf.mxu0
      %v886 = vadd.f32 %v841, %v885
      %887 = vdwg.mxu0
      %888 = vmatpush.msra.mxu0 0.0
      %889 = vmatpush.msra.mxu0 0.0
      %890 = vmatpush.msra.mxu0 0.0
      %891 = vmatpush.msra.mxu0 0.0
      %892 = vmatpush.msra.mxu0 0.0
      %893 = vmatpush.msra.mxu0 0.0
      %894 = vmatpush.msra.mxu0 0.0
      %895 = vmatpush.msra.mxu0 0.0
      %v896 = vand.u32 %v679, 4294901760
      %897 = vmatpush.msra.mxu0 %v896
      %v898 = vand.u32 %v678, 4294901760
      %899 = vmatpush.msra.mxu0 %v898
      %v900 = vand.u32 %v677, 4294901760
      %901 = vmatpush.msra.mxu0 %v900
      %v902 = vand.u32 %v676, 4294901760
      %903 = vmatpush.msra.mxu0 %v902
      %v904 = vand.u32 %v675, 4294901760
      %905 = vmatpush.msra.mxu0 %v904
      %v906 = vand.u32 %v674, 4294901760
      %907 = vmatpush.msra.mxu0 %v906
      %v908 = vand.u32 %v673, 4294901760
      %909 = vmatpush.msra.mxu0 %v908
      %v910 = vand.u32 %v672, 4294901760
      %911 = vmatpush.msra.mxu0 %v910
      %v912 = vand.u32 %v431, 4294901760
      %913 = vmatmul.f32.gmra.mxu0 %v912
      %v914 = vpop.f32.mrf.mxu0
      %v915 = vadd.f32 %v886, %v914
      %916 = vdwg.mxu0
      %v917 = vld [vmem:[%s5] sm:$0x3]
      %v918 = vld [vmem:[%s6] sm:$0x1]
      %v920 = vperm.slane %v918, 0
      %vm922 = vcmask 15360
      %v924 = vsel %vm922, %v915, 0
      %vm926 = vcmask 1041408
      %v928 = vsel %vm926, %v917, 0
      %930 = vmatpush.msra.mxu0 0.0
      %931 = vmatpush.msra.mxu0 0.0
      %932 = vmatpush.msra.mxu0 0.0
      %933 = vmatpush.msra.mxu0 0.0
      %934 = vmatpush.msra.mxu0 0.0
      %935 = vmatpush.msra.mxu0 0.0
      %936 = vmatpush.msra.mxu0 0.0
      %937 = vmatpush.msra.mxu0 0.0
      %938 = vmatpush.msra.mxu0 0.0
      %939 = vmatpush.msra.mxu0 0.0
      %940 = vmatpush.msra.mxu0 0.0
      %941 = vmatpush.msra.mxu0 0.0
      %942 = vmatpush.msra.mxu0 0.0
      %943 = vmatpush.msra.mxu0 0.0
      %944 = vmatpush.msra.mxu0 0.0
      %v945 = vand.u32 %v928, 4294901760
      %946 = vmatpush.msra.mxu0 %v945
      %v947 = vand.u32 %v924, 4294901760
      %v948 = vsub.f32 %v924, %v947
      %v949 = vand.u32 %v948, 4294901760
      %v950 = vsub.f32 %v948, %v949
      %v951 = vand.u32 %v950, 4294901760
      %952 = vmatmul.f32.gmra.mxu0 %v951
      %v953 = vpop.f32.mrf.mxu0
      %v954 = vadd.f32 %v920, %v953
      %955 = vdwg.mxu0
      %956 = vmatpush.msra.mxu0 0.0
      %957 = vmatpush.msra.mxu0 0.0
      %958 = vmatpush.msra.mxu0 0.0
      %959 = vmatpush.msra.mxu0 0.0
      %960 = vmatpush.msra.mxu0 0.0
      %961 = vmatpush.msra.mxu0 0.0
      %962 = vmatpush.msra.mxu0 0.0
      %963 = vmatpush.msra.mxu0 0.0
      %964 = vmatpush.msra.mxu0 0.0
      %965 = vmatpush.msra.mxu0 0.0
      %966 = vmatpush.msra.mxu0 0.0
      %967 = vmatpush.msra.mxu0 0.0
      %968 = vmatpush.msra.mxu0 0.0
      %969 = vmatpush.msra.mxu0 0.0
      %970 = vmatpush.msra.mxu0 0.0
      %v971 = vand.u32 %v928, 4294901760
      %v972 = vsub.f32 %v928, %v971
      %v973 = vand.u32 %v972, 4294901760
      %v974 = vsub.f32 %v972, %v973
      %v975 = vand.u32 %v974, 4294901760
      %976 = vmatpush.msra.mxu0 %v975
      %v977 = vand.u32 %v924, 4294901760
      %978 = vmatmul.f32.gmra.mxu0 %v977
      %v979 = vpop.f32.mrf.mxu0
      %v980 = vadd.f32 %v954, %v979
      %981 = vdwg.mxu0
      %982 = vmatpush.msra.mxu0 0.0
      %983 = vmatpush.msra.mxu0 0.0
      %984 = vmatpush.msra.mxu0 0.0
      %985 = vmatpush.msra.mxu0 0.0
      %986 = vmatpush.msra.mxu0 0.0
      %987 = vmatpush.msra.mxu0 0.0
      %988 = vmatpush.msra.mxu0 0.0
      %989 = vmatpush.msra.mxu0 0.0
      %990 = vmatpush.msra.mxu0 0.0
      %991 = vmatpush.msra.mxu0 0.0
      %992 = vmatpush.msra.mxu0 0.0
      %993 = vmatpush.msra.mxu0 0.0
      %994 = vmatpush.msra.mxu0 0.0
      %995 = vmatpush.msra.mxu0 0.0
      %996 = vmatpush.msra.mxu0 0.0
      %v997 = vand.u32 %v928, 4294901760
      %v998 = vsub.f32 %v928, %v997
      %999 = vmatpush.msra.mxu0 %v998
      %v1000 = vand.u32 %v924, 4294901760
      %v1001 = vsub.f32 %v924, %v1000
      %1002 = vmatmul.f32.gmra.mxu0 %v1001
      %v1003 = vpop.f32.mrf.mxu0
      %v1004 = vadd.f32 %v980, %v1003
      %1005 = vdwg.mxu0
      %1006 = vmatpush.msra.mxu0 0.0
      %1007 = vmatpush.msra.mxu0 0.0
      %1008 = vmatpush.msra.mxu0 0.0
      %1009 = vmatpush.msra.mxu0 0.0
      %1010 = vmatpush.msra.mxu0 0.0
      %1011 = vmatpush.msra.mxu0 0.0
      %1012 = vmatpush.msra.mxu0 0.0
      %1013 = vmatpush.msra.mxu0 0.0
      %1014 = vmatpush.msra.mxu0 0.0
      %1015 = vmatpush.msra.mxu0 0.0
      %1016 = vmatpush.msra.mxu0 0.0
      %1017 = vmatpush.msra.mxu0 0.0
      %1018 = vmatpush.msra.mxu0 0.0
      %1019 = vmatpush.msra.mxu0 0.0
      %1020 = vmatpush.msra.mxu0 0.0
      %v1021 = vand.u32 %v928, 4294901760
      %1022 = vmatpush.msra.mxu0 %v1021
      %v1023 = vand.u32 %v924, 4294901760
      %v1024 = vsub.f32 %v924, %v1023
      %v1025 = vand.u32 %v1024, 4294901760
      %1026 = vmatmul.f32.gmra.mxu0 %v1025
      %v1027 = vpop.f32.mrf.mxu0
      %v1028 = vadd.f32 %v1004, %v1027
      %1029 = vdwg.mxu0
      %1030 = vmatpush.msra.mxu0 0.0
      %1031 = vmatpush.msra.mxu0 0.0
      %1032 = vmatpush.msra.mxu0 0.0
      %1033 = vmatpush.msra.mxu0 0.0
      %1034 = vmatpush.msra.mxu0 0.0
      %1035 = vmatpush.msra.mxu0 0.0
      %1036 = vmatpush.msra.mxu0 0.0
      %1037 = vmatpush.msra.mxu0 0.0
      %1038 = vmatpush.msra.mxu0 0.0
      %1039 = vmatpush.msra.mxu0 0.0
      %1040 = vmatpush.msra.mxu0 0.0
      %1041 = vmatpush.msra.mxu0 0.0
      %1042 = vmatpush.msra.mxu0 0.0
      %1043 = vmatpush.msra.mxu0 0.0
      %1044 = vmatpush.msra.mxu0 0.0
      %v1045 = vand.u32 %v928, 4294901760
      %v1046 = vsub.f32 %v928, %v1045
      %v1047 = vand.u32 %v1046, 4294901760
      %1048 = vmatpush.msra.mxu0 %v1047
      %v1049 = vand.u32 %v924, 4294901760
      %1050 = vmatmul.f32.gmra.mxu0 %v1049
      %v1051 = vpop.f32.mrf.mxu0
      %v1052 = vadd.f32 %v1028, %v1051
      %1053 = vdwg.mxu0
      %1054 = vmatpush.msra.mxu0 0.0
      %1055 = vmatpush.msra.mxu0 0.0
      %1056 = vmatpush.msra.mxu0 0.0
      %1057 = vmatpush.msra.mxu0 0.0
      %1058 = vmatpush.msra.mxu0 0.0
      %1059 = vmatpush.msra.mxu0 0.0
      %1060 = vmatpush.msra.mxu0 0.0
      %1061 = vmatpush.msra.mxu0 0.0
      %1062 = vmatpush.msra.mxu0 0.0
      %1063 = vmatpush.msra.mxu0 0.0
      %1064 = vmatpush.msra.mxu0 0.0
      %1065 = vmatpush.msra.mxu0 0.0
      %1066 = vmatpush.msra.mxu0 0.0
      %1067 = vmatpush.msra.mxu0 0.0
      %1068 = vmatpush.msra.mxu0 0.0
      %v1069 = vand.u32 %v928, 4294901760
      %1070 = vmatpush.msra.mxu0 %v1069
      %v1071 = vand.u32 %v924, 4294901760
      %1072 = vmatmul.f32.gmra.mxu0 %v1071
      %v1073 = vpop.f32.mrf.mxu0
      %v1074 = vadd.f32 %v1052, %v1073
      %1075 = vdwg.mxu0
      %vm1076 = vcmp.gt.f32.partialorder %v1074, 20.0
      %v1077 = vmin.f32 %v1074, 20.0
      %v1078 = vmul.f32 %v1077, 1.442695
      %v1079 = vpow.pop %v1078
      %v1080 = vadd.f32 %v1079, 1.0
      %v1081 = vlog2.pop %v1080
      %v1082 = vmul.f32 %v1081, 0.6931472
      %v1083 = vmul.f32 -0.5, %v1079
      %v1084 = vadd.f32 %v1083, 1.0
      %v1085 = vmul.f32 %v1084, %v1079
      %v1086 = vand.u32 2147483647, %v1079
      %vm1087 = vcmp.lt.f32.partialorder %v1086, 0.0004427343
      %v1088 = vsel %vm1087, %v1085, %v1082
      %v1089 = vsel %vm1076, %v1074, %v1088
      %1090 = vst.msk [vmem:[%s348] sm:$0xff] %vm420, %v1089
      %p1091 = scmp.lt.s32.totalorder %s21, 1
      %s1092 = scalar_select %p1091, %s21, 1
      %s1093 = smul.addr %s1092, 8
      %s1094 = scalar_lea.vmem %s7, %s1093
      %p1095 = scmp.lt.s32.totalorder %s21, 1
      %s1096 = scalar_select %p1095, %s21, 1
      %s1097 = smul.addr %s1096, 8
      %s1098 = scalar_lea.vmem %s8, %s1097
      %p1099 = scmp.lt.s32.totalorder %s21, 1
      %s1100 = scalar_select %p1099, %s21, 1
      %s1101 = smul.addr %s1100, 8
      %s1102 = scalar_lea.vmem %s9, %s1101
      // Predicated region
      $region49: #{network_forward.12} parent=47 // pred_check
        %p1103 = pneg %p191
      $region50: #{network_forward.12} parent=47 // pred_check_branch
        %1105 = sbr.rel (%p1103) target = $region52
      $region51: #{network_forward.12} parent=47 // pred_region
        _
      $region52: #{network_forward.12} parent=47 // pred_fallthru
        _
      // Predicated region
      $region53: #{network_forward.12} parent=47 // pred_check
        %p1106 = pneg %p217
      $region54: #{network_forward.12} parent=47 // pred_check_branch
        %1108 = sbr.rel (%p1106) target = $region56
      $region55: #{network_forward.12} parent=47 // pred_region
        _
      $region56: #{network_forward.12} parent=47 // pred_fallthru
        _
      // Predicated region
      $region57: #{network_forward.12} parent=47 // pred_check
        %p1109 = pneg %p243
      $region58: #{network_forward.12} parent=47 // pred_check_branch
        %1111 = sbr.rel (%p1109) target = $region60
      $region59: #{network_forward.12} parent=47 // pred_region
        _
      $region60: #{network_forward.12} parent=47 // pred_fallthru
        _
    $region48: #{network_forward.12} parent=5 // pred_fallthru
      _
    %p1112 = scmp.le.s32.totalorder 2, %s16
    // Predicated region
    $region61: #{network_forward.12} parent=5 // pred_check
      %p1113 = pneg %p1112
    $region62: #{network_forward.12} parent=5 // pred_check_branch
      %1115 = sbr.rel (%p1113) target = $region64
    $region63: #{network_forward.12} parent=5 // pred_region
      %s1116 = ssub.s32 %s16, 2
      // Predicated region
      $region65: #{network_forward.12} parent=63 // pred_check
        %p1117 = pneg %p197
      $region66: #{network_forward.12} parent=63 // pred_check_branch
        %1119 = sbr.rel (%p1117) target = $region68
      $region67: #{network_forward.12} parent=63 // pred_region
        %p1120 = scmp.lt.s32.totalorder %s22, 1
        %s1121 = scalar_select %p1120, %s22, 1
        %s1122 = smul.addr %s1121, 8
        %s1123 = scalar_lea.vmem %s7, %s1122
      $region68: #{network_forward.12} parent=63 // pred_fallthru
        _
      // Predicated region
      $region69: #{network_forward.12} parent=63 // pred_check
        %p1124 = pneg %p223
      $region70: #{network_forward.12} parent=63 // pred_check_branch
        %1126 = sbr.rel (%p1124) target = $region72
      $region71: #{network_forward.12} parent=63 // pred_region
        %p1127 = scmp.lt.s32.totalorder %s22, 1
        %s1128 = scalar_select %p1127, %s22, 1
        %s1129 = smul.addr %s1128, 8
        %s1130 = scalar_lea.vmem %s8, %s1129
      $region72: #{network_forward.12} parent=63 // pred_fallthru
        _
      // Predicated region
      $region73: #{network_forward.12} parent=63 // pred_check
        %p1131 = pneg %p249
      $region74: #{network_forward.12} parent=63 // pred_check_branch
        %1133 = sbr.rel (%p1131) target = $region76
      $region75: #{network_forward.12} parent=63 // pred_region
        %p1134 = scmp.lt.s32.totalorder %s22, 1
        %s1135 = scalar_select %p1134, %s22, 1
        %s1136 = smul.addr %s1135, 8
        %s1137 = scalar_lea.vmem %s9, %s1136
      $region76: #{network_forward.12} parent=63 // pred_fallthru
        _
    $region64: #{network_forward.12} parent=5 // pred_fallthru
      _
  $region6: #{network_forward.12} parent=0 // loop_footer
    %s20 = sadd.s32 1, %s16
  $region7: #{network_forward.12} parent=0 // loop_footer_branch
    %15 = sbr.rel target = $region3
  $region8: #{network_forward.12} parent=0 // loop_exit
    _

// kernel: network_forward.13
$region0: #{network_forward.13}
  #allocation0 [shape = 'u32[]', space=smem, size = 0x4, offset = 0x4, fixed_abs, tag = 'smem constant byte address 0x4 - core index']
  #allocation1 [shape = 'u32[72,128]{1,0:T(1,128)}', space=vmem, size = 0x9000, scoped, tag = 'internal scratch']
  #allocation2 [shape = 'f32[2,16,64]{2,1,0:T(8,128)}', space=vmem, size = 0x4000, scoped, tag = 'scratch operand']
  #allocation3 [shape = 'f32[16,64]{1,0:T(8,128)}', space=vmem, size = 0x2000, scoped, tag = 'scratch operand']
  %s0 = inlined_call_operand.vmem [shape: f32[2,8,64], index: 0, kind: input, shape index: {}]
  %s1 = inlined_call_operand.vmem [shape: f32[2,8,64], index: 1, kind: input, shape index: {}]
  %s2 = inlined_call_operand.vmem [shape: f32[2,8,32], index: 2, kind: input, shape index: {}]
  %s3 = inlined_call_operand.vmem [shape: f32[16,64], index: 3, kind: input, shape index: {}]
  %s4 = inlined_call_operand.vmem [shape: f32[1,64], index: 4, kind: input, shape index: {}]
  %s5 = inlined_call_operand.vmem [shape: f32[2,8,64], index: 5, kind: output, shape index: {}]
  %s6 = sld [smem:[#allocation0]]
  $region34: #{network_forward.13} parent=0
    _
  %s8 = ssub.s32 1, %s6
  %s9 = scalar_select 0, %s8, %s6
  // Predicated region
  $region2: #{network_forward.13} parent=0 // pred_check
    _
  $region3: #{network_forward.13} parent=0 // pred_check_branch
    %11 = sbr.rel (0) target = $region5
  $region4: #{network_forward.13} parent=0 // pred_region
    _
  $region5: #{network_forward.13} parent=0 // pred_fallthru
    _
  // Predicated region
  $region6: #{network_forward.13} parent=0 // pred_check
    _
  $region7: #{network_forward.13} parent=0 // pred_check_branch
    %13 = sbr.rel (0) target = $region9
  $region8: #{network_forward.13} parent=0 // pred_region
    _
  $region9: #{network_forward.13} parent=0 // pred_fallthru
    _
  // Predicated region
  $region10: #{network_forward.13} parent=0 // pred_check
    _
  $region11: #{network_forward.13} parent=0 // pred_check_branch
    %15 = sbr.rel (0) target = $region13
  $region12: #{network_forward.13} parent=0 // pred_region
    _
  $region13: #{network_forward.13} parent=0 // pred_fallthru
    _
  // Predicated region
  $region14: #{network_forward.13} parent=0 // pred_check
    _
  $region15: #{network_forward.13} parent=0 // pred_check_branch
    %17 = sbr.rel (0) target = $region17
  $region16: #{network_forward.13} parent=0 // pred_region
    _
  $region17: #{network_forward.13} parent=0 // pred_fallthru
    _
  // Predicated region
  $region18: #{network_forward.13} parent=0 // pred_check
    _
  $region19: #{network_forward.13} parent=0 // pred_check_branch
    %19 = sbr.rel (0) target = $region21
  $region20: #{network_forward.13} parent=0 // pred_region
    _
  $region21: #{network_forward.13} parent=0 // pred_fallthru
    _
  %p20 = scmp.eq.s32.totalorder 0, 0
  // Predicated region
  $region22: #{network_forward.13} parent=0 // pred_check
    %p21 = pneg %p20
  $region23: #{network_forward.13} parent=0 // pred_check_branch
    %23 = sbr.rel (%p21) target = $region25
  $region24: #{network_forward.13} parent=0 // pred_region
    %vm24 = vcmask 523264
    %25 = vst.msk [vmem:[#allocation2] sm:$0xff] %vm24, 0.0
    %26 = vst.msk [vmem:[#allocation2 + $0x8] sm:$0xff] %vm24, 0.0
    %27 = vst.msk [vmem:[#allocation2 + $0x10] sm:$0xff] %vm24, 0.0
    %28 = vst.msk [vmem:[#allocation2 + $0x18] sm:$0xff] %vm24, 0.0
    %v29 = vld [vmem:[%s3] sm:$0xff]
    %v30 = vld [vmem:[%s3 + $0x8] sm:$0xff]
    %v31 = vmul.f32 %v29, 1.442695
    %v32 = vpow.pop %v31
    %v33 = vmul.f32 %v30, 1.442695
    %v34 = vpow.pop %v33
    %v35 = vsub.f32 0.0, %v32
    %v36 = vsub.f32 0.0, %v34
    %37 = vst.msk [vmem:[#allocation3] sm:$0xff] %vm24, %v35
    %38 = vst.msk [vmem:[#allocation3 + $0x8] sm:$0xff] %vm24, %v36
  $region25: #{network_forward.13} parent=0 // pred_fallthru
    _
  %v39 = vld [vmem:[#allocation3] sm:$0xff]
  %v40 = vld [vmem:[#allocation3 + $0x8] sm:$0xff]
  %v41 = vld [vmem:[%s4] sm:$0x1]
  %v42 = vld [vmem:[#allocation2] sm:$0xff]
  %v43 = vld [vmem:[#allocation2 + $0x8] sm:$0xff]
  %v44 = vld [vmem:[#allocation2 + $0x10] sm:$0xff]
  %v45 = vld [vmem:[#allocation2 + $0x18] sm:$0xff]
  %v46 = vld [vmem:[%s0] sm:$0x1]
  %v47 = vld [vmem:[%s0 + $0x8] sm:$0x1]
  %v48 = vld [vmem:[%s1] sm:$0x1]
  %v49 = vld [vmem:[%s1 + $0x8] sm:$0x1]
  %v50 = vld [vmem:[%s2] sm:$0x1]
  %v51 = vld [vmem:[%s2 + $0x8] sm:$0x1]
  %v52 = vperm.slane %v48, 0
  %v53 = vperm.slane %v49, 0
  %v54 = vmul.f32 %v52, %v39
  %v55 = vmul.f32 %v52, %v40
  %v56 = vmul.f32 %v53, %v39
  %v57 = vmul.f32 %v53, %v40
  %v58 = vmul.f32 %v54, 1.442695
  %v59 = vpow.pop %v58
  %v60 = vmul.f32 %v55, 1.442695
  %v61 = vpow.pop %v60
  %v62 = vmul.f32 %v56, 1.442695
  %v63 = vpow.pop %v62
  %v64 = vmul.f32 %v57, 1.442695
  %v65 = vpow.pop %v64
  %v66 = vmul.f32 %v48, %v46
  %v67 = vmul.f32 %v49, %v47
  %v68 = vperm.slane %v50, 0
  %v69 = vlaneseq
  %v70 = vshrl.u32 %v69, 7
  %72 = vset.pattern.permute.xlu0 %v70
  %73 = vperm.xlu0 %72, %v68
  %v74 = vpop.permute.xlu0 %73
  %v75 = vlaneseq
  %v76 = vshrl.u32 %v75, 7
  %v77 = vadd.s32 %v76, 8
  %78 = vset.pattern.permute.xlu0 %v77
  %79 = vperm.xlu0 %78, %v68
  %v80 = vpop.permute.xlu0 %79
  %v81 = vperm.slane %v51, 0
  %v82 = vlaneseq
  %v83 = vshrl.u32 %v82, 7
  %85 = vset.pattern.permute.xlu0 %v83
  %86 = vperm.xlu0 %85, %v81
  %v87 = vpop.permute.xlu0 %86
  %v88 = vlaneseq
  %v89 = vshrl.u32 %v88, 7
  %v90 = vadd.s32 %v89, 8
  %91 = vset.pattern.permute.xlu0 %v90
  %92 = vperm.xlu0 %91, %v81
  %v93 = vpop.permute.xlu0 %92
  %v94 = vperm.slane %v66, 0
  %v95 = vperm.slane %v67, 0
  %v96 = vmul.f32 %v94, %v74
  %v97 = vmul.f32 %v94, %v80
  %v98 = vmul.f32 %v95, %v87
  %v99 = vmul.f32 %v95, %v93
  %v100 = vmul.f32 %v59, %v42
  %v101 = vmul.f32 %v61, %v43
  %v102 = vmul.f32 %v63, %v44
  %v103 = vmul.f32 %v65, %v45
  %v104 = vadd.f32 %v100, %v96
  %v105 = vadd.f32 %v101, %v97
  %v106 = vadd.f32 %v102, %v98
  %v107 = vadd.f32 %v103, %v99
  %v108 = vlaneseq
  %v109 = vshrl.u32 %v108, 7
  %v110 = vadd.s32 %v109, 16
  %111 = vset.pattern.permute.xlu0 %v110
  %112 = vperm.xlu0 %111, %v68
  %v113 = vpop.permute.xlu0 %112
  %v114 = vlaneseq
  %v115 = vshrl.u32 %v114, 7
  %v116 = vadd.s32 %v115, 24
  %117 = vset.pattern.permute.xlu0 %v116
  %118 = vperm.xlu0 %117, %v68
  %v119 = vpop.permute.xlu0 %118
  %v120 = vlaneseq
  %v121 = vshrl.u32 %v120, 7
  %v122 = vadd.s32 %v121, 16
  %123 = vset.pattern.permute.xlu0 %v122
  %124 = vperm.xlu0 %123, %v81
  %v125 = vpop.permute.xlu0 %124
  %v126 = vlaneseq
  %v127 = vshrl.u32 %v126, 7
  %v128 = vadd.s32 %v127, 24
  %129 = vset.pattern.permute.xlu0 %v128
  %130 = vperm.xlu0 %129, %v81
  %v131 = vpop.permute.xlu0 %130
  %v132 = vmul.f32 %v104, %v113
  %v133 = vmul.f32 %v105, %v119
  %v134 = vmul.f32 %v106, %v125
  %v135 = vmul.f32 %v107, %v131
  %vm136 = vcmask 523264
  %v137 = vsel %vm136, %v132, 0.0
  %v138 = vsel %vm136, %v133, 0.0
  %v139 = vadd.f32 %v137, %v138
  %v140 = vrot.slane %v139, 4
  %v141 = vadd.f32 %v139, %v140
  %v142 = vrot.slane %v141, 2
  %v143 = vadd.f32 %v141, %v142
  %v144 = vrot.slane %v143, 1
  %v145 = vadd.f32 %v143, %v144
  %v146 = vsel %vm136, %v134, 0.0
  %v147 = vsel %vm136, %v135, 0.0
  %v148 = vadd.f32 %v146, %v147
  %v149 = vrot.slane %v148, 4
  %v150 = vadd.f32 %v148, %v149
  %v151 = vrot.slane %v150, 2
  %v152 = vadd.f32 %v150, %v151
  %v153 = vrot.slane %v152, 1
  %v154 = vadd.f32 %v152, %v153
  %v156 = vperm.slane %v41, 0
  %v158 = vmul.f32 %v46, %v156
  %v159 = vmul.f32 %v47, %v156
  %v160 = vadd.f32 %v145, %v158
  %v161 = vadd.f32 %v154, %v159
  %vm162 = vcmask 516096
  %163 = vst.msk [vmem:[%s5] sm:$0x1] %vm162, %v160
  %164 = vst.msk [vmem:[%s5 + $0x8] sm:$0x1] %vm162, %v161
  %v165 = vld [vmem:[%s0 + $0x1] sm:$0x1]
  %v166 = vld [vmem:[%s0 + $0x9] sm:$0x1]
  %v167 = vld [vmem:[%s1 + $0x1] sm:$0x1]
  %v168 = vld [vmem:[%s1 + $0x9] sm:$0x1]
  %v169 = vld [vmem:[%s2 + $0x1] sm:$0x1]
  %v170 = vld [vmem:[%s2 + $0x9] sm:$0x1]
  %v171 = vperm.slane %v167, 0
  %v172 = vperm.slane %v168, 0
  %v173 = vmul.f32 %v171, %v39
  %v174 = vmul.f32 %v171, %v40
  %v175 = vmul.f32 %v172, %v39
  %v176 = vmul.f32 %v172, %v40
  %v177 = vmul.f32 %v173, 1.442695
  %v178 = vpow.pop %v177
  %v179 = vmul.f32 %v174, 1.442695
  %v180 = vpow.pop %v179
  %v181 = vmul.f32 %v175, 1.442695
  %v182 = vpow.pop %v181
  %v183 = vmul.f32 %v176, 1.442695
  %v184 = vpow.pop %v183
  %v185 = vmul.f32 %v167, %v165
  %v186 = vmul.f32 %v168, %v166
  %v187 = vperm.slane %v169, 0
  %v188 = vlaneseq
  %v189 = vshrl.u32 %v188, 7
  %191 = vset.pattern.permute.xlu0 %v189
  %192 = vperm.xlu0 %191, %v187
  %v193 = vpop.permute.xlu0 %192
  %v194 = vlaneseq
  %v195 = vshrl.u32 %v194, 7
  %v196 = vadd.s32 %v195, 8
  %197 = vset.pattern.permute.xlu0 %v196
  %198 = vperm.xlu0 %197, %v187
  %v199 = vpop.permute.xlu0 %198
  %v200 = vperm.slane %v170, 0
  %v201 = vlaneseq
  %v202 = vshrl.u32 %v201, 7
  %204 = vset.pattern.permute.xlu0 %v202
  %205 = vperm.xlu0 %204, %v200
  %v206 = vpop.permute.xlu0 %205
  %v207 = vlaneseq
  %v208 = vshrl.u32 %v207, 7
  %v209 = vadd.s32 %v208, 8
  %210 = vset.pattern.permute.xlu0 %v209
  %211 = vperm.xlu0 %210, %v200
  %v212 = vpop.permute.xlu0 %211
  %v213 = vperm.slane %v185, 0
  %v214 = vperm.slane %v186, 0
  %v215 = vmul.f32 %v213, %v193
  %v216 = vmul.f32 %v213, %v199
  %v217 = vmul.f32 %v214, %v206
  %v218 = vmul.f32 %v214, %v212
  %v219 = vmul.f32 %v178, %v104
  %v220 = vmul.f32 %v180, %v105
  %v221 = vmul.f32 %v182, %v106
  %v222 = vmul.f32 %v184, %v107
  %v223 = vadd.f32 %v219, %v215
  %v224 = vadd.f32 %v220, %v216
  %v225 = vadd.f32 %v221, %v217
  %v226 = vadd.f32 %v222, %v218
  %v227 = vlaneseq
  %v228 = vshrl.u32 %v227, 7
  %v229 = vadd.s32 %v228, 16
  %230 = vset.pattern.permute.xlu0 %v229
  %231 = vperm.xlu0 %230, %v187
  %v232 = vpop.permute.xlu0 %231
  %v233 = vlaneseq
  %v234 = vshrl.u32 %v233, 7
  %v235 = vadd.s32 %v234, 24
  %236 = vset.pattern.permute.xlu0 %v235
  %237 = vperm.xlu0 %236, %v187
  %v238 = vpop.permute.xlu0 %237
  %v239 = vlaneseq
  %v240 = vshrl.u32 %v239, 7
  %v241 = vadd.s32 %v240, 16
  %242 = vset.pattern.permute.xlu0 %v241
  %243 = vperm.xlu0 %242, %v200
  %v244 = vpop.permute.xlu0 %243
  %v245 = vlaneseq
  %v246 = vshrl.u32 %v245, 7
  %v247 = vadd.s32 %v246, 24
  %248 = vset.pattern.permute.xlu0 %v247
  %249 = vperm.xlu0 %248, %v200
  %v250 = vpop.permute.xlu0 %249
  %v251 = vmul.f32 %v223, %v232
  %v252 = vmul.f32 %v224, %v238
  %v253 = vmul.f32 %v225, %v244
  %v254 = vmul.f32 %v226, %v250
  %v255 = vsel %vm136, %v251, 0.0
  %v256 = vsel %vm136, %v252, 0.0
  %v257 = vadd.f32 %v255, %v256
  %v258 = vrot.slane %v257, 4
  %v259 = vadd.f32 %v257, %v258
  %v260 = vrot.slane %v259, 2
  %v261 = vadd.f32 %v259, %v260
  %v262 = vrot.slane %v261, 1
  %v263 = vadd.f32 %v261, %v262
  %v264 = vsel %vm136, %v253, 0.0
  %v265 = vsel %vm136, %v254, 0.0
  %v266 = vadd.f32 %v264, %v265
  %v267 = vrot.slane %v266, 4
  %v268 = vadd.f32 %v266, %v267
  %v269 = vrot.slane %v268, 2
  %v270 = vadd.f32 %v268, %v269
  %v271 = vrot.slane %v270, 1
  %v272 = vadd.f32 %v270, %v271
  %v273 = vmul.f32 %v165, %v156
  %v274 = vmul.f32 %v166, %v156
  %v275 = vadd.f32 %v263, %v273
  %v276 = vadd.f32 %v272, %v274
  %277 = vst.msk [vmem:[%s5 + $0x1] sm:$0x1] %vm162, %v275
  %278 = vst.msk [vmem:[%s5 + $0x9] sm:$0x1] %vm162, %v276
  %v279 = vld [vmem:[%s0 + $0x2] sm:$0x1]
  %v280 = vld [vmem:[%s0 + $0xa] sm:$0x1]
  %v281 = vld [vmem:[%s1 + $0x2] sm:$0x1]
  %v282 = vld [vmem:[%s1 + $0xa] sm:$0x1]
  %v283 = vld [vmem:[%s2 + $0x2] sm:$0x1]
  %v284 = vld [vmem:[%s2 + $0xa] sm:$0x1]
  %v285 = vperm.slane %v281, 0
  %v286 = vperm.slane %v282, 0
  %v287 = vmul.f32 %v285, %v39
  %v288 = vmul.f32 %v285, %v40
  %v289 = vmul.f32 %v286, %v39
  %v290 = vmul.f32 %v286, %v40
  %v291 = vmul.f32 %v287, 1.442695
  %v292 = vpow.pop %v291
  %v293 = vmul.f32 %v288, 1.442695
  %v294 = vpow.pop %v293
  %v295 = vmul.f32 %v289, 1.442695
  %v296 = vpow.pop %v295
  %v297 = vmul.f32 %v290, 1.442695
  %v298 = vpow.pop %v297
  %v299 = vmul.f32 %v281, %v279
  %v300 = vmul.f32 %v282, %v280
  %v301 = vperm.slane %v283, 0
  %v302 = vlaneseq
  %v303 = vshrl.u32 %v302, 7
  %305 = vset.pattern.permute.xlu0 %v303
  %306 = vperm.xlu0 %305, %v301
  %v307 = vpop.permute.xlu0 %306
  %v308 = vlaneseq
  %v309 = vshrl.u32 %v308, 7
  %v310 = vadd.s32 %v309, 8
  %311 = vset.pattern.permute.xlu0 %v310
  %312 = vperm.xlu0 %311, %v301
  %v313 = vpop.permute.xlu0 %312
  %v314 = vperm.slane %v284, 0
  %v315 = vlaneseq
  %v316 = vshrl.u32 %v315, 7
  %318 = vset.pattern.permute.xlu0 %v316
  %319 = vperm.xlu0 %318, %v314
  %v320 = vpop.permute.xlu0 %319
  %v321 = vlaneseq
  %v322 = vshrl.u32 %v321, 7
  %v323 = vadd.s32 %v322, 8
  %324 = vset.pattern.permute.xlu0 %v323
  %325 = vperm.xlu0 %324, %v314
  %v326 = vpop.permute.xlu0 %325
  %v327 = vperm.slane %v299, 0
  %v328 = vperm.slane %v300, 0
  %v329 = vmul.f32 %v327, %v307
  %v330 = vmul.f32 %v327, %v313
  %v331 = vmul.f32 %v328, %v320
  %v332 = vmul.f32 %v328, %v326
  %v333 = vmul.f32 %v292, %v223
  %v334 = vmul.f32 %v294, %v224
  %v335 = vmul.f32 %v296, %v225
  %v336 = vmul.f32 %v298, %v226
  %v337 = vadd.f32 %v333, %v329
  %v338 = vadd.f32 %v334, %v330
  %v339 = vadd.f32 %v335, %v331
  %v340 = vadd.f32 %v336, %v332
  %v341 = vlaneseq
  %v342 = vshrl.u32 %v341, 7
  %v343 = vadd.s32 %v342, 16
  %344 = vset.pattern.permute.xlu0 %v343
  %345 = vperm.xlu0 %344, %v301
  %v346 = vpop.permute.xlu0 %345
  %v347 = vlaneseq
  %v348 = vshrl.u32 %v347, 7
  %v349 = vadd.s32 %v348, 24
  %350 = vset.pattern.permute.xlu0 %v349
  %351 = vperm.xlu0 %350, %v301
  %v352 = vpop.permute.xlu0 %351
  %v353 = vlaneseq
  %v354 = vshrl.u32 %v353, 7
  %v355 = vadd.s32 %v354, 16
  %356 = vset.pattern.permute.xlu0 %v355
  %357 = vperm.xlu0 %356, %v314
  %v358 = vpop.permute.xlu0 %357
  %v359 = vlaneseq
  %v360 = vshrl.u32 %v359, 7
  %v361 = vadd.s32 %v360, 24
  %362 = vset.pattern.permute.xlu0 %v361
  %363 = vperm.xlu0 %362, %v314
  %v364 = vpop.permute.xlu0 %363
  %v365 = vmul.f32 %v337, %v346
  %v366 = vmul.f32 %v338, %v352
  %v367 = vmul.f32 %v339, %v358
  %v368 = vmul.f32 %v340, %v364
  %v369 = vsel %vm136, %v365, 0.0
  %v370 = vsel %vm136, %v366, 0.0
  %v371 = vadd.f32 %v369, %v370
  %v372 = vrot.slane %v371, 4
  %v373 = vadd.f32 %v371, %v372
  %v374 = vrot.slane %v373, 2
  %v375 = vadd.f32 %v373, %v374
  %v376 = vrot.slane %v375, 1
  %v377 = vadd.f32 %v375, %v376
  %v378 = vsel %vm136, %v367, 0.0
  %v379 = vsel %vm136, %v368, 0.0
  %v380 = vadd.f32 %v378, %v379
  %v381 = vrot.slane %v380, 4
  %v382 = vadd.f32 %v380, %v381
  %v383 = vrot.slane %v382, 2
  %v384 = vadd.f32 %v382, %v383
  %v385 = vrot.slane %v384, 1
  %v386 = vadd.f32 %v384, %v385
  %v387 = vmul.f32 %v279, %v156
  %v388 = vmul.f32 %v280, %v156
  %v389 = vadd.f32 %v377, %v387
  %v390 = vadd.f32 %v386, %v388
  %391 = vst.msk [vmem:[%s5 + $0x2] sm:$0x1] %vm162, %v389
  %392 = vst.msk [vmem:[%s5 + $0xa] sm:$0x1] %vm162, %v390
  %v393 = vld [vmem:[%s0 + $0x3] sm:$0x1]
  %v394 = vld [vmem:[%s0 + $0xb] sm:$0x1]
  %v395 = vld [vmem:[%s1 + $0x3] sm:$0x1]
  %v396 = vld [vmem:[%s1 + $0xb] sm:$0x1]
  %v397 = vld [vmem:[%s2 + $0x3] sm:$0x1]
  %v398 = vld [vmem:[%s2 + $0xb] sm:$0x1]
  %v399 = vperm.slane %v395, 0
  %v400 = vperm.slane %v396, 0
  %v401 = vmul.f32 %v399, %v39
  %v402 = vmul.f32 %v399, %v40
  %v403 = vmul.f32 %v400, %v39
  %v404 = vmul.f32 %v400, %v40
  %v405 = vmul.f32 %v401, 1.442695
  %v406 = vpow.pop %v405
  %v407 = vmul.f32 %v402, 1.442695
  %v408 = vpow.pop %v407
  %v409 = vmul.f32 %v403, 1.442695
  %v410 = vpow.pop %v409
  %v411 = vmul.f32 %v404, 1.442695
  %v412 = vpow.pop %v411
  %v413 = vmul.f32 %v395, %v393
  %v414 = vmul.f32 %v396, %v394
  %v415 = vperm.slane %v397, 0
  %v416 = vlaneseq
  %v417 = vshrl.u32 %v416, 7
  %419 = vset.pattern.permute.xlu0 %v417
  %420 = vperm.xlu0 %419, %v415
  %v421 = vpop.permute.xlu0 %420
  %v422 = vlaneseq
  %v423 = vshrl.u32 %v422, 7
  %v424 = vadd.s32 %v423, 8
  %425 = vset.pattern.permute.xlu0 %v424
  %426 = vperm.xlu0 %425, %v415
  %v427 = vpop.permute.xlu0 %426
  %v428 = vperm.slane %v398, 0
  %v429 = vlaneseq
  %v430 = vshrl.u32 %v429, 7
  %432 = vset.pattern.permute.xlu0 %v430
  %433 = vperm.xlu0 %432, %v428
  %v434 = vpop.permute.xlu0 %433
  %v435 = vlaneseq
  %v436 = vshrl.u32 %v435, 7
  %v437 = vadd.s32 %v436, 8
  %438 = vset.pattern.permute.xlu0 %v437
  %439 = vperm.xlu0 %438, %v428
  %v440 = vpop.permute.xlu0 %439
  %v441 = vperm.slane %v413, 0
  %v442 = vperm.slane %v414, 0
  %v443 = vmul.f32 %v441, %v421
  %v444 = vmul.f32 %v441, %v427
  %v445 = vmul.f32 %v442, %v434
  %v446 = vmul.f32 %v442, %v440
  %v447 = vmul.f32 %v406, %v337
  %v448 = vmul.f32 %v408, %v338
  %v449 = vmul.f32 %v410, %v339
  %v450 = vmul.f32 %v412, %v340
  %v451 = vadd.f32 %v447, %v443
  %v452 = vadd.f32 %v448, %v444
  %v453 = vadd.f32 %v449, %v445
  %v454 = vadd.f32 %v450, %v446
  %v455 = vlaneseq
  %v456 = vshrl.u32 %v455, 7
  %v457 = vadd.s32 %v456, 16
  %458 = vset.pattern.permute.xlu0 %v457
  %459 = vperm.xlu0 %458, %v415
  %v460 = vpop.permute.xlu0 %459
  %v461 = vlaneseq
  %v462 = vshrl.u32 %v461, 7
  %v463 = vadd.s32 %v462, 24
  %464 = vset.pattern.permute.xlu0 %v463
  %465 = vperm.xlu0 %464, %v415
  %v466 = vpop.permute.xlu0 %465
  %v467 = vlaneseq
  %v468 = vshrl.u32 %v467, 7
  %v469 = vadd.s32 %v468, 16
  %470 = vset.pattern.permute.xlu0 %v469
  %471 = vperm.xlu0 %470, %v428
  %v472 = vpop.permute.xlu0 %471
  %v473 = vlaneseq
  %v474 = vshrl.u32 %v473, 7
  %v475 = vadd.s32 %v474, 24
  %476 = vset.pattern.permute.xlu0 %v475
  %477 = vperm.xlu0 %476, %v428
  %v478 = vpop.permute.xlu0 %477
  %v479 = vmul.f32 %v451, %v460
  %v480 = vmul.f32 %v452, %v466
  %v481 = vmul.f32 %v453, %v472
  %v482 = vmul.f32 %v454, %v478
  %v483 = vsel %vm136, %v479, 0.0
  %v484 = vsel %vm136, %v480, 0.0
  %v485 = vadd.f32 %v483, %v484
  %v486 = vrot.slane %v485, 4
  %v487 = vadd.f32 %v485, %v486
  %v488 = vrot.slane %v487, 2
  %v489 = vadd.f32 %v487, %v488
  %v490 = vrot.slane %v489, 1
  %v491 = vadd.f32 %v489, %v490
  %v492 = vsel %vm136, %v481, 0.0
  %v493 = vsel %vm136, %v482, 0.0
  %v494 = vadd.f32 %v492, %v493
  %v495 = vrot.slane %v494, 4
  %v496 = vadd.f32 %v494, %v495
  %v497 = vrot.slane %v496, 2
  %v498 = vadd.f32 %v496, %v497
  %v499 = vrot.slane %v498, 1
  %v500 = vadd.f32 %v498, %v499
  %v501 = vmul.f32 %v393, %v156
  %v502 = vmul.f32 %v394, %v156
  %v503 = vadd.f32 %v491, %v501
  %v504 = vadd.f32 %v500, %v502
  %505 = vst.msk [vmem:[%s5 + $0x3] sm:$0x1] %vm162, %v503
  %506 = vst.msk [vmem:[%s5 + $0xb] sm:$0x1] %vm162, %v504
  %v507 = vld [vmem:[%s0 + $0x4] sm:$0x1]
  %v508 = vld [vmem:[%s0 + $0xc] sm:$0x1]
  %v509 = vld [vmem:[%s1 + $0x4] sm:$0x1]
  %v510 = vld [vmem:[%s1 + $0xc] sm:$0x1]
  %v511 = vld [vmem:[%s2 + $0x4] sm:$0x1]
  %v512 = vld [vmem:[%s2 + $0xc] sm:$0x1]
  %v513 = vperm.slane %v509, 0
  %v514 = vperm.slane %v510, 0
  %v515 = vmul.f32 %v513, %v39
  %v516 = vmul.f32 %v513, %v40
  %v517 = vmul.f32 %v514, %v39
  %v518 = vmul.f32 %v514, %v40
  %v519 = vmul.f32 %v515, 1.442695
  %v520 = vpow.pop %v519
  %v521 = vmul.f32 %v516, 1.442695
  %v522 = vpow.pop %v521
  %v523 = vmul.f32 %v517, 1.442695
  %v524 = vpow.pop %v523
  %v525 = vmul.f32 %v518, 1.442695
  %v526 = vpow.pop %v525
  %v527 = vmul.f32 %v509, %v507
  %v528 = vmul.f32 %v510, %v508
  %v529 = vperm.slane %v511, 0
  %v530 = vlaneseq
  %v531 = vshrl.u32 %v530, 7
  %533 = vset.pattern.permute.xlu0 %v531
  %534 = vperm.xlu0 %533, %v529
  %v535 = vpop.permute.xlu0 %534
  %v536 = vlaneseq
  %v537 = vshrl.u32 %v536, 7
  %v538 = vadd.s32 %v537, 8
  %539 = vset.pattern.permute.xlu0 %v538
  %540 = vperm.xlu0 %539, %v529
  %v541 = vpop.permute.xlu0 %540
  %v542 = vperm.slane %v512, 0
  %v543 = vlaneseq
  %v544 = vshrl.u32 %v543, 7
  %546 = vset.pattern.permute.xlu0 %v544
  %547 = vperm.xlu0 %546, %v542
  %v548 = vpop.permute.xlu0 %547
  %v549 = vlaneseq
  %v550 = vshrl.u32 %v549, 7
  %v551 = vadd.s32 %v550, 8
  %552 = vset.pattern.permute.xlu0 %v551
  %553 = vperm.xlu0 %552, %v542
  %v554 = vpop.permute.xlu0 %553
  %v555 = vperm.slane %v527, 0
  %v556 = vperm.slane %v528, 0
  %v557 = vmul.f32 %v555, %v535
  %v558 = vmul.f32 %v555, %v541
  %v559 = vmul.f32 %v556, %v548
  %v560 = vmul.f32 %v556, %v554
  %v561 = vmul.f32 %v520, %v451
  %v562 = vmul.f32 %v522, %v452
  %v563 = vmul.f32 %v524, %v453
  %v564 = vmul.f32 %v526, %v454
  %v565 = vadd.f32 %v561, %v557
  %v566 = vadd.f32 %v562, %v558
  %v567 = vadd.f32 %v563, %v559
  %v568 = vadd.f32 %v564, %v560
  %v569 = vlaneseq
  %v570 = vshrl.u32 %v569, 7
  %v571 = vadd.s32 %v570, 16
  %572 = vset.pattern.permute.xlu0 %v571
  %573 = vperm.xlu0 %572, %v529
  %v574 = vpop.permute.xlu0 %573
  %v575 = vlaneseq
  %v576 = vshrl.u32 %v575, 7
  %v577 = vadd.s32 %v576, 24
  %578 = vset.pattern.permute.xlu0 %v577
  %579 = vperm.xlu0 %578, %v529
  %v580 = vpop.permute.xlu0 %579
  %v581 = vlaneseq
  %v582 = vshrl.u32 %v581, 7
  %v583 = vadd.s32 %v582, 16
  %584 = vset.pattern.permute.xlu0 %v583
  %585 = vperm.xlu0 %584, %v542
  %v586 = vpop.permute.xlu0 %585
  %v587 = vlaneseq
  %v588 = vshrl.u32 %v587, 7
  %v589 = vadd.s32 %v588, 24
  %590 = vset.pattern.permute.xlu0 %v589
  %591 = vperm.xlu0 %590, %v542
  %v592 = vpop.permute.xlu0 %591
  %v593 = vmul.f32 %v565, %v574
  %v594 = vmul.f32 %v566, %v580
  %v595 = vmul.f32 %v567, %v586
  %v596 = vmul.f32 %v568, %v592
  %v597 = vsel %vm136, %v593, 0.0
  %v598 = vsel %vm136, %v594, 0.0
  %v599 = vadd.f32 %v597, %v598
  %v600 = vrot.slane %v599, 4
  %v601 = vadd.f32 %v599, %v600
  %v602 = vrot.slane %v601, 2
  %v603 = vadd.f32 %v601, %v602
  %v604 = vrot.slane %v603, 1
  %v605 = vadd.f32 %v603, %v604
  %v606 = vsel %vm136, %v595, 0.0
  %v607 = vsel %vm136, %v596, 0.0
  %v608 = vadd.f32 %v606, %v607
  %v609 = vrot.slane %v608, 4
  %v610 = vadd.f32 %v608, %v609
  %v611 = vrot.slane %v610, 2
  %v612 = vadd.f32 %v610, %v611
  %v613 = vrot.slane %v612, 1
  %v614 = vadd.f32 %v612, %v613
  %v615 = vmul.f32 %v507, %v156
  %v616 = vmul.f32 %v508, %v156
  %v617 = vadd.f32 %v605, %v615
  %v618 = vadd.f32 %v614, %v616
  %619 = vst.msk [vmem:[%s5 + $0x4] sm:$0x1] %vm162, %v617
  %620 = vst.msk [vmem:[%s5 + $0xc] sm:$0x1] %vm162, %v618
  %v621 = vld [vmem:[%s0 + $0x5] sm:$0x1]
  %v622 = vld [vmem:[%s0 + $0xd] sm:$0x1]
  %v623 = vld [vmem:[%s1 + $0x5] sm:$0x1]
  %v624 = vld [vmem:[%s1 + $0xd] sm:$0x1]
  %v625 = vld [vmem:[%s2 + $0x5] sm:$0x1]
  %v626 = vld [vmem:[%s2 + $0xd] sm:$0x1]
  %v627 = vperm.slane %v623, 0
  %v628 = vperm.slane %v624, 0
  %v629 = vmul.f32 %v627, %v39
  %v630 = vmul.f32 %v627, %v40
  %v631 = vmul.f32 %v628, %v39
  %v632 = vmul.f32 %v628, %v40
  %v633 = vmul.f32 %v629, 1.442695
  %v634 = vpow.pop %v633
  %v635 = vmul.f32 %v630, 1.442695
  %v636 = vpow.pop %v635
  %v637 = vmul.f32 %v631, 1.442695
  %v638 = vpow.pop %v637
  %v639 = vmul.f32 %v632, 1.442695
  %v640 = vpow.pop %v639
  %v641 = vmul.f32 %v623, %v621
  %v642 = vmul.f32 %v624, %v622
  %v643 = vperm.slane %v625, 0
  %v644 = vlaneseq
  %v645 = vshrl.u32 %v644, 7
  %647 = vset.pattern.permute.xlu0 %v645
  %648 = vperm.xlu0 %647, %v643
  %v649 = vpop.permute.xlu0 %648
  %v650 = vlaneseq
  %v651 = vshrl.u32 %v650, 7
  %v652 = vadd.s32 %v651, 8
  %653 = vset.pattern.permute.xlu0 %v652
  %654 = vperm.xlu0 %653, %v643
  %v655 = vpop.permute.xlu0 %654
  %v656 = vperm.slane %v626, 0
  %v657 = vlaneseq
  %v658 = vshrl.u32 %v657, 7
  %660 = vset.pattern.permute.xlu0 %v658
  %661 = vperm.xlu0 %660, %v656
  %v662 = vpop.permute.xlu0 %661
  %v663 = vlaneseq
  %v664 = vshrl.u32 %v663, 7
  %v665 = vadd.s32 %v664, 8
  %666 = vset.pattern.permute.xlu0 %v665
  %667 = vperm.xlu0 %666, %v656
  %v668 = vpop.permute.xlu0 %667
  %v669 = vperm.slane %v641, 0
  %v670 = vperm.slane %v642, 0
  %v671 = vmul.f32 %v669, %v649
  %v672 = vmul.f32 %v669, %v655
  %v673 = vmul.f32 %v670, %v662
  %v674 = vmul.f32 %v670, %v668
  %v675 = vmul.f32 %v634, %v565
  %v676 = vmul.f32 %v636, %v566
  %v677 = vmul.f32 %v638, %v567
  %v678 = vmul.f32 %v640, %v568
  %v679 = vadd.f32 %v675, %v671
  %v680 = vadd.f32 %v676, %v672
  %v681 = vadd.f32 %v677, %v673
  %v682 = vadd.f32 %v678, %v674
  %v683 = vlaneseq
  %v684 = vshrl.u32 %v683, 7
  %v685 = vadd.s32 %v684, 16
  %686 = vset.pattern.permute.xlu0 %v685
  %687 = vperm.xlu0 %686, %v643
  %v688 = vpop.permute.xlu0 %687
  %v689 = vlaneseq
  %v690 = vshrl.u32 %v689, 7
  %v691 = vadd.s32 %v690, 24
  %692 = vset.pattern.permute.xlu0 %v691
  %693 = vperm.xlu0 %692, %v643
  %v694 = vpop.permute.xlu0 %693
  %v695 = vlaneseq
  %v696 = vshrl.u32 %v695, 7
  %v697 = vadd.s32 %v696, 16
  %698 = vset.pattern.permute.xlu0 %v697
  %699 = vperm.xlu0 %698, %v656
  %v700 = vpop.permute.xlu0 %699
  %v701 = vlaneseq
  %v702 = vshrl.u32 %v701, 7
  %v703 = vadd.s32 %v702, 24
  %704 = vset.pattern.permute.xlu0 %v703
  %705 = vperm.xlu0 %704, %v656
  %v706 = vpop.permute.xlu0 %705
  %v707 = vmul.f32 %v679, %v688
  %v708 = vmul.f32 %v680, %v694
  %v709 = vmul.f32 %v681, %v700
  %v710 = vmul.f32 %v682, %v706
  %v711 = vsel %vm136, %v707, 0.0
  %v712 = vsel %vm136, %v708, 0.0
  %v713 = vadd.f32 %v711, %v712
  %v714 = vrot.slane %v713, 4
  %v715 = vadd.f32 %v713, %v714
  %v716 = vrot.slane %v715, 2
  %v717 = vadd.f32 %v715, %v716
  %v718 = vrot.slane %v717, 1
  %v719 = vadd.f32 %v717, %v718
  %v720 = vsel %vm136, %v709, 0.0
  %v721 = vsel %vm136, %v710, 0.0
  %v722 = vadd.f32 %v720, %v721
  %v723 = vrot.slane %v722, 4
  %v724 = vadd.f32 %v722, %v723
  %v725 = vrot.slane %v724, 2
  %v726 = vadd.f32 %v724, %v725
  %v727 = vrot.slane %v726, 1
  %v728 = vadd.f32 %v726, %v727
  %v729 = vmul.f32 %v621, %v156
  %v730 = vmul.f32 %v622, %v156
  %v731 = vadd.f32 %v719, %v729
  %v732 = vadd.f32 %v728, %v730
  %733 = vst.msk [vmem:[%s5 + $0x5] sm:$0x1] %vm162, %v731
  %734 = vst.msk [vmem:[%s5 + $0xd] sm:$0x1] %vm162, %v732
  %v735 = vld [vmem:[%s0 + $0x6] sm:$0x1]
  %v736 = vld [vmem:[%s0 + $0xe] sm:$0x1]
  %v737 = vld [vmem:[%s1 + $0x6] sm:$0x1]
  %v738 = vld [vmem:[%s1 + $0xe] sm:$0x1]
  %v739 = vld [vmem:[%s2 + $0x6] sm:$0x1]
  %v740 = vld [vmem:[%s2 + $0xe] sm:$0x1]
  %v741 = vperm.slane %v737, 0
  %v742 = vperm.slane %v738, 0
  %v743 = vmul.f32 %v741, %v39
  %v744 = vmul.f32 %v741, %v40
  %v745 = vmul.f32 %v742, %v39
  %v746 = vmul.f32 %v742, %v40
  %v747 = vmul.f32 %v743, 1.442695
  %v748 = vpow.pop %v747
  %v749 = vmul.f32 %v744, 1.442695
  %v750 = vpow.pop %v749
  %v751 = vmul.f32 %v745, 1.442695
  %v752 = vpow.pop %v751
  %v753 = vmul.f32 %v746, 1.442695
  %v754 = vpow.pop %v753
  %v755 = vmul.f32 %v737, %v735
  %v756 = vmul.f32 %v738, %v736
  %v757 = vperm.slane %v739, 0
  %v758 = vlaneseq
  %v759 = vshrl.u32 %v758, 7
  %761 = vset.pattern.permute.xlu0 %v759
  %762 = vperm.xlu0 %761, %v757
  %v763 = vpop.permute.xlu0 %762
  %v764 = vlaneseq
  %v765 = vshrl.u32 %v764, 7
  %v766 = vadd.s32 %v765, 8
  %767 = vset.pattern.permute.xlu0 %v766
  %768 = vperm.xlu0 %767, %v757
  %v769 = vpop.permute.xlu0 %768
  %v770 = vperm.slane %v740, 0
  %v771 = vlaneseq
  %v772 = vshrl.u32 %v771, 7
  %774 = vset.pattern.permute.xlu0 %v772
  %775 = vperm.xlu0 %774, %v770
  %v776 = vpop.permute.xlu0 %775
  %v777 = vlaneseq
  %v778 = vshrl.u32 %v777, 7
  %v779 = vadd.s32 %v778, 8
  %780 = vset.pattern.permute.xlu0 %v779
  %781 = vperm.xlu0 %780, %v770
  %v782 = vpop.permute.xlu0 %781
  %v783 = vperm.slane %v755, 0
  %v784 = vperm.slane %v756, 0
  %v785 = vmul.f32 %v783, %v763
  %v786 = vmul.f32 %v783, %v769
  %v787 = vmul.f32 %v784, %v776
  %v788 = vmul.f32 %v784, %v782
  %v789 = vmul.f32 %v748, %v679
  %v790 = vmul.f32 %v750, %v680
  %v791 = vmul.f32 %v752, %v681
  %v792 = vmul.f32 %v754, %v682
  %v793 = vadd.f32 %v789, %v785
  %v794 = vadd.f32 %v790, %v786
  %v795 = vadd.f32 %v791, %v787
  %v796 = vadd.f32 %v792, %v788
  %v797 = vlaneseq
  %v798 = vshrl.u32 %v797, 7
  %v799 = vadd.s32 %v798, 16
  %800 = vset.pattern.permute.xlu0 %v799
  %801 = vperm.xlu0 %800, %v757
  %v802 = vpop.permute.xlu0 %801
  %v803 = vlaneseq
  %v804 = vshrl.u32 %v803, 7
  %v805 = vadd.s32 %v804, 24
  %806 = vset.pattern.permute.xlu0 %v805
  %807 = vperm.xlu0 %806, %v757
  %v808 = vpop.permute.xlu0 %807
  %v809 = vlaneseq
  %v810 = vshrl.u32 %v809, 7
  %v811 = vadd.s32 %v810, 16
  %812 = vset.pattern.permute.xlu0 %v811
  %813 = vperm.xlu0 %812, %v770
  %v814 = vpop.permute.xlu0 %813
  %v815 = vlaneseq
  %v816 = vshrl.u32 %v815, 7
  %v817 = vadd.s32 %v816, 24
  %818 = vset.pattern.permute.xlu0 %v817
  %819 = vperm.xlu0 %818, %v770
  %v820 = vpop.permute.xlu0 %819
  %v821 = vmul.f32 %v793, %v802
  %v822 = vmul.f32 %v794, %v808
  %v823 = vmul.f32 %v795, %v814
  %v824 = vmul.f32 %v796, %v820
  %v825 = vsel %vm136, %v821, 0.0
  %v826 = vsel %vm136, %v822, 0.0
  %v827 = vadd.f32 %v825, %v826
  %v828 = vrot.slane %v827, 4
  %v829 = vadd.f32 %v827, %v828
  %v830 = vrot.slane %v829, 2
  %v831 = vadd.f32 %v829, %v830
  %v832 = vrot.slane %v831, 1
  %v833 = vadd.f32 %v831, %v832
  %v834 = vsel %vm136, %v823, 0.0
  %v835 = vsel %vm136, %v824, 0.0
  %v836 = vadd.f32 %v834, %v835
  %v837 = vrot.slane %v836, 4
  %v838 = vadd.f32 %v836, %v837
  %v839 = vrot.slane %v838, 2
  %v840 = vadd.f32 %v838, %v839
  %v841 = vrot.slane %v840, 1
  %v842 = vadd.f32 %v840, %v841
  %v843 = vmul.f32 %v735, %v156
  %v844 = vmul.f32 %v736, %v156
  %v845 = vadd.f32 %v833, %v843
  %v846 = vadd.f32 %v842, %v844
  %847 = vst.msk [vmem:[%s5 + $0x6] sm:$0x1] %vm162, %v845
  %848 = vst.msk [vmem:[%s5 + $0xe] sm:$0x1] %vm162, %v846
  %v849 = vld [vmem:[%s0 + $0x7] sm:$0x1]
  %v850 = vld [vmem:[%s0 + $0xf] sm:$0x1]
  %v851 = vld [vmem:[%s1 + $0x7] sm:$0x1]
  %v852 = vld [vmem:[%s1 + $0xf] sm:$0x1]
  %v853 = vld [vmem:[%s2 + $0x7] sm:$0x1]
  %v854 = vld [vmem:[%s2 + $0xf] sm:$0x1]
  %v855 = vperm.slane %v851, 0
  %v856 = vperm.slane %v852, 0
  %v857 = vmul.f32 %v855, %v39
  %v858 = vmul.f32 %v855, %v40
  %v859 = vmul.f32 %v856, %v39
  %v860 = vmul.f32 %v856, %v40
  %v861 = vmul.f32 %v857, 1.442695
  %v862 = vpow.pop %v861
  %v863 = vmul.f32 %v858, 1.442695
  %v864 = vpow.pop %v863
  %v865 = vmul.f32 %v859, 1.442695
  %v866 = vpow.pop %v865
  %v867 = vmul.f32 %v860, 1.442695
  %v868 = vpow.pop %v867
  %v869 = vmul.f32 %v851, %v849
  %v870 = vmul.f32 %v852, %v850
  %v871 = vperm.slane %v853, 0
  %v872 = vlaneseq
  %v873 = vshrl.u32 %v872, 7
  %875 = vset.pattern.permute.xlu0 %v873
  %876 = vperm.xlu0 %875, %v871
  %v877 = vpop.permute.xlu0 %876
  %v878 = vlaneseq
  %v879 = vshrl.u32 %v878, 7
  %v880 = vadd.s32 %v879, 8
  %881 = vset.pattern.permute.xlu0 %v880
  %882 = vperm.xlu0 %881, %v871
  %v883 = vpop.permute.xlu0 %882
  %v884 = vperm.slane %v854, 0
  %v885 = vlaneseq
  %v886 = vshrl.u32 %v885, 7
  %888 = vset.pattern.permute.xlu0 %v886
  %889 = vperm.xlu0 %888, %v884
  %v890 = vpop.permute.xlu0 %889
  %v891 = vlaneseq
  %v892 = vshrl.u32 %v891, 7
  %v893 = vadd.s32 %v892, 8
  %894 = vset.pattern.permute.xlu0 %v893
  %895 = vperm.xlu0 %894, %v884
  %v896 = vpop.permute.xlu0 %895
  %v897 = vperm.slane %v869, 0
  %v898 = vperm.slane %v870, 0
  %v899 = vmul.f32 %v897, %v877
  %v900 = vmul.f32 %v897, %v883
  %v901 = vmul.f32 %v898, %v890
  %v902 = vmul.f32 %v898, %v896
  %v903 = vmul.f32 %v862, %v793
  %v904 = vmul.f32 %v864, %v794
  %v905 = vmul.f32 %v866, %v795
  %v906 = vmul.f32 %v868, %v796
  %v907 = vadd.f32 %v903, %v899
  %v908 = vadd.f32 %v904, %v900
  %v909 = vadd.f32 %v905, %v901
  %v910 = vadd.f32 %v906, %v902
  %v911 = vlaneseq
  %v912 = vshrl.u32 %v911, 7
  %v913 = vadd.s32 %v912, 16
  %914 = vset.pattern.permute.xlu0 %v913
  %915 = vperm.xlu0 %914, %v871
  %v916 = vpop.permute.xlu0 %915
  %v917 = vlaneseq
  %v918 = vshrl.u32 %v917, 7
  %v919 = vadd.s32 %v918, 24
  %920 = vset.pattern.permute.xlu0 %v919
  %921 = vperm.xlu0 %920, %v871
  %v922 = vpop.permute.xlu0 %921
  %v923 = vlaneseq
  %v924 = vshrl.u32 %v923, 7
  %v925 = vadd.s32 %v924, 16
  %926 = vset.pattern.permute.xlu0 %v925
  %927 = vperm.xlu0 %926, %v884
  %v928 = vpop.permute.xlu0 %927
  %v929 = vlaneseq
  %v930 = vshrl.u32 %v929, 7
  %v931 = vadd.s32 %v930, 24
  %932 = vset.pattern.permute.xlu0 %v931
  %933 = vperm.xlu0 %932, %v884
  %v934 = vpop.permute.xlu0 %933
  %v935 = vmul.f32 %v907, %v916
  %v936 = vmul.f32 %v908, %v922
  %v937 = vmul.f32 %v909, %v928
  %v938 = vmul.f32 %v910, %v934
  %v939 = vsel %vm136, %v935, 0.0
  %v940 = vsel %vm136, %v936, 0.0
  %v941 = vadd.f32 %v939, %v940
  %v942 = vrot.slane %v941, 4
  %v943 = vadd.f32 %v941, %v942
  %v944 = vrot.slane %v943, 2
  %v945 = vadd.f32 %v943, %v944
  %v946 = vrot.slane %v945, 1
  %v947 = vadd.f32 %v945, %v946
  %v948 = vsel %vm136, %v937, 0.0
  %v949 = vsel %vm136, %v938, 0.0
  %v950 = vadd.f32 %v948, %v949
  %v951 = vrot.slane %v950, 4
  %v952 = vadd.f32 %v950, %v951
  %v953 = vrot.slane %v952, 2
  %v954 = vadd.f32 %v952, %v953
  %v955 = vrot.slane %v954, 1
  %v956 = vadd.f32 %v954, %v955
  %v957 = vmul.f32 %v849, %v156
  %v958 = vmul.f32 %v850, %v156
  %v959 = vadd.f32 %v947, %v957
  %v960 = vadd.f32 %v956, %v958
  %961 = vst.msk [vmem:[%s5 + $0x7] sm:$0x1] %vm162, %v959
  %962 = vst.msk [vmem:[%s5 + $0xf] sm:$0x1] %vm162, %v960
  %963 = vst.msk [vmem:[#allocation2] sm:$0xff] %vm136, %v907
  %964 = vst.msk [vmem:[#allocation2 + $0x8] sm:$0xff] %vm136, %v908
  %965 = vst.msk [vmem:[#allocation2 + $0x10] sm:$0xff] %vm136, %v909
  %966 = vst.msk [vmem:[#allocation2 + $0x18] sm:$0xff] %vm136, %v910
  // Predicated region
  $region26: #{network_forward.13} parent=0 // pred_check
    _
  $region27: #{network_forward.13} parent=0 // pred_check_branch
    %968 = sbr.rel (0) target = $region29
  $region28: #{network_forward.13} parent=0 // pred_region
    _
  $region29: #{network_forward.13} parent=0 // pred_fallthru
    _
  // Predicated region
  $region30: #{network_forward.13} parent=0 // pred_check
    _
  $region31: #{network_forward.13} parent=0 // pred_check_branch
    %970 = sbr.rel (0) target = $region33
  $region32: #{network_forward.13} parent=0 // pred_region
    _
  $region33: #{network_forward.13} parent=0 // pred_fallthru
    _

// kernel: network_forward.14
$region0: #{network_forward.14}
  #allocation0 [shape = 'u32[]', space=smem, size = 0x4, offset = 0x4, fixed_abs, tag = 'smem constant byte address 0x4 - core index']
  #allocation1 [shape = 'u32[72,128]{1,0:T(1,128)}', space=vmem, size = 0x9000, scoped, tag = 'internal scratch']
  #allocation2 [shape = 'f32[16,32]{1,0:T(8,128)}', space=vmem, size = 0x2000, scoped, tag = 'scratch operand']
  %s0 = inlined_call_operand.vmem [shape: f32[16,64], index: 0, kind: input, shape index: {}]
  %s1 = inlined_call_operand.vmem [shape: f32[16,64], index: 1, kind: input, shape index: {}]
  %s2 = inlined_call_operand.vmem [shape: f32[64,32], index: 2, kind: input, shape index: {}]
  %s3 = inlined_call_operand.vmem [shape: f32[16,32], index: 3, kind: input, shape index: {}]
  %s4 = inlined_call_operand.vmem [shape: f32[16,32], index: 4, kind: output, shape index: {}]
  %s5 = sld [smem:[#allocation0]]
  $region34: #{network_forward.14} parent=0
    _
  %s7 = ssub.s32 1, %s5
  %s8 = scalar_select 0, %s7, %s5
  // Predicated region
  $region2: #{network_forward.14} parent=0 // pred_check
    _
  $region3: #{network_forward.14} parent=0 // pred_check_branch
    %10 = sbr.rel (0) target = $region5
  $region4: #{network_forward.14} parent=0 // pred_region
    _
  $region5: #{network_forward.14} parent=0 // pred_fallthru
    _
  // Predicated region
  $region6: #{network_forward.14} parent=0 // pred_check
    _
  $region7: #{network_forward.14} parent=0 // pred_check_branch
    %12 = sbr.rel (0) target = $region9
  $region8: #{network_forward.14} parent=0 // pred_region
    _
  $region9: #{network_forward.14} parent=0 // pred_fallthru
    _
  // Predicated region
  $region10: #{network_forward.14} parent=0 // pred_check
    _
  $region11: #{network_forward.14} parent=0 // pred_check_branch
    %14 = sbr.rel (0) target = $region13
  $region12: #{network_forward.14} parent=0 // pred_region
    _
  $region13: #{network_forward.14} parent=0 // pred_fallthru
    _
  // Predicated region
  $region14: #{network_forward.14} parent=0 // pred_check
    _
  $region15: #{network_forward.14} parent=0 // pred_check_branch
    %16 = sbr.rel (0) target = $region17
  $region16: #{network_forward.14} parent=0 // pred_region
    _
  $region17: #{network_forward.14} parent=0 // pred_fallthru
    _
  %p17 = scmp.eq.s32.totalorder 0, 0
  // Predicated region
  $region18: #{network_forward.14} parent=0 // pred_check
    %p18 = pneg %p17
  $region19: #{network_forward.14} parent=0 // pred_check_branch
    %20 = sbr.rel (%p18) target = $region21
  $region20: #{network_forward.14} parent=0 // pred_region
    %vm21 = vcmask 261120
    %22 = vst.msk [vmem:[#allocation2] sm:$0xff] %vm21, 0.0
    %23 = vst.msk [vmem:[#allocation2 + $0x8] sm:$0xff] %vm21, 0.0
  $region21: #{network_forward.14} parent=0 // pred_fallthru
    _
  %v24 = vld [vmem:[%s1] sm:$0xff]
  %v25 = vld [vmem:[%s1 + $0x8] sm:$0xff]
  %v26 = vld [vmem:[%s0] sm:$0xff]
  %v27 = vld [vmem:[%s0 + $0x8] sm:$0xff]
  %v28 = vxor.u32 %v24, 2147483648
  %v29 = vxor.u32 %v25, 2147483648
  %v30 = vmul.f32 %v28, 1.442695
  %v31 = vpow.pop %v30
  %v32 = vmul.f32 %v29, 1.442695
  %v33 = vpow.pop %v32
  %v34 = vadd.f32 %v31, 1.0
  %v35 = vadd.f32 %v33, 1.0
  %v36 = vrcp.pop %v34
  %v37 = vmul.f32 %v34, %v36
  %v38 = vsub.f32 1.0, %v37
  %v39 = vmul.f32 %v36, %v38
  %v40 = vadd.f32 %v36, %v39
  %vm41 = vweird.f32 %v34
  %vm42 = vweird.f32 %v36
  %vm43 = vmor %vm41, %vm42
  %v44 = vsel %vm43, %v36, %v40
  %v45 = vand.u32 2147483647, %v34
  %vm46 = vcmp.eq.f32.partialorder %v45, 8.507059e+37
  %v47 = vand.u32 %v34, 2147483648
  %v48 = vor.u32 1.1754944e-38, %v47
  %v49 = vsel %vm46, %v48, %v44
  %v50 = vmul.f32 1.0, %v49
  %v51 = vrcp.pop %v35
  %v52 = vmul.f32 %v35, %v51
  %v53 = vsub.f32 1.0, %v52
  %v54 = vmul.f32 %v51, %v53
  %v55 = vadd.f32 %v51, %v54
  %vm56 = vweird.f32 %v35
  %vm57 = vweird.f32 %v51
  %vm58 = vmor %vm56, %vm57
  %v59 = vsel %vm58, %v51, %v55
  %v60 = vand.u32 2147483647, %v35
  %vm61 = vcmp.eq.f32.partialorder %v60, 8.507059e+37
  %v62 = vand.u32 %v35, 2147483648
  %v63 = vor.u32 1.1754944e-38, %v62
  %v64 = vsel %vm61, %v63, %v59
  %v65 = vmul.f32 1.0, %v64
  %v66 = vmul.f32 %v24, %v50
  %v67 = vmul.f32 %v25, %v65
  %v68 = vmul.f32 %v26, %v66
  %v69 = vmul.f32 %v27, %v67
  %v70 = vld [vmem:[#allocation2] sm:$0xff]
  %v71 = vld [vmem:[#allocation2 + $0x8] sm:$0xff]
  %v72 = vld [vmem:[%s2] sm:$0xff]
  %v73 = vld [vmem:[%s2 + $0x8] sm:$0xff]
  %v74 = vld [vmem:[%s2 + $0x10] sm:$0xff]
  %v75 = vld [vmem:[%s2 + $0x18] sm:$0xff]
  %v76 = vld [vmem:[%s2 + $0x20] sm:$0xff]
  %v77 = vld [vmem:[%s2 + $0x28] sm:$0xff]
  %v78 = vld [vmem:[%s2 + $0x30] sm:$0xff]
  %v79 = vld [vmem:[%s2 + $0x38] sm:$0xff]
  %vm80 = vcmask 523264
  %v82 = vsel %vm80, %v68, 0
  %v85 = vsel %vm80, %v69, 0
  %87 = vmatpush.msra.mxu0 0.0
  %88 = vmatpush.msra.mxu0 0.0
  %89 = vmatpush.msra.mxu0 0.0
  %90 = vmatpush.msra.mxu0 0.0
  %91 = vmatpush.msra.mxu0 0.0
  %92 = vmatpush.msra.mxu0 0.0
  %93 = vmatpush.msra.mxu0 0.0
  %94 = vmatpush.msra.mxu0 0.0
  %v95 = vand.u32 %v79, 4294901760
  %96 = vmatpush.msra.mxu0 %v95
  %v97 = vand.u32 %v78, 4294901760
  %98 = vmatpush.msra.mxu0 %v97
  %v99 = vand.u32 %v77, 4294901760
  %100 = vmatpush.msra.mxu0 %v99
  %v101 = vand.u32 %v76, 4294901760
  %102 = vmatpush.msra.mxu0 %v101
  %v103 = vand.u32 %v75, 4294901760
  %104 = vmatpush.msra.mxu0 %v103
  %v105 = vand.u32 %v74, 4294901760
  %106 = vmatpush.msra.mxu0 %v105
  %v107 = vand.u32 %v73, 4294901760
  %108 = vmatpush.msra.mxu0 %v107
  %v109 = vand.u32 %v72, 4294901760
  %110 = vmatpush.msra.mxu0 %v109
  %v111 = vand.u32 %v82, 4294901760
  %v112 = vsub.f32 %v82, %v111
  %v113 = vand.u32 %v112, 4294901760
  %v114 = vsub.f32 %v112, %v113
  %v115 = vand.u32 %v114, 4294901760
  %116 = vmatmul.f32.gmra.mxu0 %v115
  %v117 = vpop.f32.mrf.mxu0
  %v118 = vadd.f32 0.0, %v117
  %v119 = vand.u32 %v85, 4294901760
  %v120 = vsub.f32 %v85, %v119
  %v121 = vand.u32 %v120, 4294901760
  %v122 = vsub.f32 %v120, %v121
  %v123 = vand.u32 %v122, 4294901760
  %124 = vmatmul.f32.gmra.mxu0 %v123
  %v125 = vpop.f32.mrf.mxu0
  %v126 = vadd.f32 0.0, %v125
  %127 = vdwg.mxu0
  %128 = vmatpush.msra.mxu0 0.0
  %129 = vmatpush.msra.mxu0 0.0
  %130 = vmatpush.msra.mxu0 0.0
  %131 = vmatpush.msra.mxu0 0.0
  %132 = vmatpush.msra.mxu0 0.0
  %133 = vmatpush.msra.mxu0 0.0
  %134 = vmatpush.msra.mxu0 0.0
  %135 = vmatpush.msra.mxu0 0.0
  %v136 = vand.u32 %v79, 4294901760
  %v137 = vsub.f32 %v79, %v136
  %v138 = vand.u32 %v137, 4294901760
  %v139 = vsub.f32 %v137, %v138
  %v140 = vand.u32 %v139, 4294901760
  %141 = vmatpush.msra.mxu0 %v140
  %v142 = vand.u32 %v78, 4294901760
  %v143 = vsub.f32 %v78, %v142
  %v144 = vand.u32 %v143, 4294901760
  %v145 = vsub.f32 %v143, %v144
  %v146 = vand.u32 %v145, 4294901760
  %147 = vmatpush.msra.mxu0 %v146
  %v148 = vand.u32 %v77, 4294901760
  %v149 = vsub.f32 %v77, %v148
  %v150 = vand.u32 %v149, 4294901760
  %v151 = vsub.f32 %v149, %v150
  %v152 = vand.u32 %v151, 4294901760
  %153 = vmatpush.msra.mxu0 %v152
  %v154 = vand.u32 %v76, 4294901760
  %v155 = vsub.f32 %v76, %v154
  %v156 = vand.u32 %v155, 4294901760
  %v157 = vsub.f32 %v155, %v156
  %v158 = vand.u32 %v157, 4294901760
  %159 = vmatpush.msra.mxu0 %v158
  %v160 = vand.u32 %v75, 4294901760
  %v161 = vsub.f32 %v75, %v160
  %v162 = vand.u32 %v161, 4294901760
  %v163 = vsub.f32 %v161, %v162
  %v164 = vand.u32 %v163, 4294901760
  %165 = vmatpush.msra.mxu0 %v164
  %v166 = vand.u32 %v74, 4294901760
  %v167 = vsub.f32 %v74, %v166
  %v168 = vand.u32 %v167, 4294901760
  %v169 = vsub.f32 %v167, %v168
  %v170 = vand.u32 %v169, 4294901760
  %171 = vmatpush.msra.mxu0 %v170
  %v172 = vand.u32 %v73, 4294901760
  %v173 = vsub.f32 %v73, %v172
  %v174 = vand.u32 %v173, 4294901760
  %v175 = vsub.f32 %v173, %v174
  %v176 = vand.u32 %v175, 4294901760
  %177 = vmatpush.msra.mxu0 %v176
  %v178 = vand.u32 %v72, 4294901760
  %v179 = vsub.f32 %v72, %v178
  %v180 = vand.u32 %v179, 4294901760
  %v181 = vsub.f32 %v179, %v180
  %v182 = vand.u32 %v181, 4294901760
  %183 = vmatpush.msra.mxu0 %v182
  %v184 = vand.u32 %v82, 4294901760
  %185 = vmatmul.f32.gmra.mxu0 %v184
  %v186 = vpop.f32.mrf.mxu0
  %v187 = vadd.f32 %v118, %v186
  %v188 = vand.u32 %v85, 4294901760
  %189 = vmatmul.f32.gmra.mxu0 %v188
  %v190 = vpop.f32.mrf.mxu0
  %v191 = vadd.f32 %v126, %v190
  %192 = vdwg.mxu0
  %193 = vmatpush.msra.mxu0 0.0
  %194 = vmatpush.msra.mxu0 0.0
  %195 = vmatpush.msra.mxu0 0.0
  %196 = vmatpush.msra.mxu0 0.0
  %197 = vmatpush.msra.mxu0 0.0
  %198 = vmatpush.msra.mxu0 0.0
  %199 = vmatpush.msra.mxu0 0.0
  %200 = vmatpush.msra.mxu0 0.0
  %v201 = vand.u32 %v79, 4294901760
  %v202 = vsub.f32 %v79, %v201
  %203 = vmatpush.msra.mxu0 %v202
  %v204 = vand.u32 %v78, 4294901760
  %v205 = vsub.f32 %v78, %v204
  %206 = vmatpush.msra.mxu0 %v205
  %v207 = vand.u32 %v77, 4294901760
  %v208 = vsub.f32 %v77, %v207
  %209 = vmatpush.msra.mxu0 %v208
  %v210 = vand.u32 %v76, 4294901760
  %v211 = vsub.f32 %v76, %v210
  %212 = vmatpush.msra.mxu0 %v211
  %v213 = vand.u32 %v75, 4294901760
  %v214 = vsub.f32 %v75, %v213
  %215 = vmatpush.msra.mxu0 %v214
  %v216 = vand.u32 %v74, 4294901760
  %v217 = vsub.f32 %v74, %v216
  %218 = vmatpush.msra.mxu0 %v217
  %v219 = vand.u32 %v73, 4294901760
  %v220 = vsub.f32 %v73, %v219
  %221 = vmatpush.msra.mxu0 %v220
  %v222 = vand.u32 %v72, 4294901760
  %v223 = vsub.f32 %v72, %v222
  %224 = vmatpush.msra.mxu0 %v223
  %v225 = vand.u32 %v82, 4294901760
  %v226 = vsub.f32 %v82, %v225
  %227 = vmatmul.f32.gmra.mxu0 %v226
  %v228 = vpop.f32.mrf.mxu0
  %v229 = vadd.f32 %v187, %v228
  %v230 = vand.u32 %v85, 4294901760
  %v231 = vsub.f32 %v85, %v230
  %232 = vmatmul.f32.gmra.mxu0 %v231
  %v233 = vpop.f32.mrf.mxu0
  %v234 = vadd.f32 %v191, %v233
  %235 = vdwg.mxu0
  %236 = vmatpush.msra.mxu0 0.0
  %237 = vmatpush.msra.mxu0 0.0
  %238 = vmatpush.msra.mxu0 0.0
  %239 = vmatpush.msra.mxu0 0.0
  %240 = vmatpush.msra.mxu0 0.0
  %241 = vmatpush.msra.mxu0 0.0
  %242 = vmatpush.msra.mxu0 0.0
  %243 = vmatpush.msra.mxu0 0.0
  %v244 = vand.u32 %v79, 4294901760
  %245 = vmatpush.msra.mxu0 %v244
  %v246 = vand.u32 %v78, 4294901760
  %247 = vmatpush.msra.mxu0 %v246
  %v248 = vand.u32 %v77, 4294901760
  %249 = vmatpush.msra.mxu0 %v248
  %v250 = vand.u32 %v76, 4294901760
  %251 = vmatpush.msra.mxu0 %v250
  %v252 = vand.u32 %v75, 4294901760
  %253 = vmatpush.msra.mxu0 %v252
  %v254 = vand.u32 %v74, 4294901760
  %255 = vmatpush.msra.mxu0 %v254
  %v256 = vand.u32 %v73, 4294901760
  %257 = vmatpush.msra.mxu0 %v256
  %v258 = vand.u32 %v72, 4294901760
  %259 = vmatpush.msra.mxu0 %v258
  %v260 = vand.u32 %v82, 4294901760
  %v261 = vsub.f32 %v82, %v260
  %v262 = vand.u32 %v261, 4294901760
  %263 = vmatmul.f32.gmra.mxu0 %v262
  %v264 = vpop.f32.mrf.mxu0
  %v265 = vadd.f32 %v229, %v264
  %v266 = vand.u32 %v85, 4294901760
  %v267 = vsub.f32 %v85, %v266
  %v268 = vand.u32 %v267, 4294901760
  %269 = vmatmul.f32.gmra.mxu0 %v268
  %v270 = vpop.f32.mrf.mxu0
  %v271 = vadd.f32 %v234, %v270
  %272 = vdwg.mxu0
  %273 = vmatpush.msra.mxu0 0.0
  %274 = vmatpush.msra.mxu0 0.0
  %275 = vmatpush.msra.mxu0 0.0
  %276 = vmatpush.msra.mxu0 0.0
  %277 = vmatpush.msra.mxu0 0.0
  %278 = vmatpush.msra.mxu0 0.0
  %279 = vmatpush.msra.mxu0 0.0
  %280 = vmatpush.msra.mxu0 0.0
  %v281 = vand.u32 %v79, 4294901760
  %v282 = vsub.f32 %v79, %v281
  %v283 = vand.u32 %v282, 4294901760
  %284 = vmatpush.msra.mxu0 %v283
  %v285 = vand.u32 %v78, 4294901760
  %v286 = vsub.f32 %v78, %v285
  %v287 = vand.u32 %v286, 4294901760
  %288 = vmatpush.msra.mxu0 %v287
  %v289 = vand.u32 %v77, 4294901760
  %v290 = vsub.f32 %v77, %v289
  %v291 = vand.u32 %v290, 4294901760
  %292 = vmatpush.msra.mxu0 %v291
  %v293 = vand.u32 %v76, 4294901760
  %v294 = vsub.f32 %v76, %v293
  %v295 = vand.u32 %v294, 4294901760
  %296 = vmatpush.msra.mxu0 %v295
  %v297 = vand.u32 %v75, 4294901760
  %v298 = vsub.f32 %v75, %v297
  %v299 = vand.u32 %v298, 4294901760
  %300 = vmatpush.msra.mxu0 %v299
  %v301 = vand.u32 %v74, 4294901760
  %v302 = vsub.f32 %v74, %v301
  %v303 = vand.u32 %v302, 4294901760
  %304 = vmatpush.msra.mxu0 %v303
  %v305 = vand.u32 %v73, 4294901760
  %v306 = vsub.f32 %v73, %v305
  %v307 = vand.u32 %v306, 4294901760
  %308 = vmatpush.msra.mxu0 %v307
  %v309 = vand.u32 %v72, 4294901760
  %v310 = vsub.f32 %v72, %v309
  %v311 = vand.u32 %v310, 4294901760
  %312 = vmatpush.msra.mxu0 %v311
  %v313 = vand.u32 %v82, 4294901760
  %314 = vmatmul.f32.gmra.mxu0 %v313
  %v315 = vpop.f32.mrf.mxu0
  %v316 = vadd.f32 %v265, %v315
  %v317 = vand.u32 %v85, 4294901760
  %318 = vmatmul.f32.gmra.mxu0 %v317
  %v319 = vpop.f32.mrf.mxu0
  %v320 = vadd.f32 %v271, %v319
  %321 = vdwg.mxu0
  %322 = vmatpush.msra.mxu0 0.0
  %323 = vmatpush.msra.mxu0 0.0
  %324 = vmatpush.msra.mxu0 0.0
  %325 = vmatpush.msra.mxu0 0.0
  %326 = vmatpush.msra.mxu0 0.0
  %327 = vmatpush.msra.mxu0 0.0
  %328 = vmatpush.msra.mxu0 0.0
  %329 = vmatpush.msra.mxu0 0.0
  %v330 = vand.u32 %v79, 4294901760
  %331 = vmatpush.msra.mxu0 %v330
  %v332 = vand.u32 %v78, 4294901760
  %333 = vmatpush.msra.mxu0 %v332
  %v334 = vand.u32 %v77, 4294901760
  %335 = vmatpush.msra.mxu0 %v334
  %v336 = vand.u32 %v76, 4294901760
  %337 = vmatpush.msra.mxu0 %v336
  %v338 = vand.u32 %v75, 4294901760
  %339 = vmatpush.msra.mxu0 %v338
  %v340 = vand.u32 %v74, 4294901760
  %341 = vmatpush.msra.mxu0 %v340
  %v342 = vand.u32 %v73, 4294901760
  %343 = vmatpush.msra.mxu0 %v342
  %v344 = vand.u32 %v72, 4294901760
  %345 = vmatpush.msra.mxu0 %v344
  %v346 = vand.u32 %v82, 4294901760
  %347 = vmatmul.f32.gmra.mxu0 %v346
  %v348 = vpop.f32.mrf.mxu0
  %v349 = vadd.f32 %v316, %v348
  %v350 = vand.u32 %v85, 4294901760
  %351 = vmatmul.f32.gmra.mxu0 %v350
  %v352 = vpop.f32.mrf.mxu0
  %v353 = vadd.f32 %v320, %v352
  %354 = vdwg.mxu0
  %v355 = vadd.f32 %v70, %v349
  %v356 = vadd.f32 %v71, %v353
  %vm357 = vcmask 261120
  %358 = vst.msk [vmem:[#allocation2] sm:$0xff] %vm357, %v355
  %359 = vst.msk [vmem:[#allocation2 + $0x8] sm:$0xff] %vm357, %v356
  // Predicated region
  $region22: #{network_forward.14} parent=0 // pred_check
    %p360 = pneg %p17
  $region23: #{network_forward.14} parent=0 // pred_check_branch
    %362 = sbr.rel (%p360) target = $region25
  $region24: #{network_forward.14} parent=0 // pred_region
    %v363 = vld [vmem:[#allocation2] sm:$0xff]
    %v364 = vld [vmem:[#allocation2 + $0x8] sm:$0xff]
    %v365 = vld [vmem:[%s3] sm:$0xff]
    %v366 = vld [vmem:[%s3 + $0x8] sm:$0xff]
    %v367 = vadd.f32 %v363, %v365
    %v368 = vadd.f32 %v364, %v366
    %369 = vst.msk [vmem:[%s4] sm:$0xff] %vm357, %v367
    %370 = vst.msk [vmem:[%s4 + $0x8] sm:$0xff] %vm357, %v368
  $region25: #{network_forward.14} parent=0 // pred_fallthru
    _
  // Predicated region
  $region26: #{network_forward.14} parent=0 // pred_check
    _
  $region27: #{network_forward.14} parent=0 // pred_check_branch
    %372 = sbr.rel (0) target = $region29
  $region28: #{network_forward.14} parent=0 // pred_region
    _
  $region29: #{network_forward.14} parent=0 // pred_fallthru
    _
  // Predicated region
  $region30: #{network_forward.14} parent=0 // pred_check
    _
  $region31: #{network_forward.14} parent=0 // pred_check_branch
    %374 = sbr.rel (0) target = $region33
  $region32: #{network_forward.14} parent=0 // pred_region
    _
  $region33: #{network_forward.14} parent=0 // pred_fallthru
    _

// kernel: network_forward.15
$region0: #{network_forward.15}
  #allocation0 [shape = 'u32[]', space=smem, size = 0x4, offset = 0x4, fixed_abs, tag = 'smem constant byte address 0x4 - core index']
  #allocation1 [shape = 'u32[72,128]{1,0:T(1,128)}', space=vmem, size = 0x9000, scoped, tag = 'internal scratch']
  %s0 = inlined_call_operand.vmem [shape: f32[16,32], index: 0, kind: input, shape index: {}]
  %s1 = inlined_call_operand.vmem [shape: f32[1,32], index: 1, kind: input, shape index: {}]
  %s2 = inlined_call_operand.vmem [shape: f32[32,64], index: 2, kind: input, shape index: {}]
  %s3 = inlined_call_operand.vmem [shape: f32[32,64], index: 3, kind: input, shape index: {}]
  %s4 = inlined_call_operand.vmem [shape: f32[16,64], index: 4, kind: output, shape index: {0}]
  %s5 = inlined_call_operand.vmem [shape: f32[16,64], index: 5, kind: output, shape index: {1}]
  %6 = xla_tuple %s4, %s5
  %s7 = sld [smem:[#allocation0]]
  $region34: #{network_forward.15} parent=0
    _
  %s9 = ssub.s32 1, %s7
  %s10 = scalar_select 0, %s9, %s7
  // Predicated region
  $region2: #{network_forward.15} parent=0 // pred_check
    _
  $region3: #{network_forward.15} parent=0 // pred_check_branch
    %12 = sbr.rel (0) target = $region5
  $region4: #{network_forward.15} parent=0 // pred_region
    _
  $region5: #{network_forward.15} parent=0 // pred_fallthru
    _
  // Predicated region
  $region6: #{network_forward.15} parent=0 // pred_check
    _
  $region7: #{network_forward.15} parent=0 // pred_check_branch
    %14 = sbr.rel (0) target = $region9
  $region8: #{network_forward.15} parent=0 // pred_region
    _
  $region9: #{network_forward.15} parent=0 // pred_fallthru
    _
  // Predicated region
  $region10: #{network_forward.15} parent=0 // pred_check
    _
  $region11: #{network_forward.15} parent=0 // pred_check_branch
    %16 = sbr.rel (0) target = $region13
  $region12: #{network_forward.15} parent=0 // pred_region
    _
  $region13: #{network_forward.15} parent=0 // pred_fallthru
    _
  // Predicated region
  $region14: #{network_forward.15} parent=0 // pred_check
    _
  $region15: #{network_forward.15} parent=0 // pred_check_branch
    %18 = sbr.rel (0) target = $region17
  $region16: #{network_forward.15} parent=0 // pred_region
    _
  $region17: #{network_forward.15} parent=0 // pred_fallthru
    _
  %v19 = vld [vmem:[%s0] sm:$0xff]
  %v20 = vld [vmem:[%s0 + $0x8] sm:$0xff]
  %v21 = vmul.f32 %v19, %v19
  %v22 = vmul.f32 %v20, %v20
  %vm23 = vcmask 261120
  %v24 = vsel %vm23, %v21, 0.0
  %25 = vadd.xlane.f32.xlu0 %v24
  %v26 = vpop.xlane.xlu0 %25
  %v27 = vsel %vm23, %v22, 0.0
  %28 = vadd.xlane.f32.xlu0 %v27
  %v29 = vpop.xlane.xlu0 %28
  %v30 = vrcp.pop 32.0
  %v31 = vmul.f32 32.0, %v30
  %v32 = vsub.f32 1.0, %v31
  %v33 = vmul.f32 %v30, %v32
  %v34 = vadd.f32 %v30, %v33
  %vm35 = vweird.f32 %v30
  %v36 = vsel %vm35, %v30, %v34
  %v37 = vmul.f32 %v26, %v36
  %v38 = vmul.f32 %v29, %v36
  %v39 = vadd.f32 %v37, 1e-05
  %v40 = vadd.f32 %v38, 1e-05
  %v41 = vrsqrt.pop %v39
  %v42 = vmul.f32 %v41, %v39
  %v43 = vmul.f32 %v42, %v41
  %v44 = vmul.f32 0.5, %v43
  %v45 = vsub.f32 1.5, %v44
  %v46 = vmul.f32 %v41, %v45
  %vm47 = vweird.f32 %v39
  %vm48 = vweird.f32 %v41
  %vm49 = vmor %vm47, %vm48
  %v50 = vsel %vm49, %v41, %v46
  %v51 = vrsqrt.pop %v40
  %v52 = vmul.f32 %v51, %v40
  %v53 = vmul.f32 %v52, %v51
  %v54 = vmul.f32 0.5, %v53
  %v55 = vsub.f32 1.5, %v54
  %v56 = vmul.f32 %v51, %v55
  %vm57 = vweird.f32 %v40
  %vm58 = vweird.f32 %v51
  %vm59 = vmor %vm57, %vm58
  %v60 = vsel %vm59, %v51, %v56
  %v61 = vmul.f32 %v19, %v50
  %v62 = vmul.f32 %v20, %v60
  %v63 = vld [vmem:[%s1] sm:$0x1]
  %v65 = vperm.slane %v63, 0
  %v67 = vmul.f32 %v61, %v65
  %v68 = vmul.f32 %v62, %v65
  %v69 = vld [vmem:[%s2] sm:$0xff]
  %v70 = vld [vmem:[%s2 + $0x8] sm:$0xff]
  %v71 = vld [vmem:[%s2 + $0x10] sm:$0xff]
  %v72 = vld [vmem:[%s2 + $0x18] sm:$0xff]
  %v74 = vsel %vm23, %v67, 0
  %v77 = vsel %vm23, %v68, 0
  %79 = vmatpush.msra.mxu0 0.0
  %80 = vmatpush.msra.mxu0 0.0
  %81 = vmatpush.msra.mxu0 0.0
  %82 = vmatpush.msra.mxu0 0.0
  %83 = vmatpush.msra.mxu0 0.0
  %84 = vmatpush.msra.mxu0 0.0
  %85 = vmatpush.msra.mxu0 0.0
  %86 = vmatpush.msra.mxu0 0.0
  %87 = vmatpush.msra.mxu0 0.0
  %88 = vmatpush.msra.mxu0 0.0
  %89 = vmatpush.msra.mxu0 0.0
  %90 = vmatpush.msra.mxu0 0.0
  %v91 = vand.u32 %v72, 4294901760
  %92 = vmatpush.msra.mxu0 %v91
  %v93 = vand.u32 %v71, 4294901760
  %94 = vmatpush.msra.mxu0 %v93
  %v95 = vand.u32 %v70, 4294901760
  %96 = vmatpush.msra.mxu0 %v95
  %v97 = vand.u32 %v69, 4294901760
  %98 = vmatpush.msra.mxu0 %v97
  %v99 = vand.u32 %v74, 4294901760
  %v100 = vsub.f32 %v74, %v99
  %v101 = vand.u32 %v100, 4294901760
  %v102 = vsub.f32 %v100, %v101
  %v103 = vand.u32 %v102, 4294901760
  %104 = vmatmul.f32.gmra.mxu0 %v103
  %v105 = vpop.f32.mrf.mxu0
  %v106 = vadd.f32 0.0, %v105
  %v107 = vand.u32 %v77, 4294901760
  %v108 = vsub.f32 %v77, %v107
  %v109 = vand.u32 %v108, 4294901760
  %v110 = vsub.f32 %v108, %v109
  %v111 = vand.u32 %v110, 4294901760
  %112 = vmatmul.f32.gmra.mxu0 %v111
  %v113 = vpop.f32.mrf.mxu0
  %v114 = vadd.f32 0.0, %v113
  %115 = vdwg.mxu0
  %116 = vmatpush.msra.mxu0 0.0
  %117 = vmatpush.msra.mxu0 0.0
  %118 = vmatpush.msra.mxu0 0.0
  %119 = vmatpush.msra.mxu0 0.0
  %120 = vmatpush.msra.mxu0 0.0
  %121 = vmatpush.msra.mxu0 0.0
  %122 = vmatpush.msra.mxu0 0.0
  %123 = vmatpush.msra.mxu0 0.0
  %124 = vmatpush.msra.mxu0 0.0
  %125 = vmatpush.msra.mxu0 0.0
  %126 = vmatpush.msra.mxu0 0.0
  %127 = vmatpush.msra.mxu0 0.0
  %v128 = vand.u32 %v72, 4294901760
  %v129 = vsub.f32 %v72, %v128
  %v130 = vand.u32 %v129, 4294901760
  %v131 = vsub.f32 %v129, %v130
  %v132 = vand.u32 %v131, 4294901760
  %133 = vmatpush.msra.mxu0 %v132
  %v134 = vand.u32 %v71, 4294901760
  %v135 = vsub.f32 %v71, %v134
  %v136 = vand.u32 %v135, 4294901760
  %v137 = vsub.f32 %v135, %v136
  %v138 = vand.u32 %v137, 4294901760
  %139 = vmatpush.msra.mxu0 %v138
  %v140 = vand.u32 %v70, 4294901760
  %v141 = vsub.f32 %v70, %v140
  %v142 = vand.u32 %v141, 4294901760
  %v143 = vsub.f32 %v141, %v142
  %v144 = vand.u32 %v143, 4294901760
  %145 = vmatpush.msra.mxu0 %v144
  %v146 = vand.u32 %v69, 4294901760
  %v147 = vsub.f32 %v69, %v146
  %v148 = vand.u32 %v147, 4294901760
  %v149 = vsub.f32 %v147, %v148
  %v150 = vand.u32 %v149, 4294901760
  %151 = vmatpush.msra.mxu0 %v150
  %v152 = vand.u32 %v74, 4294901760
  %153 = vmatmul.f32.gmra.mxu0 %v152
  %v154 = vpop.f32.mrf.mxu0
  %v155 = vadd.f32 %v106, %v154
  %v156 = vand.u32 %v77, 4294901760
  %157 = vmatmul.f32.gmra.mxu0 %v156
  %v158 = vpop.f32.mrf.mxu0
  %v159 = vadd.f32 %v114, %v158
  %160 = vdwg.mxu0
  %161 = vmatpush.msra.mxu0 0.0
  %162 = vmatpush.msra.mxu0 0.0
  %163 = vmatpush.msra.mxu0 0.0
  %164 = vmatpush.msra.mxu0 0.0
  %165 = vmatpush.msra.mxu0 0.0
  %166 = vmatpush.msra.mxu0 0.0
  %167 = vmatpush.msra.mxu0 0.0
  %168 = vmatpush.msra.mxu0 0.0
  %169 = vmatpush.msra.mxu0 0.0
  %170 = vmatpush.msra.mxu0 0.0
  %171 = vmatpush.msra.mxu0 0.0
  %172 = vmatpush.msra.mxu0 0.0
  %v173 = vand.u32 %v72, 4294901760
  %v174 = vsub.f32 %v72, %v173
  %175 = vmatpush.msra.mxu0 %v174
  %v176 = vand.u32 %v71, 4294901760
  %v177 = vsub.f32 %v71, %v176
  %178 = vmatpush.msra.mxu0 %v177
  %v179 = vand.u32 %v70, 4294901760
  %v180 = vsub.f32 %v70, %v179
  %181 = vmatpush.msra.mxu0 %v180
  %v182 = vand.u32 %v69, 4294901760
  %v183 = vsub.f32 %v69, %v182
  %184 = vmatpush.msra.mxu0 %v183
  %v185 = vand.u32 %v74, 4294901760
  %v186 = vsub.f32 %v74, %v185
  %187 = vmatmul.f32.gmra.mxu0 %v186
  %v188 = vpop.f32.mrf.mxu0
  %v189 = vadd.f32 %v155, %v188
  %v190 = vand.u32 %v77, 4294901760
  %v191 = vsub.f32 %v77, %v190
  %192 = vmatmul.f32.gmra.mxu0 %v191
  %v193 = vpop.f32.mrf.mxu0
  %v194 = vadd.f32 %v159, %v193
  %195 = vdwg.mxu0
  %196 = vmatpush.msra.mxu0 0.0
  %197 = vmatpush.msra.mxu0 0.0
  %198 = vmatpush.msra.mxu0 0.0
  %199 = vmatpush.msra.mxu0 0.0
  %200 = vmatpush.msra.mxu0 0.0
  %201 = vmatpush.msra.mxu0 0.0
  %202 = vmatpush.msra.mxu0 0.0
  %203 = vmatpush.msra.mxu0 0.0
  %204 = vmatpush.msra.mxu0 0.0
  %205 = vmatpush.msra.mxu0 0.0
  %206 = vmatpush.msra.mxu0 0.0
  %207 = vmatpush.msra.mxu0 0.0
  %v208 = vand.u32 %v72, 4294901760
  %209 = vmatpush.msra.mxu0 %v208
  %v210 = vand.u32 %v71, 4294901760
  %211 = vmatpush.msra.mxu0 %v210
  %v212 = vand.u32 %v70, 4294901760
  %213 = vmatpush.msra.mxu0 %v212
  %v214 = vand.u32 %v69, 4294901760
  %215 = vmatpush.msra.mxu0 %v214
  %v216 = vand.u32 %v74, 4294901760
  %v217 = vsub.f32 %v74, %v216
  %v218 = vand.u32 %v217, 4294901760
  %219 = vmatmul.f32.gmra.mxu0 %v218
  %v220 = vpop.f32.mrf.mxu0
  %v221 = vadd.f32 %v189, %v220
  %v222 = vand.u32 %v77, 4294901760
  %v223 = vsub.f32 %v77, %v222
  %v224 = vand.u32 %v223, 4294901760
  %225 = vmatmul.f32.gmra.mxu0 %v224
  %v226 = vpop.f32.mrf.mxu0
  %v227 = vadd.f32 %v194, %v226
  %228 = vdwg.mxu0
  %229 = vmatpush.msra.mxu0 0.0
  %230 = vmatpush.msra.mxu0 0.0
  %231 = vmatpush.msra.mxu0 0.0
  %232 = vmatpush.msra.mxu0 0.0
  %233 = vmatpush.msra.mxu0 0.0
  %234 = vmatpush.msra.mxu0 0.0
  %235 = vmatpush.msra.mxu0 0.0
  %236 = vmatpush.msra.mxu0 0.0
  %237 = vmatpush.msra.mxu0 0.0
  %238 = vmatpush.msra.mxu0 0.0
  %239 = vmatpush.msra.mxu0 0.0
  %240 = vmatpush.msra.mxu0 0.0
  %v241 = vand.u32 %v72, 4294901760
  %v242 = vsub.f32 %v72, %v241
  %v243 = vand.u32 %v242, 4294901760
  %244 = vmatpush.msra.mxu0 %v243
  %v245 = vand.u32 %v71, 4294901760
  %v246 = vsub.f32 %v71, %v245
  %v247 = vand.u32 %v246, 4294901760
  %248 = vmatpush.msra.mxu0 %v247
  %v249 = vand.u32 %v70, 4294901760
  %v250 = vsub.f32 %v70, %v249
  %v251 = vand.u32 %v250, 4294901760
  %252 = vmatpush.msra.mxu0 %v251
  %v253 = vand.u32 %v69, 4294901760
  %v254 = vsub.f32 %v69, %v253
  %v255 = vand.u32 %v254, 4294901760
  %256 = vmatpush.msra.mxu0 %v255
  %v257 = vand.u32 %v74, 4294901760
  %258 = vmatmul.f32.gmra.mxu0 %v257
  %v259 = vpop.f32.mrf.mxu0
  %v260 = vadd.f32 %v221, %v259
  %v261 = vand.u32 %v77, 4294901760
  %262 = vmatmul.f32.gmra.mxu0 %v261
  %v263 = vpop.f32.mrf.mxu0
  %v264 = vadd.f32 %v227, %v263
  %265 = vdwg.mxu0
  %266 = vmatpush.msra.mxu0 0.0
  %267 = vmatpush.msra.mxu0 0.0
  %268 = vmatpush.msra.mxu0 0.0
  %269 = vmatpush.msra.mxu0 0.0
  %270 = vmatpush.msra.mxu0 0.0
  %271 = vmatpush.msra.mxu0 0.0
  %272 = vmatpush.msra.mxu0 0.0
  %273 = vmatpush.msra.mxu0 0.0
  %274 = vmatpush.msra.mxu0 0.0
  %275 = vmatpush.msra.mxu0 0.0
  %276 = vmatpush.msra.mxu0 0.0
  %277 = vmatpush.msra.mxu0 0.0
  %v278 = vand.u32 %v72, 4294901760
  %279 = vmatpush.msra.mxu0 %v278
  %v280 = vand.u32 %v71, 4294901760
  %281 = vmatpush.msra.mxu0 %v280
  %v282 = vand.u32 %v70, 4294901760
  %283 = vmatpush.msra.mxu0 %v282
  %v284 = vand.u32 %v69, 4294901760
  %285 = vmatpush.msra.mxu0 %v284
  %v286 = vand.u32 %v74, 4294901760
  %287 = vmatmul.f32.gmra.mxu0 %v286
  %v288 = vpop.f32.mrf.mxu0
  %v289 = vadd.f32 %v260, %v288
  %v290 = vand.u32 %v77, 4294901760
  %291 = vmatmul.f32.gmra.mxu0 %v290
  %v292 = vpop.f32.mrf.mxu0
  %v293 = vadd.f32 %v264, %v292
  %294 = vdwg.mxu0
  %vm295 = vcmask 523264
  %296 = vst.msk [vmem:[%s4] sm:$0xff] %vm295, %v289
  %297 = vst.msk [vmem:[%s4 + $0x8] sm:$0xff] %vm295, %v293
  %v298 = vld [vmem:[%s3] sm:$0xff]
  %v299 = vld [vmem:[%s3 + $0x8] sm:$0xff]
  %v300 = vld [vmem:[%s3 + $0x10] sm:$0xff]
  %v301 = vld [vmem:[%s3 + $0x18] sm:$0xff]
  %302 = vmatpush.msra.mxu0 0.0
  %303 = vmatpush.msra.mxu0 0.0
  %304 = vmatpush.msra.mxu0 0.0
  %305 = vmatpush.msra.mxu0 0.0
  %306 = vmatpush.msra.mxu0 0.0
  %307 = vmatpush.msra.mxu0 0.0
  %308 = vmatpush.msra.mxu0 0.0
  %309 = vmatpush.msra.mxu0 0.0
  %310 = vmatpush.msra.mxu0 0.0
  %311 = vmatpush.msra.mxu0 0.0
  %312 = vmatpush.msra.mxu0 0.0
  %313 = vmatpush.msra.mxu0 0.0
  %v314 = vand.u32 %v301, 4294901760
  %315 = vmatpush.msra.mxu0 %v314
  %v316 = vand.u32 %v300, 4294901760
  %317 = vmatpush.msra.mxu0 %v316
  %v318 = vand.u32 %v299, 4294901760
  %319 = vmatpush.msra.mxu0 %v318
  %v320 = vand.u32 %v298, 4294901760
  %321 = vmatpush.msra.mxu0 %v320
  %v322 = vand.u32 %v74, 4294901760
  %v323 = vsub.f32 %v74, %v322
  %v324 = vand.u32 %v323, 4294901760
  %v325 = vsub.f32 %v323, %v324
  %v326 = vand.u32 %v325, 4294901760
  %327 = vmatmul.f32.gmra.mxu0 %v326
  %v328 = vpop.f32.mrf.mxu0
  %v329 = vadd.f32 0.0, %v328
  %v330 = vand.u32 %v77, 4294901760
  %v331 = vsub.f32 %v77, %v330
  %v332 = vand.u32 %v331, 4294901760
  %v333 = vsub.f32 %v331, %v332
  %v334 = vand.u32 %v333, 4294901760
  %335 = vmatmul.f32.gmra.mxu0 %v334
  %v336 = vpop.f32.mrf.mxu0
  %v337 = vadd.f32 0.0, %v336
  %338 = vdwg.mxu0
  %339 = vmatpush.msra.mxu0 0.0
  %340 = vmatpush.msra.mxu0 0.0
  %341 = vmatpush.msra.mxu0 0.0
  %342 = vmatpush.msra.mxu0 0.0
  %343 = vmatpush.msra.mxu0 0.0
  %344 = vmatpush.msra.mxu0 0.0
  %345 = vmatpush.msra.mxu0 0.0
  %346 = vmatpush.msra.mxu0 0.0
  %347 = vmatpush.msra.mxu0 0.0
  %348 = vmatpush.msra.mxu0 0.0
  %349 = vmatpush.msra.mxu0 0.0
  %350 = vmatpush.msra.mxu0 0.0
  %v351 = vand.u32 %v301, 4294901760
  %v352 = vsub.f32 %v301, %v351
  %v353 = vand.u32 %v352, 4294901760
  %v354 = vsub.f32 %v352, %v353
  %v355 = vand.u32 %v354, 4294901760
  %356 = vmatpush.msra.mxu0 %v355
  %v357 = vand.u32 %v300, 4294901760
  %v358 = vsub.f32 %v300, %v357
  %v359 = vand.u32 %v358, 4294901760
  %v360 = vsub.f32 %v358, %v359
  %v361 = vand.u32 %v360, 4294901760
  %362 = vmatpush.msra.mxu0 %v361
  %v363 = vand.u32 %v299, 4294901760
  %v364 = vsub.f32 %v299, %v363
  %v365 = vand.u32 %v364, 4294901760
  %v366 = vsub.f32 %v364, %v365
  %v367 = vand.u32 %v366, 4294901760
  %368 = vmatpush.msra.mxu0 %v367
  %v369 = vand.u32 %v298, 4294901760
  %v370 = vsub.f32 %v298, %v369
  %v371 = vand.u32 %v370, 4294901760
  %v372 = vsub.f32 %v370, %v371
  %v373 = vand.u32 %v372, 4294901760
  %374 = vmatpush.msra.mxu0 %v373
  %v375 = vand.u32 %v74, 4294901760
  %376 = vmatmul.f32.gmra.mxu0 %v375
  %v377 = vpop.f32.mrf.mxu0
  %v378 = vadd.f32 %v329, %v377
  %v379 = vand.u32 %v77, 4294901760
  %380 = vmatmul.f32.gmra.mxu0 %v379
  %v381 = vpop.f32.mrf.mxu0
  %v382 = vadd.f32 %v337, %v381
  %383 = vdwg.mxu0
  %384 = vmatpush.msra.mxu0 0.0
  %385 = vmatpush.msra.mxu0 0.0
  %386 = vmatpush.msra.mxu0 0.0
  %387 = vmatpush.msra.mxu0 0.0
  %388 = vmatpush.msra.mxu0 0.0
  %389 = vmatpush.msra.mxu0 0.0
  %390 = vmatpush.msra.mxu0 0.0
  %391 = vmatpush.msra.mxu0 0.0
  %392 = vmatpush.msra.mxu0 0.0
  %393 = vmatpush.msra.mxu0 0.0
  %394 = vmatpush.msra.mxu0 0.0
  %395 = vmatpush.msra.mxu0 0.0
  %v396 = vand.u32 %v301, 4294901760
  %v397 = vsub.f32 %v301, %v396
  %398 = vmatpush.msra.mxu0 %v397
  %v399 = vand.u32 %v300, 4294901760
  %v400 = vsub.f32 %v300, %v399
  %401 = vmatpush.msra.mxu0 %v400
  %v402 = vand.u32 %v299, 4294901760
  %v403 = vsub.f32 %v299, %v402
  %404 = vmatpush.msra.mxu0 %v403
  %v405 = vand.u32 %v298, 4294901760
  %v406 = vsub.f32 %v298, %v405
  %407 = vmatpush.msra.mxu0 %v406
  %v408 = vand.u32 %v74, 4294901760
  %v409 = vsub.f32 %v74, %v408
  %410 = vmatmul.f32.gmra.mxu0 %v409
  %v411 = vpop.f32.mrf.mxu0
  %v412 = vadd.f32 %v378, %v411
  %v413 = vand.u32 %v77, 4294901760
  %v414 = vsub.f32 %v77, %v413
  %415 = vmatmul.f32.gmra.mxu0 %v414
  %v416 = vpop.f32.mrf.mxu0
  %v417 = vadd.f32 %v382, %v416
  %418 = vdwg.mxu0
  %419 = vmatpush.msra.mxu0 0.0
  %420 = vmatpush.msra.mxu0 0.0
  %421 = vmatpush.msra.mxu0 0.0
  %422 = vmatpush.msra.mxu0 0.0
  %423 = vmatpush.msra.mxu0 0.0
  %424 = vmatpush.msra.mxu0 0.0
  %425 = vmatpush.msra.mxu0 0.0
  %426 = vmatpush.msra.mxu0 0.0
  %427 = vmatpush.msra.mxu0 0.0
  %428 = vmatpush.msra.mxu0 0.0
  %429 = vmatpush.msra.mxu0 0.0
  %430 = vmatpush.msra.mxu0 0.0
  %v431 = vand.u32 %v301, 4294901760
  %432 = vmatpush.msra.mxu0 %v431
  %v433 = vand.u32 %v300, 4294901760
  %434 = vmatpush.msra.mxu0 %v433
  %v435 = vand.u32 %v299, 4294901760
  %436 = vmatpush.msra.mxu0 %v435
  %v437 = vand.u32 %v298, 4294901760
  %438 = vmatpush.msra.mxu0 %v437
  %v439 = vand.u32 %v74, 4294901760
  %v440 = vsub.f32 %v74, %v439
  %v441 = vand.u32 %v440, 4294901760
  %442 = vmatmul.f32.gmra.mxu0 %v441
  %v443 = vpop.f32.mrf.mxu0
  %v444 = vadd.f32 %v412, %v443
  %v445 = vand.u32 %v77, 4294901760
  %v446 = vsub.f32 %v77, %v445
  %v447 = vand.u32 %v446, 4294901760
  %448 = vmatmul.f32.gmra.mxu0 %v447
  %v449 = vpop.f32.mrf.mxu0
  %v450 = vadd.f32 %v417, %v449
  %451 = vdwg.mxu0
  %452 = vmatpush.msra.mxu0 0.0
  %453 = vmatpush.msra.mxu0 0.0
  %454 = vmatpush.msra.mxu0 0.0
  %455 = vmatpush.msra.mxu0 0.0
  %456 = vmatpush.msra.mxu0 0.0
  %457 = vmatpush.msra.mxu0 0.0
  %458 = vmatpush.msra.mxu0 0.0
  %459 = vmatpush.msra.mxu0 0.0
  %460 = vmatpush.msra.mxu0 0.0
  %461 = vmatpush.msra.mxu0 0.0
  %462 = vmatpush.msra.mxu0 0.0
  %463 = vmatpush.msra.mxu0 0.0
  %v464 = vand.u32 %v301, 4294901760
  %v465 = vsub.f32 %v301, %v464
  %v466 = vand.u32 %v465, 4294901760
  %467 = vmatpush.msra.mxu0 %v466
  %v468 = vand.u32 %v300, 4294901760
  %v469 = vsub.f32 %v300, %v468
  %v470 = vand.u32 %v469, 4294901760
  %471 = vmatpush.msra.mxu0 %v470
  %v472 = vand.u32 %v299, 4294901760
  %v473 = vsub.f32 %v299, %v472
  %v474 = vand.u32 %v473, 4294901760
  %475 = vmatpush.msra.mxu0 %v474
  %v476 = vand.u32 %v298, 4294901760
  %v477 = vsub.f32 %v298, %v476
  %v478 = vand.u32 %v477, 4294901760
  %479 = vmatpush.msra.mxu0 %v478
  %v480 = vand.u32 %v74, 4294901760
  %481 = vmatmul.f32.gmra.mxu0 %v480
  %v482 = vpop.f32.mrf.mxu0
  %v483 = vadd.f32 %v444, %v482
  %v484 = vand.u32 %v77, 4294901760
  %485 = vmatmul.f32.gmra.mxu0 %v484
  %v486 = vpop.f32.mrf.mxu0
  %v487 = vadd.f32 %v450, %v486
  %488 = vdwg.mxu0
  %489 = vmatpush.msra.mxu0 0.0
  %490 = vmatpush.msra.mxu0 0.0
  %491 = vmatpush.msra.mxu0 0.0
  %492 = vmatpush.msra.mxu0 0.0
  %493 = vmatpush.msra.mxu0 0.0
  %494 = vmatpush.msra.mxu0 0.0
  %495 = vmatpush.msra.mxu0 0.0
  %496 = vmatpush.msra.mxu0 0.0
  %497 = vmatpush.msra.mxu0 0.0
  %498 = vmatpush.msra.mxu0 0.0
  %499 = vmatpush.msra.mxu0 0.0
  %500 = vmatpush.msra.mxu0 0.0
  %v501 = vand.u32 %v301, 4294901760
  %502 = vmatpush.msra.mxu0 %v501
  %v503 = vand.u32 %v300, 4294901760
  %504 = vmatpush.msra.mxu0 %v503
  %v505 = vand.u32 %v299, 4294901760
  %506 = vmatpush.msra.mxu0 %v505
  %v507 = vand.u32 %v298, 4294901760
  %508 = vmatpush.msra.mxu0 %v507
  %v509 = vand.u32 %v74, 4294901760
  %510 = vmatmul.f32.gmra.mxu0 %v509
  %v511 = vpop.f32.mrf.mxu0
  %v512 = vadd.f32 %v483, %v511
  %v513 = vand.u32 %v77, 4294901760
  %514 = vmatmul.f32.gmra.mxu0 %v513
  %v515 = vpop.f32.mrf.mxu0
  %v516 = vadd.f32 %v487, %v515
  %517 = vdwg.mxu0
  %518 = vst.msk [vmem:[%s5] sm:$0xff] %vm295, %v512
  %519 = vst.msk [vmem:[%s5 + $0x8] sm:$0xff] %vm295, %v516
  // Predicated region
  $region18: #{network_forward.15} parent=0 // pred_check
    _
  $region19: #{network_forward.15} parent=0 // pred_check_branch
    %521 = sbr.rel (0) target = $region21
  $region20: #{network_forward.15} parent=0 // pred_region
    _
  $region21: #{network_forward.15} parent=0 // pred_fallthru
    _
  // Predicated region
  $region22: #{network_forward.15} parent=0 // pred_check
    _
  $region23: #{network_forward.15} parent=0 // pred_check_branch
    %523 = sbr.rel (0) target = $region25
  $region24: #{network_forward.15} parent=0 // pred_region
    _
  $region25: #{network_forward.15} parent=0 // pred_fallthru
    _
  // Predicated region
  $region26: #{network_forward.15} parent=0 // pred_check
    _
  $region27: #{network_forward.15} parent=0 // pred_check_branch
    %525 = sbr.rel (0) target = $region29
  $region28: #{network_forward.15} parent=0 // pred_region
    _
  $region29: #{network_forward.15} parent=0 // pred_fallthru
    _
  // Predicated region
  $region30: #{network_forward.15} parent=0 // pred_check
    _
  $region31: #{network_forward.15} parent=0 // pred_check_branch
    %527 = sbr.rel (0) target = $region33
  $region32: #{network_forward.15} parent=0 // pred_region
    _
  $region33: #{network_forward.15} parent=0 // pred_fallthru
    _

// kernel: network_forward.19
$region0: #{network_forward.19}
  #allocation0 [shape = 'u32[]', space=smem, size = 0x4, offset = 0x4, fixed_abs, tag = 'smem constant byte address 0x4 - core index']
  #allocation1 [shape = 'u32[72,128]{1,0:T(1,128)}', space=vmem, size = 0x9000, scoped, tag = 'internal scratch']
  %s0 = inlined_call_operand.vmem [shape: f32[16,32], index: 0, kind: input, shape index: {}]
  %s1 = inlined_call_operand.vmem [shape: f32[1,32], index: 1, kind: input, shape index: {}]
  %s2 = inlined_call_operand.vmem [shape: f32[32,4], index: 2, kind: input, shape index: {}]
  %s3 = inlined_call_operand.vmem [shape: f32[1,4], index: 3, kind: input, shape index: {}]
  %s4 = inlined_call_operand.vmem [shape: f32[16,4], index: 4, kind: output, shape index: {}]
  %s5 = sld [smem:[#allocation0]]
  $region26: #{network_forward.19} parent=0
    _
  %s7 = ssub.s32 1, %s5
  %s8 = scalar_select 0, %s7, %s5
  // Predicated region
  $region2: #{network_forward.19} parent=0 // pred_check
    _
  $region3: #{network_forward.19} parent=0 // pred_check_branch
    %10 = sbr.rel (0) target = $region5
  $region4: #{network_forward.19} parent=0 // pred_region
    _
  $region5: #{network_forward.19} parent=0 // pred_fallthru
    _
  // Predicated region
  $region6: #{network_forward.19} parent=0 // pred_check
    _
  $region7: #{network_forward.19} parent=0 // pred_check_branch
    %12 = sbr.rel (0) target = $region9
  $region8: #{network_forward.19} parent=0 // pred_region
    _
  $region9: #{network_forward.19} parent=0 // pred_fallthru
    _
  // Predicated region
  $region10: #{network_forward.19} parent=0 // pred_check
    _
  $region11: #{network_forward.19} parent=0 // pred_check_branch
    %14 = sbr.rel (0) target = $region13
  $region12: #{network_forward.19} parent=0 // pred_region
    _
  $region13: #{network_forward.19} parent=0 // pred_fallthru
    _
  // Predicated region
  $region14: #{network_forward.19} parent=0 // pred_check
    _
  $region15: #{network_forward.19} parent=0 // pred_check_branch
    %16 = sbr.rel (0) target = $region17
  $region16: #{network_forward.19} parent=0 // pred_region
    _
  $region17: #{network_forward.19} parent=0 // pred_fallthru
    _
  %v17 = vld [vmem:[%s0] sm:$0xff]
  %v18 = vld [vmem:[%s0 + $0x8] sm:$0xff]
  %v19 = vmul.f32 %v17, %v17
  %v20 = vmul.f32 %v18, %v18
  %vm21 = vcmask 261120
  %v22 = vsel %vm21, %v19, 0.0
  %23 = vadd.xlane.f32.xlu0 %v22
  %v24 = vpop.xlane.xlu0 %23
  %v25 = vsel %vm21, %v20, 0.0
  %26 = vadd.xlane.f32.xlu0 %v25
  %v27 = vpop.xlane.xlu0 %26
  %v28 = vrcp.pop 32.0
  %v29 = vmul.f32 32.0, %v28
  %v30 = vsub.f32 1.0, %v29
  %v31 = vmul.f32 %v28, %v30
  %v32 = vadd.f32 %v28, %v31
  %vm33 = vweird.f32 %v28
  %v34 = vsel %vm33, %v28, %v32
  %v35 = vmul.f32 %v24, %v34
  %v36 = vmul.f32 %v27, %v34
  %v37 = vadd.f32 %v35, 1e-05
  %v38 = vadd.f32 %v36, 1e-05
  %v39 = vrsqrt.pop %v37
  %v40 = vmul.f32 %v39, %v37
  %v41 = vmul.f32 %v40, %v39
  %v42 = vmul.f32 0.5, %v41
  %v43 = vsub.f32 1.5, %v42
  %v44 = vmul.f32 %v39, %v43
  %vm45 = vweird.f32 %v37
  %vm46 = vweird.f32 %v39
  %vm47 = vmor %vm45, %vm46
  %v48 = vsel %vm47, %v39, %v44
  %v49 = vrsqrt.pop %v38
  %v50 = vmul.f32 %v49, %v38
  %v51 = vmul.f32 %v50, %v49
  %v52 = vmul.f32 0.5, %v51
  %v53 = vsub.f32 1.5, %v52
  %v54 = vmul.f32 %v49, %v53
  %vm55 = vweird.f32 %v38
  %vm56 = vweird.f32 %v49
  %vm57 = vmor %vm55, %vm56
  %v58 = vsel %vm57, %v49, %v54
  %v59 = vmul.f32 %v17, %v48
  %v60 = vmul.f32 %v18, %v58
  %v61 = vld [vmem:[%s1] sm:$0x1]
  %v63 = vperm.slane %v61, 0
  %v65 = vmul.f32 %v59, %v63
  %v66 = vmul.f32 %v60, %v63
  %v67 = vld [vmem:[%s2] sm:$0xff]
  %v68 = vld [vmem:[%s2 + $0x8] sm:$0xff]
  %v69 = vld [vmem:[%s2 + $0x10] sm:$0xff]
  %v70 = vld [vmem:[%s2 + $0x18] sm:$0xff]
  %v71 = vld [vmem:[%s3] sm:$0x1]
  %v73 = vperm.slane %v71, 0
  %v76 = vsel %vm21, %v65, 0
  %v79 = vsel %vm21, %v66, 0
  %81 = vmatpush.msra.mxu0 0.0
  %82 = vmatpush.msra.mxu0 0.0
  %83 = vmatpush.msra.mxu0 0.0
  %84 = vmatpush.msra.mxu0 0.0
  %85 = vmatpush.msra.mxu0 0.0
  %86 = vmatpush.msra.mxu0 0.0
  %87 = vmatpush.msra.mxu0 0.0
  %88 = vmatpush.msra.mxu0 0.0
  %89 = vmatpush.msra.mxu0 0.0
  %90 = vmatpush.msra.mxu0 0.0
  %91 = vmatpush.msra.mxu0 0.0
  %92 = vmatpush.msra.mxu0 0.0
  %v93 = vand.u32 %v70, 4294901760
  %94 = vmatpush.msra.mxu0 %v93
  %v95 = vand.u32 %v69, 4294901760
  %96 = vmatpush.msra.mxu0 %v95
  %v97 = vand.u32 %v68, 4294901760
  %98 = vmatpush.msra.mxu0 %v97
  %v99 = vand.u32 %v67, 4294901760
  %100 = vmatpush.msra.mxu0 %v99
  %v101 = vand.u32 %v76, 4294901760
  %v102 = vsub.f32 %v76, %v101
  %v103 = vand.u32 %v102, 4294901760
  %v104 = vsub.f32 %v102, %v103
  %v105 = vand.u32 %v104, 4294901760
  %106 = vmatmul.f32.gmra.mxu0 %v105
  %v107 = vpop.f32.mrf.mxu0
  %v108 = vadd.f32 %v73, %v107
  %v109 = vand.u32 %v79, 4294901760
  %v110 = vsub.f32 %v79, %v109
  %v111 = vand.u32 %v110, 4294901760
  %v112 = vsub.f32 %v110, %v111
  %v113 = vand.u32 %v112, 4294901760
  %114 = vmatmul.f32.gmra.mxu0 %v113
  %v115 = vpop.f32.mrf.mxu0
  %v116 = vadd.f32 %v73, %v115
  %117 = vdwg.mxu0
  %118 = vmatpush.msra.mxu0 0.0
  %119 = vmatpush.msra.mxu0 0.0
  %120 = vmatpush.msra.mxu0 0.0
  %121 = vmatpush.msra.mxu0 0.0
  %122 = vmatpush.msra.mxu0 0.0
  %123 = vmatpush.msra.mxu0 0.0
  %124 = vmatpush.msra.mxu0 0.0
  %125 = vmatpush.msra.mxu0 0.0
  %126 = vmatpush.msra.mxu0 0.0
  %127 = vmatpush.msra.mxu0 0.0
  %128 = vmatpush.msra.mxu0 0.0
  %129 = vmatpush.msra.mxu0 0.0
  %v130 = vand.u32 %v70, 4294901760
  %v131 = vsub.f32 %v70, %v130
  %v132 = vand.u32 %v131, 4294901760
  %v133 = vsub.f32 %v131, %v132
  %v134 = vand.u32 %v133, 4294901760
  %135 = vmatpush.msra.mxu0 %v134
  %v136 = vand.u32 %v69, 4294901760
  %v137 = vsub.f32 %v69, %v136
  %v138 = vand.u32 %v137, 4294901760
  %v139 = vsub.f32 %v137, %v138
  %v140 = vand.u32 %v139, 4294901760
  %141 = vmatpush.msra.mxu0 %v140
  %v142 = vand.u32 %v68, 4294901760
  %v143 = vsub.f32 %v68, %v142
  %v144 = vand.u32 %v143, 4294901760
  %v145 = vsub.f32 %v143, %v144
  %v146 = vand.u32 %v145, 4294901760
  %147 = vmatpush.msra.mxu0 %v146
  %v148 = vand.u32 %v67, 4294901760
  %v149 = vsub.f32 %v67, %v148
  %v150 = vand.u32 %v149, 4294901760
  %v151 = vsub.f32 %v149, %v150
  %v152 = vand.u32 %v151, 4294901760
  %153 = vmatpush.msra.mxu0 %v152
  %v154 = vand.u32 %v76, 4294901760
  %155 = vmatmul.f32.gmra.mxu0 %v154
  %v156 = vpop.f32.mrf.mxu0
  %v157 = vadd.f32 %v108, %v156
  %v158 = vand.u32 %v79, 4294901760
  %159 = vmatmul.f32.gmra.mxu0 %v158
  %v160 = vpop.f32.mrf.mxu0
  %v161 = vadd.f32 %v116, %v160
  %162 = vdwg.mxu0
  %163 = vmatpush.msra.mxu0 0.0
  %164 = vmatpush.msra.mxu0 0.0
  %165 = vmatpush.msra.mxu0 0.0
  %166 = vmatpush.msra.mxu0 0.0
  %167 = vmatpush.msra.mxu0 0.0
  %168 = vmatpush.msra.mxu0 0.0
  %169 = vmatpush.msra.mxu0 0.0
  %170 = vmatpush.msra.mxu0 0.0
  %171 = vmatpush.msra.mxu0 0.0
  %172 = vmatpush.msra.mxu0 0.0
  %173 = vmatpush.msra.mxu0 0.0
  %174 = vmatpush.msra.mxu0 0.0
  %v175 = vand.u32 %v70, 4294901760
  %v176 = vsub.f32 %v70, %v175
  %177 = vmatpush.msra.mxu0 %v176
  %v178 = vand.u32 %v69, 4294901760
  %v179 = vsub.f32 %v69, %v178
  %180 = vmatpush.msra.mxu0 %v179
  %v181 = vand.u32 %v68, 4294901760
  %v182 = vsub.f32 %v68, %v181
  %183 = vmatpush.msra.mxu0 %v182
  %v184 = vand.u32 %v67, 4294901760
  %v185 = vsub.f32 %v67, %v184
  %186 = vmatpush.msra.mxu0 %v185
  %v187 = vand.u32 %v76, 4294901760
  %v188 = vsub.f32 %v76, %v187
  %189 = vmatmul.f32.gmra.mxu0 %v188
  %v190 = vpop.f32.mrf.mxu0
  %v191 = vadd.f32 %v157, %v190
  %v192 = vand.u32 %v79, 4294901760
  %v193 = vsub.f32 %v79, %v192
  %194 = vmatmul.f32.gmra.mxu0 %v193
  %v195 = vpop.f32.mrf.mxu0
  %v196 = vadd.f32 %v161, %v195
  %197 = vdwg.mxu0
  %198 = vmatpush.msra.mxu0 0.0
  %199 = vmatpush.msra.mxu0 0.0
  %200 = vmatpush.msra.mxu0 0.0
  %201 = vmatpush.msra.mxu0 0.0
  %202 = vmatpush.msra.mxu0 0.0
  %203 = vmatpush.msra.mxu0 0.0
  %204 = vmatpush.msra.mxu0 0.0
  %205 = vmatpush.msra.mxu0 0.0
  %206 = vmatpush.msra.mxu0 0.0
  %207 = vmatpush.msra.mxu0 0.0
  %208 = vmatpush.msra.mxu0 0.0
  %209 = vmatpush.msra.mxu0 0.0
  %v210 = vand.u32 %v70, 4294901760
  %211 = vmatpush.msra.mxu0 %v210
  %v212 = vand.u32 %v69, 4294901760
  %213 = vmatpush.msra.mxu0 %v212
  %v214 = vand.u32 %v68, 4294901760
  %215 = vmatpush.msra.mxu0 %v214
  %v216 = vand.u32 %v67, 4294901760
  %217 = vmatpush.msra.mxu0 %v216
  %v218 = vand.u32 %v76, 4294901760
  %v219 = vsub.f32 %v76, %v218
  %v220 = vand.u32 %v219, 4294901760
  %221 = vmatmul.f32.gmra.mxu0 %v220
  %v222 = vpop.f32.mrf.mxu0
  %v223 = vadd.f32 %v191, %v222
  %v224 = vand.u32 %v79, 4294901760
  %v225 = vsub.f32 %v79, %v224
  %v226 = vand.u32 %v225, 4294901760
  %227 = vmatmul.f32.gmra.mxu0 %v226
  %v228 = vpop.f32.mrf.mxu0
  %v229 = vadd.f32 %v196, %v228
  %230 = vdwg.mxu0
  %231 = vmatpush.msra.mxu0 0.0
  %232 = vmatpush.msra.mxu0 0.0
  %233 = vmatpush.msra.mxu0 0.0
  %234 = vmatpush.msra.mxu0 0.0
  %235 = vmatpush.msra.mxu0 0.0
  %236 = vmatpush.msra.mxu0 0.0
  %237 = vmatpush.msra.mxu0 0.0
  %238 = vmatpush.msra.mxu0 0.0
  %239 = vmatpush.msra.mxu0 0.0
  %240 = vmatpush.msra.mxu0 0.0
  %241 = vmatpush.msra.mxu0 0.0
  %242 = vmatpush.msra.mxu0 0.0
  %v243 = vand.u32 %v70, 4294901760
  %v244 = vsub.f32 %v70, %v243
  %v245 = vand.u32 %v244, 4294901760
  %246 = vmatpush.msra.mxu0 %v245
  %v247 = vand.u32 %v69, 4294901760
  %v248 = vsub.f32 %v69, %v247
  %v249 = vand.u32 %v248, 4294901760
  %250 = vmatpush.msra.mxu0 %v249
  %v251 = vand.u32 %v68, 4294901760
  %v252 = vsub.f32 %v68, %v251
  %v253 = vand.u32 %v252, 4294901760
  %254 = vmatpush.msra.mxu0 %v253
  %v255 = vand.u32 %v67, 4294901760
  %v256 = vsub.f32 %v67, %v255
  %v257 = vand.u32 %v256, 4294901760
  %258 = vmatpush.msra.mxu0 %v257
  %v259 = vand.u32 %v76, 4294901760
  %260 = vmatmul.f32.gmra.mxu0 %v259
  %v261 = vpop.f32.mrf.mxu0
  %v262 = vadd.f32 %v223, %v261
  %v263 = vand.u32 %v79, 4294901760
  %264 = vmatmul.f32.gmra.mxu0 %v263
  %v265 = vpop.f32.mrf.mxu0
  %v266 = vadd.f32 %v229, %v265
  %267 = vdwg.mxu0
  %268 = vmatpush.msra.mxu0 0.0
  %269 = vmatpush.msra.mxu0 0.0
  %270 = vmatpush.msra.mxu0 0.0
  %271 = vmatpush.msra.mxu0 0.0
  %272 = vmatpush.msra.mxu0 0.0
  %273 = vmatpush.msra.mxu0 0.0
  %274 = vmatpush.msra.mxu0 0.0
  %275 = vmatpush.msra.mxu0 0.0
  %276 = vmatpush.msra.mxu0 0.0
  %277 = vmatpush.msra.mxu0 0.0
  %278 = vmatpush.msra.mxu0 0.0
  %279 = vmatpush.msra.mxu0 0.0
  %v280 = vand.u32 %v70, 4294901760
  %281 = vmatpush.msra.mxu0 %v280
  %v282 = vand.u32 %v69, 4294901760
  %283 = vmatpush.msra.mxu0 %v282
  %v284 = vand.u32 %v68, 4294901760
  %285 = vmatpush.msra.mxu0 %v284
  %v286 = vand.u32 %v67, 4294901760
  %287 = vmatpush.msra.mxu0 %v286
  %v288 = vand.u32 %v76, 4294901760
  %289 = vmatmul.f32.gmra.mxu0 %v288
  %v290 = vpop.f32.mrf.mxu0
  %v291 = vadd.f32 %v262, %v290
  %v292 = vand.u32 %v79, 4294901760
  %293 = vmatmul.f32.gmra.mxu0 %v292
  %v294 = vpop.f32.mrf.mxu0
  %v295 = vadd.f32 %v266, %v294
  %296 = vdwg.mxu0
  %vm297 = vcmp.ge.f32.partialorder %v291, 0.0
  %vm298 = vcmp.ge.f32.partialorder %v295, 0.0
  %v299 = vmul.f32 %v291, 0.01
  %v300 = vmul.f32 %v295, 0.01
  %v301 = vsel %vm297, %v291, %v299
  %v302 = vsel %vm298, %v295, %v300
  %vm303 = vcmask 31744
  %304 = vst.msk [vmem:[%s4] sm:$0xff] %vm303, %v301
  %305 = vst.msk [vmem:[%s4 + $0x8] sm:$0xff] %vm303, %v302
  // Predicated region
  $region18: #{network_forward.19} parent=0 // pred_check
    _
  $region19: #{network_forward.19} parent=0 // pred_check_branch
    %307 = sbr.rel (0) target = $region21
  $region20: #{network_forward.19} parent=0 // pred_region
    _
  $region21: #{network_forward.19} parent=0 // pred_fallthru
    _
  // Predicated region
  $region22: #{network_forward.19} parent=0 // pred_check
    _
  $region23: #{network_forward.19} parent=0 // pred_check_branch
    %309 = sbr.rel (0) target = $region25
  $region24: #{network_forward.19} parent=0 // pred_region
    _
  $region25: #{network_forward.19} parent=0 // pred_fallthru
    _

</llo_original>
